<compile_context>
chip_gen: v7x
topology: tpu7x:2x2x1
jax: 0.10.0
libtpu: 0.0.40
codegen_flags: <defaults>
</compile_context>

<pallas_src>
import functools
import math

import jax
import jax.numpy as jnp
from jax.experimental import pallas as pl
from jax.experimental.pallas import tpu as pltpu


# ----------------------------------------------------------------------------
# helpers
# ----------------------------------------------------------------------------
def _round_up(n, m):
    return ((n + m - 1) // m) * m


def _full_spec(shape):
    """BlockSpec covering the whole array (single-block kernels)."""
    return pl.BlockSpec(shape, lambda *_: (0,) * len(shape))


def _softplus(x, beta, threshold):
    # torch.nn.Softplus(beta, threshold):
    #   (1/beta) * log(1 + exp(beta*x)); linear pass-through where beta*x > threshold.
    bx = beta * x
    soft = jnp.log(1.0 + jnp.exp(jnp.minimum(bx, threshold))) / beta
    return jnp.where(bx > threshold, x, soft)


# ----------------------------------------------------------------------------
# fused conv-level kernel (MultiLevelInteraction + VEConv), one launch per level
# ----------------------------------------------------------------------------
def _conv_layer_kernel(node_ref, rbf_ref, ef_ref, s_ref, d_ref,
                       wn1_ref, bn1_ref, wv1_ref, bv1_ref, wv2_ref, bv2_ref,
                       wv3_ref, bv3_ref, we1_ref, be1_ref,
                       wn2_ref, bn2_ref, wn3_ref, bn3_ref,
                       node_out_ref, edge_out_ref, *, beta, threshold):
    f32 = jnp.float32
    node_prev = node_ref[...]

    # MultiLevelInteraction.node_layer1
    new_node = jnp.dot(node_prev, wn1_ref[...], preferred_element_type=f32) + bn1_ref[...]

    # VEConv rbf branch: h = linear2(softplus(linear1(rbf)))
    h = jnp.dot(rbf_ref[...], wv1_ref[...], preferred_element_type=f32) + bv1_ref[...]
    h = _softplus(h, beta, threshold)
    h = jnp.dot(h, wv2_ref[...], preferred_element_type=f32) + bv2_ref[...]

    # VEConv edge update: edge_f <- linear3(edge_f)
    ef = jnp.dot(ef_ref[...], wv3_ref[...], preferred_element_type=f32) + bv3_ref[...]

    # Message passing (u_mul_e + copy_e, sum reduce), as one-hot incidence matmuls:
    #   out_v = sum_{e: dst(e)=v} ( new_node[src(e)] * h_e + ef_e )
    src_feat = jnp.dot(s_ref[...].astype(f32), new_node, preferred_element_type=f32)
    msg = src_feat * h + ef
    node_conv = jnp.dot(d_ref[...].astype(f32), msg, preferred_element_type=f32)

    # edge track: edge_{l+1} = softplus(edge_layer1(edge_f))
    e_next = jnp.dot(ef, we1_ref[...], preferred_element_type=f32) + be1_ref[...]
    edge_out_ref[...] = _softplus(e_next, beta, threshold).astype(edge_out_ref.dtype)

    # node track: node_{l+1} = node_l + node_layer3(softplus(node_layer2(conv)))
    t = _softplus(jnp.dot(node_conv, wn2_ref[...], preferred_element_type=f32)
                  + bn2_ref[...], beta, threshold)
    node_out_ref[...] = (node_prev
                         + jnp.dot(t, wn3_ref[...], preferred_element_type=f32)
                         + bn3_ref[...]).astype(node_out_ref.dtype)


def pallas_conv_layer(node_prev, rbf, edge_f, S, D, p):
    """One fused MultiLevelInteraction level (node1, VEConv, edge1, node2/3 + residual)."""
    N, dim = node_prev.shape
    E, edge_dim = edge_f.shape
    Kr = rbf.shape[1]
    assert dim == edge_dim, "MGCN default config requires dim == edge_dim"

    def row(b):  # biases as (1, n) rows for lane-major broadcast
        return b.reshape(1, -1)

    wv1 = p["ve1"][0]
    if wv1.shape[0] != Kr:   # rbf feature axis was zero-padded to a 128 multiple
        wv1 = jnp.pad(wv1, ((0, Kr - wv1.shape[0]), (0, 0)))

    args = (node_prev, rbf, edge_f, S, D,
            p["node1"][0], row(p["node1"][1]),
            wv1, row(p["ve1"][1]),
            p["ve2"][0], row(p["ve2"][1]),
            p["ve3"][0], row(p["ve3"][1]),
            p["edge1"][0], row(p["edge1"][1]),
            p["node2"][0], row(p["node2"][1]),
            p["node3"][0], row(p["node3"][1]))

    kern = functools.partial(_conv_layer_kernel, beta=0.5, threshold=14.0)
    # TODO(synk): for realistic molecular batches (N~2-8K nodes, E~30K edges) replace
    # the one-hot incidence matmuls with a scalar-prefetch gather + segment-sum
    # scatter and tile this kernel over node/edge row blocks (v7x has 64 MiB VMEM).
    return pl.pallas_call(
        kern,
        out_shape=(jax.ShapeDtypeStruct((N, dim), jnp.float32),
                   jax.ShapeDtypeStruct((E, edge_dim), jnp.float32)),
        grid=(1,),
        in_specs=[_full_spec(a.shape) for a in args],
        out_specs=(_full_spec((N, dim)), _full_spec((E, edge_dim))),
        compiler_params=pltpu.CompilerParams(dimension_semantics=("arbitrary",)),
    )(*args)


# ----------------------------------------------------------------------------
# fused readout kernel: dense1 -> softplus -> dense2 -> per-graph sum_nodes
# ----------------------------------------------------------------------------
def _readout_kernel(*refs, n_levels, dim, beta, threshold):
    node_refs = refs[:n_levels]
    w1_ref, b1_ref, w2_ref, b2_ref, member_ref, out_ref = refs[n_levels:]
    f32 = jnp.float32
    w1 = w1_ref[...]
    # dense1(concat(node_0..node_L)) computed as a sum over per-level weight slices,
    # so the concatenated (N, dim*(L+1)) feature matrix is never materialized.
    acc = jnp.dot(node_refs[0][...], w1[:dim, :], preferred_element_type=f32)
    for l in range(1, n_levels):
        acc = acc + jnp.dot(node_refs[l][...], w1[l * dim:(l + 1) * dim, :],
                            preferred_element_type=f32)
    h = _softplus(acc + b1_ref[...], beta, threshold)
    res = jnp.dot(h, w2_ref[...], preferred_element_type=f32) + b2_ref[...]
    # sum_nodes(g, 'res') as a per-graph membership matmul, fused into the epilogue.
    out_ref[...] = jnp.dot(member_ref[...].astype(f32), res,
                           preferred_element_type=f32).astype(out_ref.dtype)


def pallas_readout(node_levels, dense1, dense2, graph_member):
    n_levels = len(node_levels)
    N, dim = node_levels[0].shape
    B = graph_member.shape[0]
    out_dim = dense2[0].shape[1]
    args = (*node_levels,
            dense1[0], dense1[1].reshape(1, -1),
            dense2[0], dense2[1].reshape(1, -1),
            graph_member)
    kern = functools.partial(_readout_kernel, n_levels=n_levels, dim=dim,
                             beta=1.0, threshold=20.0)
    return pl.pallas_call(
        kern,
        out_shape=jax.ShapeDtypeStruct((B, out_dim), jnp.float32),
        grid=(1,),
        in_specs=[_full_spec(a.shape) for a in args],
        out_specs=_full_spec((B, out_dim)),
        compiler_params=pltpu.CompilerParams(dimension_semantics=("arbitrary",)),
    )(*args)


# ----------------------------------------------------------------------------
# Parameter construction (deterministic, mirrors the PyTorch __init__ shapes)
# ----------------------------------------------------------------------------
def _linear_params(key, fan_in, fan_out):
    kw, kb = jax.random.split(key)
    bound = 1.0 / math.sqrt(fan_in)
    w = jax.random.uniform(kw, (fan_in, fan_out), jnp.float32, -bound, bound)
    b = jax.random.uniform(kb, (fan_out,), jnp.float32, -bound, bound)
    return w, b


def init_mgcn_params(key, *, dim, edge_dim, rbf_dim, n_conv, output_dim,
                     type_num=16, edge_type_num=128):
    keys = jax.random.split(key, 8 + n_conv)
    # AtomEmbedding / EdgeEmbedding tables (padding_idx=0 -> zero row 0)
    atom_emb = jax.random.normal(keys[0], (type_num, dim), jnp.float32)
    atom_emb = atom_emb.at[0].set(0.0)
    edge_emb = jax.random.normal(keys[1], (edge_type_num, edge_dim), jnp.float32)
    edge_emb = edge_emb.at[0].set(0.0)

    conv_params = []
    for l in range(n_conv):
        ks = jax.random.split(keys[2 + l], 8)
        conv_params.append(dict(
            node1=_linear_params(ks[0], dim, dim),
            edge1=_linear_params(ks[1], edge_dim, edge_dim),
            ve1=_linear_params(ks[2], rbf_dim, dim),        # VEConv.linear_layer1
            ve2=_linear_params(ks[3], dim, dim),            # VEConv.linear_layer2
            ve3=_linear_params(ks[4], edge_dim, edge_dim),  # VEConv.linear_layer3
            node2=_linear_params(ks[5], dim, dim),
            node3=_linear_params(ks[6], dim, dim),
        ))

    dense1 = _linear_params(keys[2 + n_conv], dim * (n_conv + 1), 64)
    dense2 = _linear_params(keys[3 + n_conv], 64, output_dim)
    return dict(atom_emb=atom_emb, edge_emb=edge_emb,
                conv=conv_params, dense1=dense1, dense2=dense2)


# ----------------------------------------------------------------------------
# MGCN forward
# ----------------------------------------------------------------------------
def mgcn_forward(params, node_type, src, dst, distance, graph_member,
                 *, cutoff=5.0, width=1.0, n_conv=3):
    N = node_type.shape[0]

    # AtomEmbedding (embedding-row gather kept as XLA glue)
    node_0 = jnp.take(params["atom_emb"], node_type, axis=0)

    # RBFLayer(0, cutoff, width): centers = linspace(0, cutoff, ceil(cutoff/width))
    n_centers = int(math.ceil((cutoff - 0.0) / width))
    centers = jnp.linspace(0.0, cutoff, n_centers, dtype=jnp.float32)
    gap = centers[1] - centers[0]
    rbf = jnp.exp((-1.0 / gap) * (distance - centers[None, :]) ** 2)   # (E, rbf_dim)
    # zero-pad rbf feature axis to a 128-lane multiple (padded weight rows are 0 -> exact)
    rbf_pad = _round_up(n_centers, 128)
    rbf = jnp.pad(rbf, ((0, 0), (0, rbf_pad - n_centers)))

    # EdgeEmbedding: symmetric pair id  type = tx*ty + (|tx - ty| - 1)^2 // 4
    tx = node_type[src]
    ty = node_type[dst]
    etype = tx * ty + ((jnp.abs(tx - ty) - 1) ** 2) // 4
    edge_f = jnp.take(params["edge_emb"], etype, axis=0)               # (E, edge_dim)

    # one-hot incidence matrices for in-kernel gather/scatter matmuls,
    # stored in bf16 (exact for 0/1 entries) to halve HBM/DMA traffic.
    S = jax.nn.one_hot(src, N, dtype=jnp.bfloat16)                     # (E, N)
    D = jnp.transpose(jax.nn.one_hot(dst, N, dtype=jnp.bfloat16))      # (N, E)

    node_levels = [node_0]
    node_prev = node_0
    for l in range(n_conv):
        node_prev, edge_f = pallas_conv_layer(node_prev, rbf, edge_f, S, D,
                                              params["conv"][l])
        node_levels.append(node_prev)

    # fused readout: dense1 -> Softplus(1, 20) -> dense2 -> per-graph sum_nodes
    return pallas_readout(node_levels, params["dense1"], params["dense2"],
                          graph_member)


# ----------------------------------------------------------------------------
# Example run
# ----------------------------------------------------------------------------
if __name__ == "__main__":
    # Small synthetic batched molecular graph:
    #   2 graphs x 8 atoms = 16 nodes, 32 directed edges per graph = 64 edges.
    DIM = 128         # module default; keeps every matmul / store 128 lanes wide
    EDGE_DIM = 128
    N_CONV = 3
    OUTPUT_DIM = 1
    CUTOFF = 5.0
    WIDTH = 1.0
    RBF_DIM = int(math.ceil(CUTOFF / WIDTH))   # 5

    N_GRAPHS, NODES_PER_GRAPH, EDGES_PER_GRAPH = 2, 8, 32
    N = N_GRAPHS * NODES_PER_GRAPH             # 16
    E = N_GRAPHS * EDGES_PER_GRAPH             # 64

    key = jax.random.PRNGKey(0)
    k_type, k_src, k_dst, k_dist, k_param = jax.random.split(key, 5)

    node_type = jax.random.randint(k_type, (N,), 1, 10, dtype=jnp.int32)

    # edges stay within their own graph
    src_local = jax.random.randint(k_src, (N_GRAPHS, EDGES_PER_GRAPH), 0,
                                   NODES_PER_GRAPH, dtype=jnp.int32)
    dst_local = jax.random.randint(k_dst, (N_GRAPHS, EDGES_PER_GRAPH), 0,
                                   NODES_PER_GRAPH, dtype=jnp.int32)
    offsets = (jnp.arange(N_GRAPHS, dtype=jnp.int32) * NODES_PER_GRAPH)[:, None]
    src = (src_local + offsets).reshape(-1)
    dst = (dst_local + offsets).reshape(-1)

    distance = jax.random.uniform(k_dist, (E, 1), jnp.float32, 0.1, CUTOFF)

    # graph membership (B, N): graph_member[b, n] = 1 iff node n belongs to graph b
    graph_ids = jnp.repeat(jnp.arange(N_GRAPHS, dtype=jnp.int32), NODES_PER_GRAPH)
    graph_member = (graph_ids[None, :] ==
                    jnp.arange(N_GRAPHS, dtype=jnp.int32)[:, None]).astype(jnp.float32)

    params = init_mgcn_params(k_param, dim=DIM, edge_dim=EDGE_DIM,
                              rbf_dim=RBF_DIM, n_conv=N_CONV,
                              output_dim=OUTPUT_DIM)

    fwd = jax.jit(functools.partial(mgcn_forward, cutoff=CUTOFF, width=WIDTH,
                                    n_conv=N_CONV))
    out = fwd(params, node_type, src, dst, distance, graph_member)
    out = jax.block_until_ready(out)
    assert out.shape == (N_GRAPHS, OUTPUT_DIM)
    # TODO(synk): atom_ref / norm branches (disabled by default in the PyTorch
    # module) are not implemented.
    print("KERNEL_OK")
</pallas_src>

<mosaic_0001>
module attributes {stable_mosaic.version = 11 : i64} {
  func.func @_conv_layer_kernel(%arg0: i32, %arg1: memref<16x128xf32, #tpu.memory_space<vmem>>, %arg2: memref<64x128xf32, #tpu.memory_space<vmem>>, %arg3: memref<64x128xf32, #tpu.memory_space<vmem>>, %arg4: memref<64x16xbf16, #tpu.memory_space<vmem>>, %arg5: memref<16x64xbf16, #tpu.memory_space<vmem>>, %arg6: memref<128x128xf32, #tpu.memory_space<vmem>>, %arg7: memref<1x128xf32, #tpu.memory_space<vmem>>, %arg8: memref<128x128xf32, #tpu.memory_space<vmem>>, %arg9: memref<1x128xf32, #tpu.memory_space<vmem>>, %arg10: memref<128x128xf32, #tpu.memory_space<vmem>>, %arg11: memref<1x128xf32, #tpu.memory_space<vmem>>, %arg12: memref<128x128xf32, #tpu.memory_space<vmem>>, %arg13: memref<1x128xf32, #tpu.memory_space<vmem>>, %arg14: memref<128x128xf32, #tpu.memory_space<vmem>>, %arg15: memref<1x128xf32, #tpu.memory_space<vmem>>, %arg16: memref<128x128xf32, #tpu.memory_space<vmem>>, %arg17: memref<1x128xf32, #tpu.memory_space<vmem>>, %arg18: memref<128x128xf32, #tpu.memory_space<vmem>>, %arg19: memref<1x128xf32, #tpu.memory_space<vmem>>, %arg20: memref<16x128xf32, #tpu.memory_space<vmem>>, %arg21: memref<64x128xf32, #tpu.memory_space<vmem>>) attributes {dimension_semantics = [#tpu.dimension_semantics<arbitrary>], iteration_bounds = array<i64: 1>, scalar_prefetch = 0 : i64, scratch_operands = 0 : i64, tpu.core_type = #tpu.core_type<tc>, window_params = [{pipeline_mode = #tpu.pipeline_mode<synchronous>, transform_indices = @transform_0, window_bounds = array<i64: 16, 128>}, {pipeline_mode = #tpu.pipeline_mode<synchronous>, transform_indices = @transform_1, window_bounds = array<i64: 64, 128>}, {pipeline_mode = #tpu.pipeline_mode<synchronous>, transform_indices = @transform_2, window_bounds = array<i64: 64, 128>}, {pipeline_mode = #tpu.pipeline_mode<synchronous>, transform_indices = @transform_3, window_bounds = array<i64: 64, 16>}, {pipeline_mode = #tpu.pipeline_mode<synchronous>, transform_indices = @transform_4, window_bounds = array<i64: 16, 64>}, {pipeline_mode = #tpu.pipeline_mode<synchronous>, transform_indices = @transform_5, window_bounds = array<i64: 128, 128>}, {pipeline_mode = #tpu.pipeline_mode<synchronous>, transform_indices = @transform_6, window_bounds = array<i64: 1, 128>}, {pipeline_mode = #tpu.pipeline_mode<synchronous>, transform_indices = @transform_7, window_bounds = array<i64: 128, 128>}, {pipeline_mode = #tpu.pipeline_mode<synchronous>, transform_indices = @transform_8, window_bounds = array<i64: 1, 128>}, {pipeline_mode = #tpu.pipeline_mode<synchronous>, transform_indices = @transform_9, window_bounds = array<i64: 128, 128>}, {pipeline_mode = #tpu.pipeline_mode<synchronous>, transform_indices = @transform_10, window_bounds = array<i64: 1, 128>}, {pipeline_mode = #tpu.pipeline_mode<synchronous>, transform_indices = @transform_11, window_bounds = array<i64: 128, 128>}, {pipeline_mode = #tpu.pipeline_mode<synchronous>, transform_indices = @transform_12, window_bounds = array<i64: 1, 128>}, {pipeline_mode = #tpu.pipeline_mode<synchronous>, transform_indices = @transform_13, window_bounds = array<i64: 128, 128>}, {pipeline_mode = #tpu.pipeline_mode<synchronous>, transform_indices = @transform_14, window_bounds = array<i64: 1, 128>}, {pipeline_mode = #tpu.pipeline_mode<synchronous>, transform_indices = @transform_15, window_bounds = array<i64: 128, 128>}, {pipeline_mode = #tpu.pipeline_mode<synchronous>, transform_indices = @transform_16, window_bounds = array<i64: 1, 128>}, {pipeline_mode = #tpu.pipeline_mode<synchronous>, transform_indices = @transform_17, window_bounds = array<i64: 128, 128>}, {pipeline_mode = #tpu.pipeline_mode<synchronous>, transform_indices = @transform_18, window_bounds = array<i64: 1, 128>}, {pipeline_mode = #tpu.pipeline_mode<synchronous>, transform_indices = @transform_19, window_bounds = array<i64: 16, 128>}, {pipeline_mode = #tpu.pipeline_mode<synchronous>, transform_indices = @transform_20, window_bounds = array<i64: 64, 128>}]} {
    %c0 = arith.constant 0 : index
    %c0_0 = arith.constant 0 : index
    %0 = vector.load %arg1[%c0, %c0_0] : memref<16x128xf32, #tpu.memory_space<vmem>>, vector<16x128xf32>
    %c0_1 = arith.constant 0 : index
    %c0_2 = arith.constant 0 : index
    %1 = vector.load %arg6[%c0_1, %c0_2] : memref<128x128xf32, #tpu.memory_space<vmem>>, vector<128x128xf32>
    %cst = arith.constant dense<0.000000e+00> : vector<16x128xf32>
    %2 = tpu.matmul %0, %1, %cst {dimension_numbers = #tpu.dot_dimension_numbers<[1], [0], [0], [1], [0, 0, 1, 1], [], []>} : vector<16x128xf32>, vector<128x128xf32>, vector<16x128xf32> -> vector<16x128xf32>
    %c0_3 = arith.constant 0 : index
    %c0_4 = arith.constant 0 : index
    %3 = vector.load %arg7[%c0_3, %c0_4] : memref<1x128xf32, #tpu.memory_space<vmem>>, vector<1x128xf32>
    %4 = vector.broadcast %3 : vector<1x128xf32> to vector<16x128xf32>
    %5 = arith.addf %2, %4 : vector<16x128xf32>
    %c0_5 = arith.constant 0 : index
    %c0_6 = arith.constant 0 : index
    %6 = vector.load %arg2[%c0_5, %c0_6] : memref<64x128xf32, #tpu.memory_space<vmem>>, vector<64x128xf32>
    %c0_7 = arith.constant 0 : index
    %c0_8 = arith.constant 0 : index
    %7 = vector.load %arg8[%c0_7, %c0_8] : memref<128x128xf32, #tpu.memory_space<vmem>>, vector<128x128xf32>
    %cst_9 = arith.constant dense<0.000000e+00> : vector<64x128xf32>
    %8 = tpu.matmul %6, %7, %cst_9 {dimension_numbers = #tpu.dot_dimension_numbers<[1], [0], [0], [1], [0, 0, 1, 1], [], []>} : vector<64x128xf32>, vector<128x128xf32>, vector<64x128xf32> -> vector<64x128xf32>
    %c0_10 = arith.constant 0 : index
    %c0_11 = arith.constant 0 : index
    %9 = vector.load %arg9[%c0_10, %c0_11] : memref<1x128xf32, #tpu.memory_space<vmem>>, vector<1x128xf32>
    %10 = vector.broadcast %9 : vector<1x128xf32> to vector<64x128xf32>
    %11 = arith.addf %8, %10 : vector<64x128xf32>
    %cst_12 = arith.constant 5.000000e-01 : f32
    %12 = vector.broadcast %cst_12 : f32 to vector<64x128xf32>
    %13 = arith.mulf %12, %11 : vector<64x128xf32>
    %cst_13 = arith.constant 1.400000e+01 : f32
    %14 = vector.broadcast %cst_13 : f32 to vector<64x128xf32>
    %15 = arith.minimumf %13, %14 : vector<64x128xf32>
    %16 = math.exp %15 : vector<64x128xf32>
    %cst_14 = arith.constant 1.000000e+00 : f32
    %17 = vector.broadcast %cst_14 : f32 to vector<64x128xf32>
    %18 = arith.addf %17, %16 : vector<64x128xf32>
    %19 = math.log %18 : vector<64x128xf32>
    %cst_15 = arith.constant 5.000000e-01 : f32
    %20 = vector.broadcast %cst_15 : f32 to vector<64x128xf32>
    %21 = arith.divf %19, %20 : vector<64x128xf32>
    %cst_16 = arith.constant 1.400000e+01 : f32
    %22 = vector.broadcast %cst_16 : f32 to vector<64x128xf32>
    %23 = arith.cmpf ogt, %13, %22 : vector<64x128xf32>
    %24 = arith.select %23, %11, %21 : vector<64x128xi1>, vector<64x128xf32>
    %c0_17 = arith.constant 0 : index
    %c0_18 = arith.constant 0 : index
    %25 = vector.load %arg10[%c0_17, %c0_18] : memref<128x128xf32, #tpu.memory_space<vmem>>, vector<128x128xf32>
    %cst_19 = arith.constant dense<0.000000e+00> : vector<64x128xf32>
    %26 = tpu.matmul %24, %25, %cst_19 {dimension_numbers = #tpu.dot_dimension_numbers<[1], [0], [0], [1], [0, 0, 1, 1], [], []>} : vector<64x128xf32>, vector<128x128xf32>, vector<64x128xf32> -> vector<64x128xf32>
    %c0_20 = arith.constant 0 : index
    %c0_21 = arith.constant 0 : index
    %27 = vector.load %arg11[%c0_20, %c0_21] : memref<1x128xf32, #tpu.memory_space<vmem>>, vector<1x128xf32>
    %28 = vector.broadcast %27 : vector<1x128xf32> to vector<64x128xf32>
    %29 = arith.addf %26, %28 : vector<64x128xf32>
    %c0_22 = arith.constant 0 : index
    %c0_23 = arith.constant 0 : index
    %30 = vector.load %arg3[%c0_22, %c0_23] : memref<64x128xf32, #tpu.memory_space<vmem>>, vector<64x128xf32>
    %c0_24 = arith.constant 0 : index
    %c0_25 = arith.constant 0 : index
    %31 = vector.load %arg12[%c0_24, %c0_25] : memref<128x128xf32, #tpu.memory_space<vmem>>, vector<128x128xf32>
    %cst_26 = arith.constant dense<0.000000e+00> : vector<64x128xf32>
    %32 = tpu.matmul %30, %31, %cst_26 {dimension_numbers = #tpu.dot_dimension_numbers<[1], [0], [0], [1], [0, 0, 1, 1], [], []>} : vector<64x128xf32>, vector<128x128xf32>, vector<64x128xf32> -> vector<64x128xf32>
    %c0_27 = arith.constant 0 : index
    %c0_28 = arith.constant 0 : index
    %33 = vector.load %arg13[%c0_27, %c0_28] : memref<1x128xf32, #tpu.memory_space<vmem>>, vector<1x128xf32>
    %34 = vector.broadcast %33 : vector<1x128xf32> to vector<64x128xf32>
    %35 = arith.addf %32, %34 : vector<64x128xf32>
    %c0_29 = arith.constant 0 : index
    %c0_30 = arith.constant 0 : index
    %36 = vector.load %arg4[%c0_29, %c0_30] : memref<64x16xbf16, #tpu.memory_space<vmem>>, vector<64x16xbf16>
    %37 = arith.extf %36 : vector<64x16xbf16> to vector<64x16xf32>
    %cst_31 = arith.constant dense<0.000000e+00> : vector<64x128xf32>
    %38 = tpu.matmul %37, %5, %cst_31 {dimension_numbers = #tpu.dot_dimension_numbers<[1], [0], [0], [1], [0, 0, 1, 1], [], []>} : vector<64x16xf32>, vector<16x128xf32>, vector<64x128xf32> -> vector<64x128xf32>
    %39 = arith.mulf %38, %29 : vector<64x128xf32>
    %40 = arith.addf %39, %35 : vector<64x128xf32>
    %c0_32 = arith.constant 0 : index
    %c0_33 = arith.constant 0 : index
    %41 = vector.load %arg5[%c0_32, %c0_33] : memref<16x64xbf16, #tpu.memory_space<vmem>>, vector<16x64xbf16>
    %42 = arith.extf %41 : vector<16x64xbf16> to vector<16x64xf32>
    %cst_34 = arith.constant dense<0.000000e+00> : vector<16x128xf32>
    %43 = tpu.matmul %42, %40, %cst_34 {dimension_numbers = #tpu.dot_dimension_numbers<[1], [0], [0], [1], [0, 0, 1, 1], [], []>} : vector<16x64xf32>, vector<64x128xf32>, vector<16x128xf32> -> vector<16x128xf32>
    %c0_35 = arith.constant 0 : index
    %c0_36 = arith.constant 0 : index
    %44 = vector.load %arg14[%c0_35, %c0_36] : memref<128x128xf32, #tpu.memory_space<vmem>>, vector<128x128xf32>
    %cst_37 = arith.constant dense<0.000000e+00> : vector<64x128xf32>
    %45 = tpu.matmul %35, %44, %cst_37 {dimension_numbers = #tpu.dot_dimension_numbers<[1], [0], [0], [1], [0, 0, 1, 1], [], []>} : vector<64x128xf32>, vector<128x128xf32>, vector<64x128xf32> -> vector<64x128xf32>
    %c0_38 = arith.constant 0 : index
    %c0_39 = arith.constant 0 : index
    %46 = vector.load %arg15[%c0_38, %c0_39] : memref<1x128xf32, #tpu.memory_space<vmem>>, vector<1x128xf32>
    %47 = vector.broadcast %46 : vector<1x128xf32> to vector<64x128xf32>
    %48 = arith.addf %45, %47 : vector<64x128xf32>
    %cst_40 = arith.constant 5.000000e-01 : f32
    %49 = vector.broadcast %cst_40 : f32 to vector<64x128xf32>
    %50 = arith.mulf %49, %48 : vector<64x128xf32>
    %cst_41 = arith.constant 1.400000e+01 : f32
    %51 = vector.broadcast %cst_41 : f32 to vector<64x128xf32>
    %52 = arith.minimumf %50, %51 : vector<64x128xf32>
    %53 = math.exp %52 : vector<64x128xf32>
    %cst_42 = arith.constant 1.000000e+00 : f32
    %54 = vector.broadcast %cst_42 : f32 to vector<64x128xf32>
    %55 = arith.addf %54, %53 : vector<64x128xf32>
    %56 = math.log %55 : vector<64x128xf32>
    %cst_43 = arith.constant 5.000000e-01 : f32
    %57 = vector.broadcast %cst_43 : f32 to vector<64x128xf32>
    %58 = arith.divf %56, %57 : vector<64x128xf32>
    %cst_44 = arith.constant 1.400000e+01 : f32
    %59 = vector.broadcast %cst_44 : f32 to vector<64x128xf32>
    %60 = arith.cmpf ogt, %50, %59 : vector<64x128xf32>
    %61 = arith.select %60, %48, %58 : vector<64x128xi1>, vector<64x128xf32>
    %c0_45 = arith.constant 0 : index
    %c0_46 = arith.constant 0 : index
    %62 = vector.load %arg21[%c0_45, %c0_46] : memref<64x128xf32, #tpu.memory_space<vmem>>, vector<64x128xf32>
    tpu.vector_store %arg21[%c0_45, %c0_46], %61 {strides = array<i32>} : memref<64x128xf32, #tpu.memory_space<vmem>>, vector<64x128xf32>,
    %c0_47 = arith.constant 0 : index
    %c0_48 = arith.constant 0 : index
    %63 = vector.load %arg16[%c0_47, %c0_48] : memref<128x128xf32, #tpu.memory_space<vmem>>, vector<128x128xf32>
    %cst_49 = arith.constant dense<0.000000e+00> : vector<16x128xf32>
    %64 = tpu.matmul %43, %63, %cst_49 {dimension_numbers = #tpu.dot_dimension_numbers<[1], [0], [0], [1], [0, 0, 1, 1], [], []>} : vector<16x128xf32>, vector<128x128xf32>, vector<16x128xf32> -> vector<16x128xf32>
    %c0_50 = arith.constant 0 : index
    %c0_51 = arith.constant 0 : index
    %65 = vector.load %arg17[%c0_50, %c0_51] : memref<1x128xf32, #tpu.memory_space<vmem>>, vector<1x128xf32>
    %66 = vector.broadcast %65 : vector<1x128xf32> to vector<16x128xf32>
    %67 = arith.addf %64, %66 : vector<16x128xf32>
    %cst_52 = arith.constant 5.000000e-01 : f32
    %68 = vector.broadcast %cst_52 : f32 to vector<16x128xf32>
    %69 = arith.mulf %68, %67 : vector<16x128xf32>
    %cst_53 = arith.constant 1.400000e+01 : f32
    %70 = vector.broadcast %cst_53 : f32 to vector<16x128xf32>
    %71 = arith.minimumf %69, %70 : vector<16x128xf32>
    %72 = math.exp %71 : vector<16x128xf32>
    %cst_54 = arith.constant 1.000000e+00 : f32
    %73 = vector.broadcast %cst_54 : f32 to vector<16x128xf32>
    %74 = arith.addf %73, %72 : vector<16x128xf32>
    %75 = math.log %74 : vector<16x128xf32>
    %cst_55 = arith.constant 5.000000e-01 : f32
    %76 = vector.broadcast %cst_55 : f32 to vector<16x128xf32>
    %77 = arith.divf %75, %76 : vector<16x128xf32>
    %cst_56 = arith.constant 1.400000e+01 : f32
    %78 = vector.broadcast %cst_56 : f32 to vector<16x128xf32>
    %79 = arith.cmpf ogt, %69, %78 : vector<16x128xf32>
    %80 = arith.select %79, %67, %77 : vector<16x128xi1>, vector<16x128xf32>
    %c0_57 = arith.constant 0 : index
    %c0_58 = arith.constant 0 : index
    %81 = vector.load %arg18[%c0_57, %c0_58] : memref<128x128xf32, #tpu.memory_space<vmem>>, vector<128x128xf32>
    %cst_59 = arith.constant dense<0.000000e+00> : vector<16x128xf32>
    %82 = tpu.matmul %80, %81, %cst_59 {dimension_numbers = #tpu.dot_dimension_numbers<[1], [0], [0], [1], [0, 0, 1, 1], [], []>} : vector<16x128xf32>, vector<128x128xf32>, vector<16x128xf32> -> vector<16x128xf32>
    %83 = arith.addf %0, %82 : vector<16x128xf32>
    %c0_60 = arith.constant 0 : index
    %c0_61 = arith.constant 0 : index
    %84 = vector.load %arg19[%c0_60, %c0_61] : memref<1x128xf32, #tpu.memory_space<vmem>>, vector<1x128xf32>
    %85 = vector.broadcast %84 : vector<1x128xf32> to vector<16x128xf32>
    %86 = arith.addf %83, %85 : vector<16x128xf32>
    %c0_62 = arith.constant 0 : index
    %c0_63 = arith.constant 0 : index
    %87 = vector.load %arg20[%c0_62, %c0_63] : memref<16x128xf32, #tpu.memory_space<vmem>>, vector<16x128xf32>
    tpu.vector_store %arg20[%c0_62, %c0_63], %86 {strides = array<i32>} : memref<16x128xf32, #tpu.memory_space<vmem>>, vector<16x128xf32>,
    return
  }
  func.func @transform_0(%arg0: i32) -> (i32, i32) {
    %c0_i32 = arith.constant 0 : i32
    %c0_i32_0 = arith.constant 0 : i32
    %c0_i32_1 = arith.constant 0 : i32
    return %c0_i32, %c0_i32_0 : i32, i32
  }
  func.func @transform_1(%arg0: i32) -> (i32, i32) {
    %c0_i32 = arith.constant 0 : i32
    %c0_i32_0 = arith.constant 0 : i32
    %c0_i32_1 = arith.constant 0 : i32
    return %c0_i32, %c0_i32_0 : i32, i32
  }
  func.func @transform_2(%arg0: i32) -> (i32, i32) {
    %c0_i32 = arith.constant 0 : i32
    %c0_i32_0 = arith.constant 0 : i32
    %c0_i32_1 = arith.constant 0 : i32
    return %c0_i32, %c0_i32_0 : i32, i32
  }
  func.func @transform_3(%arg0: i32) -> (i32, i32) {
    %c0_i32 = arith.constant 0 : i32
    %c0_i32_0 = arith.constant 0 : i32
    %c0_i32_1 = arith.constant 0 : i32
    return %c0_i32, %c0_i32_0 : i32, i32
  }
  func.func @transform_4(%arg0: i32) -> (i32, i32) {
    %c0_i32 = arith.constant 0 : i32
    %c0_i32_0 = arith.constant 0 : i32
    %c0_i32_1 = arith.constant 0 : i32
    return %c0_i32, %c0_i32_0 : i32, i32
  }
  func.func @transform_5(%arg0: i32) -> (i32, i32) {
    %c0_i32 = arith.constant 0 : i32
    %c0_i32_0 = arith.constant 0 : i32
    %c0_i32_1 = arith.constant 0 : i32
    return %c0_i32, %c0_i32_0 : i32, i32
  }
  func.func @transform_6(%arg0: i32) -> (i32, i32) {
    %c0_i32 = arith.constant 0 : i32
    %c0_i32_0 = arith.constant 0 : i32
    %c0_i32_1 = arith.constant 0 : i32
    return %c0_i32, %c0_i32_0 : i32, i32
  }
  func.func @transform_7(%arg0: i32) -> (i32, i32) {
    %c0_i32 = arith.constant 0 : i32
    %c0_i32_0 = arith.constant 0 : i32
    %c0_i32_1 = arith.constant 0 : i32
    return %c0_i32, %c0_i32_0 : i32, i32
  }
  func.func @transform_8(%arg0: i32) -> (i32, i32) {
    %c0_i32 = arith.constant 0 : i32
    %c0_i32_0 = arith.constant 0 : i32
    %c0_i32_1 = arith.constant 0 : i32
    return %c0_i32, %c0_i32_0 : i32, i32
  }
  func.func @transform_9(%arg0: i32) -> (i32, i32) {
    %c0_i32 = arith.constant 0 : i32
    %c0_i32_0 = arith.constant 0 : i32
    %c0_i32_1 = arith.constant 0 : i32
    return %c0_i32, %c0_i32_0 : i32, i32
  }
  func.func @transform_10(%arg0: i32) -> (i32, i32) {
    %c0_i32 = arith.constant 0 : i32
    %c0_i32_0 = arith.constant 0 : i32
    %c0_i32_1 = arith.constant 0 : i32
    return %c0_i32, %c0_i32_0 : i32, i32
  }
  func.func @transform_11(%arg0: i32) -> (i32, i32) {
    %c0_i32 = arith.constant 0 : i32
    %c0_i32_0 = arith.constant 0 : i32
    %c0_i32_1 = arith.constant 0 : i32
    return %c0_i32, %c0_i32_0 : i32, i32
  }
  func.func @transform_12(%arg0: i32) -> (i32, i32) {
    %c0_i32 = arith.constant 0 : i32
    %c0_i32_0 = arith.constant 0 : i32
    %c0_i32_1 = arith.constant 0 : i32
    return %c0_i32, %c0_i32_0 : i32, i32
  }
  func.func @transform_13(%arg0: i32) -> (i32, i32) {
    %c0_i32 = arith.constant 0 : i32
    %c0_i32_0 = arith.constant 0 : i32
    %c0_i32_1 = arith.constant 0 : i32
    return %c0_i32, %c0_i32_0 : i32, i32
  }
  func.func @transform_14(%arg0: i32) -> (i32, i32) {
    %c0_i32 = arith.constant 0 : i32
    %c0_i32_0 = arith.constant 0 : i32
    %c0_i32_1 = arith.constant 0 : i32
    return %c0_i32, %c0_i32_0 : i32, i32
  }
  func.func @transform_15(%arg0: i32) -> (i32, i32) {
    %c0_i32 = arith.constant 0 : i32
    %c0_i32_0 = arith.constant 0 : i32
    %c0_i32_1 = arith.constant 0 : i32
    return %c0_i32, %c0_i32_0 : i32, i32
  }
  func.func @transform_16(%arg0: i32) -> (i32, i32) {
    %c0_i32 = arith.constant 0 : i32
    %c0_i32_0 = arith.constant 0 : i32
    %c0_i32_1 = arith.constant 0 : i32
    return %c0_i32, %c0_i32_0 : i32, i32
  }
  func.func @transform_17(%arg0: i32) -> (i32, i32) {
    %c0_i32 = arith.constant 0 : i32
    %c0_i32_0 = arith.constant 0 : i32
    %c0_i32_1 = arith.constant 0 : i32
    return %c0_i32, %c0_i32_0 : i32, i32
  }
  func.func @transform_18(%arg0: i32) -> (i32, i32) {
    %c0_i32 = arith.constant 0 : i32
    %c0_i32_0 = arith.constant 0 : i32
    %c0_i32_1 = arith.constant 0 : i32
    return %c0_i32, %c0_i32_0 : i32, i32
  }
  func.func @transform_19(%arg0: i32) -> (i32, i32) {
    %c0_i32 = arith.constant 0 : i32
    %c0_i32_0 = arith.constant 0 : i32
    %c0_i32_1 = arith.constant 0 : i32
    return %c0_i32, %c0_i32_0 : i32, i32
  }
  func.func @transform_20(%arg0: i32) -> (i32, i32) {
    %c0_i32 = arith.constant 0 : i32
    %c0_i32_0 = arith.constant 0 : i32
    %c0_i32_1 = arith.constant 0 : i32
    return %c0_i32, %c0_i32_0 : i32, i32
  }
}

module attributes {stable_mosaic.version = 11 : i64} {
  func.func @_conv_layer_kernel(%arg0: i32, %arg1: memref<16x128xf32, #tpu.memory_space<vmem>>, %arg2: memref<64x128xf32, #tpu.memory_space<vmem>>, %arg3: memref<64x128xf32, #tpu.memory_space<vmem>>, %arg4: memref<64x16xbf16, #tpu.memory_space<vmem>>, %arg5: memref<16x64xbf16, #tpu.memory_space<vmem>>, %arg6: memref<128x128xf32, #tpu.memory_space<vmem>>, %arg7: memref<1x128xf32, #tpu.memory_space<vmem>>, %arg8: memref<128x128xf32, #tpu.memory_space<vmem>>, %arg9: memref<1x128xf32, #tpu.memory_space<vmem>>, %arg10: memref<128x128xf32, #tpu.memory_space<vmem>>, %arg11: memref<1x128xf32, #tpu.memory_space<vmem>>, %arg12: memref<128x128xf32, #tpu.memory_space<vmem>>, %arg13: memref<1x128xf32, #tpu.memory_space<vmem>>, %arg14: memref<128x128xf32, #tpu.memory_space<vmem>>, %arg15: memref<1x128xf32, #tpu.memory_space<vmem>>, %arg16: memref<128x128xf32, #tpu.memory_space<vmem>>, %arg17: memref<1x128xf32, #tpu.memory_space<vmem>>, %arg18: memref<128x128xf32, #tpu.memory_space<vmem>>, %arg19: memref<1x128xf32, #tpu.memory_space<vmem>>, %arg20: memref<16x128xf32, #tpu.memory_space<vmem>>, %arg21: memref<64x128xf32, #tpu.memory_space<vmem>>) attributes {dimension_semantics = [#tpu.dimension_semantics<arbitrary>], iteration_bounds = array<i64: 1>, scalar_prefetch = 0 : i64, scratch_operands = 0 : i64, tpu.core_type = #tpu.core_type<tc>, window_params = [{pipeline_mode = #tpu.pipeline_mode<synchronous>, transform_indices = @transform_0, window_bounds = array<i64: 16, 128>}, {pipeline_mode = #tpu.pipeline_mode<synchronous>, transform_indices = @transform_1, window_bounds = array<i64: 64, 128>}, {pipeline_mode = #tpu.pipeline_mode<synchronous>, transform_indices = @transform_2, window_bounds = array<i64: 64, 128>}, {pipeline_mode = #tpu.pipeline_mode<synchronous>, transform_indices = @transform_3, window_bounds = array<i64: 64, 16>}, {pipeline_mode = #tpu.pipeline_mode<synchronous>, transform_indices = @transform_4, window_bounds = array<i64: 16, 64>}, {pipeline_mode = #tpu.pipeline_mode<synchronous>, transform_indices = @transform_5, window_bounds = array<i64: 128, 128>}, {pipeline_mode = #tpu.pipeline_mode<synchronous>, transform_indices = @transform_6, window_bounds = array<i64: 1, 128>}, {pipeline_mode = #tpu.pipeline_mode<synchronous>, transform_indices = @transform_7, window_bounds = array<i64: 128, 128>}, {pipeline_mode = #tpu.pipeline_mode<synchronous>, transform_indices = @transform_8, window_bounds = array<i64: 1, 128>}, {pipeline_mode = #tpu.pipeline_mode<synchronous>, transform_indices = @transform_9, window_bounds = array<i64: 128, 128>}, {pipeline_mode = #tpu.pipeline_mode<synchronous>, transform_indices = @transform_10, window_bounds = array<i64: 1, 128>}, {pipeline_mode = #tpu.pipeline_mode<synchronous>, transform_indices = @transform_11, window_bounds = array<i64: 128, 128>}, {pipeline_mode = #tpu.pipeline_mode<synchronous>, transform_indices = @transform_12, window_bounds = array<i64: 1, 128>}, {pipeline_mode = #tpu.pipeline_mode<synchronous>, transform_indices = @transform_13, window_bounds = array<i64: 128, 128>}, {pipeline_mode = #tpu.pipeline_mode<synchronous>, transform_indices = @transform_14, window_bounds = array<i64: 1, 128>}, {pipeline_mode = #tpu.pipeline_mode<synchronous>, transform_indices = @transform_15, window_bounds = array<i64: 128, 128>}, {pipeline_mode = #tpu.pipeline_mode<synchronous>, transform_indices = @transform_16, window_bounds = array<i64: 1, 128>}, {pipeline_mode = #tpu.pipeline_mode<synchronous>, transform_indices = @transform_17, window_bounds = array<i64: 128, 128>}, {pipeline_mode = #tpu.pipeline_mode<synchronous>, transform_indices = @transform_18, window_bounds = array<i64: 1, 128>}, {pipeline_mode = #tpu.pipeline_mode<synchronous>, transform_indices = @transform_19, window_bounds = array<i64: 16, 128>}, {pipeline_mode = #tpu.pipeline_mode<synchronous>, transform_indices = @transform_20, window_bounds = array<i64: 64, 128>}]} {
    %c0 = arith.constant 0 : index
    %c0_0 = arith.constant 0 : index
    %0 = vector.load %arg1[%c0, %c0_0] : memref<16x128xf32, #tpu.memory_space<vmem>>, vector<16x128xf32>
    %c0_1 = arith.constant 0 : index
    %c0_2 = arith.constant 0 : index
    %1 = vector.load %arg6[%c0_1, %c0_2] : memref<128x128xf32, #tpu.memory_space<vmem>>, vector<128x128xf32>
    %cst = arith.constant dense<0.000000e+00> : vector<16x128xf32>
    %2 = tpu.matmul %0, %1, %cst {dimension_numbers = #tpu.dot_dimension_numbers<[1], [0], [0], [1], [0, 0, 1, 1], [], []>} : vector<16x128xf32>, vector<128x128xf32>, vector<16x128xf32> -> vector<16x128xf32>
    %c0_3 = arith.constant 0 : index
    %c0_4 = arith.constant 0 : index
    %3 = vector.load %arg7[%c0_3, %c0_4] : memref<1x128xf32, #tpu.memory_space<vmem>>, vector<1x128xf32>
    %4 = vector.broadcast %3 : vector<1x128xf32> to vector<16x128xf32>
    %5 = arith.addf %2, %4 : vector<16x128xf32>
    %c0_5 = arith.constant 0 : index
    %c0_6 = arith.constant 0 : index
    %6 = vector.load %arg2[%c0_5, %c0_6] : memref<64x128xf32, #tpu.memory_space<vmem>>, vector<64x128xf32>
    %c0_7 = arith.constant 0 : index
    %c0_8 = arith.constant 0 : index
    %7 = vector.load %arg8[%c0_7, %c0_8] : memref<128x128xf32, #tpu.memory_space<vmem>>, vector<128x128xf32>
    %cst_9 = arith.constant dense<0.000000e+00> : vector<64x128xf32>
    %8 = tpu.matmul %6, %7, %cst_9 {dimension_numbers = #tpu.dot_dimension_numbers<[1], [0], [0], [1], [0, 0, 1, 1], [], []>} : vector<64x128xf32>, vector<128x128xf32>, vector<64x128xf32> -> vector<64x128xf32>
    %c0_10 = arith.constant 0 : index
    %c0_11 = arith.constant 0 : index
    %9 = vector.load %arg9[%c0_10, %c0_11] : memref<1x128xf32, #tpu.memory_space<vmem>>, vector<1x128xf32>
    %10 = vector.broadcast %9 : vector<1x128xf32> to vector<64x128xf32>
    %11 = arith.addf %8, %10 : vector<64x128xf32>
    %cst_12 = arith.constant 5.000000e-01 : f32
    %12 = vector.broadcast %cst_12 : f32 to vector<64x128xf32>
    %13 = arith.mulf %12, %11 : vector<64x128xf32>
    %cst_13 = arith.constant 1.400000e+01 : f32
    %14 = vector.broadcast %cst_13 : f32 to vector<64x128xf32>
    %15 = arith.minimumf %13, %14 : vector<64x128xf32>
    %16 = math.exp %15 : vector<64x128xf32>
    %cst_14 = arith.constant 1.000000e+00 : f32
    %17 = vector.broadcast %cst_14 : f32 to vector<64x128xf32>
    %18 = arith.addf %17, %16 : vector<64x128xf32>
    %19 = math.log %18 : vector<64x128xf32>
    %cst_15 = arith.constant 5.000000e-01 : f32
    %20 = vector.broadcast %cst_15 : f32 to vector<64x128xf32>
    %21 = arith.divf %19, %20 : vector<64x128xf32>
    %cst_16 = arith.constant 1.400000e+01 : f32
    %22 = vector.broadcast %cst_16 : f32 to vector<64x128xf32>
    %23 = arith.cmpf ogt, %13, %22 : vector<64x128xf32>
    %24 = arith.select %23, %11, %21 : vector<64x128xi1>, vector<64x128xf32>
    %c0_17 = arith.constant 0 : index
    %c0_18 = arith.constant 0 : index
    %25 = vector.load %arg10[%c0_17, %c0_18] : memref<128x128xf32, #tpu.memory_space<vmem>>, vector<128x128xf32>
    %cst_19 = arith.constant dense<0.000000e+00> : vector<64x128xf32>
    %26 = tpu.matmul %24, %25, %cst_19 {dimension_numbers = #tpu.dot_dimension_numbers<[1], [0], [0], [1], [0, 0, 1, 1], [], []>} : vector<64x128xf32>, vector<128x128xf32>, vector<64x128xf32> -> vector<64x128xf32>
    %c0_20 = arith.constant 0 : index
    %c0_21 = arith.constant 0 : index
    %27 = vector.load %arg11[%c0_20, %c0_21] : memref<1x128xf32, #tpu.memory_space<vmem>>, vector<1x128xf32>
    %28 = vector.broadcast %27 : vector<1x128xf32> to vector<64x128xf32>
    %29 = arith.addf %26, %28 : vector<64x128xf32>
    %c0_22 = arith.constant 0 : index
    %c0_23 = arith.constant 0 : index
    %30 = vector.load %arg3[%c0_22, %c0_23] : memref<64x128xf32, #tpu.memory_space<vmem>>, vector<64x128xf32>
    %c0_24 = arith.constant 0 : index
    %c0_25 = arith.constant 0 : index
    %31 = vector.load %arg12[%c0_24, %c0_25] : memref<128x128xf32, #tpu.memory_space<vmem>>, vector<128x128xf32>
    %cst_26 = arith.constant dense<0.000000e+00> : vector<64x128xf32>
    %32 = tpu.matmul %30, %31, %cst_26 {dimension_numbers = #tpu.dot_dimension_numbers<[1], [0], [0], [1], [0, 0, 1, 1], [], []>} : vector<64x128xf32>, vector<128x128xf32>, vector<64x128xf32> -> vector<64x128xf32>
    %c0_27 = arith.constant 0 : index
    %c0_28 = arith.constant 0 : index
    %33 = vector.load %arg13[%c0_27, %c0_28] : memref<1x128xf32, #tpu.memory_space<vmem>>, vector<1x128xf32>
    %34 = vector.broadcast %33 : vector<1x128xf32> to vector<64x128xf32>
    %35 = arith.addf %32, %34 : vector<64x128xf32>
    %c0_29 = arith.constant 0 : index
    %c0_30 = arith.constant 0 : index
    %36 = vector.load %arg4[%c0_29, %c0_30] : memref<64x16xbf16, #tpu.memory_space<vmem>>, vector<64x16xbf16>
    %37 = arith.extf %36 : vector<64x16xbf16> to vector<64x16xf32>
    %cst_31 = arith.constant dense<0.000000e+00> : vector<64x128xf32>
    %38 = tpu.matmul %37, %5, %cst_31 {dimension_numbers = #tpu.dot_dimension_numbers<[1], [0], [0], [1], [0, 0, 1, 1], [], []>} : vector<64x16xf32>, vector<16x128xf32>, vector<64x128xf32> -> vector<64x128xf32>
    %39 = arith.mulf %38, %29 : vector<64x128xf32>
    %40 = arith.addf %39, %35 : vector<64x128xf32>
    %c0_32 = arith.constant 0 : index
    %c0_33 = arith.constant 0 : index
    %41 = vector.load %arg5[%c0_32, %c0_33] : memref<16x64xbf16, #tpu.memory_space<vmem>>, vector<16x64xbf16>
    %42 = arith.extf %41 : vector<16x64xbf16> to vector<16x64xf32>
    %cst_34 = arith.constant dense<0.000000e+00> : vector<16x128xf32>
    %43 = tpu.matmul %42, %40, %cst_34 {dimension_numbers = #tpu.dot_dimension_numbers<[1], [0], [0], [1], [0, 0, 1, 1], [], []>} : vector<16x64xf32>, vector<64x128xf32>, vector<16x128xf32> -> vector<16x128xf32>
    %c0_35 = arith.constant 0 : index
    %c0_36 = arith.constant 0 : index
    %44 = vector.load %arg14[%c0_35, %c0_36] : memref<128x128xf32, #tpu.memory_space<vmem>>, vector<128x128xf32>
    %cst_37 = arith.constant dense<0.000000e+00> : vector<64x128xf32>
    %45 = tpu.matmul %35, %44, %cst_37 {dimension_numbers = #tpu.dot_dimension_numbers<[1], [0], [0], [1], [0, 0, 1, 1], [], []>} : vector<64x128xf32>, vector<128x128xf32>, vector<64x128xf32> -> vector<64x128xf32>
    %c0_38 = arith.constant 0 : index
    %c0_39 = arith.constant 0 : index
    %46 = vector.load %arg15[%c0_38, %c0_39] : memref<1x128xf32, #tpu.memory_space<vmem>>, vector<1x128xf32>
    %47 = vector.broadcast %46 : vector<1x128xf32> to vector<64x128xf32>
    %48 = arith.addf %45, %47 : vector<64x128xf32>
    %cst_40 = arith.constant 5.000000e-01 : f32
    %49 = vector.broadcast %cst_40 : f32 to vector<64x128xf32>
    %50 = arith.mulf %49, %48 : vector<64x128xf32>
    %cst_41 = arith.constant 1.400000e+01 : f32
    %51 = vector.broadcast %cst_41 : f32 to vector<64x128xf32>
    %52 = arith.minimumf %50, %51 : vector<64x128xf32>
    %53 = math.exp %52 : vector<64x128xf32>
    %cst_42 = arith.constant 1.000000e+00 : f32
    %54 = vector.broadcast %cst_42 : f32 to vector<64x128xf32>
    %55 = arith.addf %54, %53 : vector<64x128xf32>
    %56 = math.log %55 : vector<64x128xf32>
    %cst_43 = arith.constant 5.000000e-01 : f32
    %57 = vector.broadcast %cst_43 : f32 to vector<64x128xf32>
    %58 = arith.divf %56, %57 : vector<64x128xf32>
    %cst_44 = arith.constant 1.400000e+01 : f32
    %59 = vector.broadcast %cst_44 : f32 to vector<64x128xf32>
    %60 = arith.cmpf ogt, %50, %59 : vector<64x128xf32>
    %61 = arith.select %60, %48, %58 : vector<64x128xi1>, vector<64x128xf32>
    %c0_45 = arith.constant 0 : index
    %c0_46 = arith.constant 0 : index
    %62 = vector.load %arg21[%c0_45, %c0_46] : memref<64x128xf32, #tpu.memory_space<vmem>>, vector<64x128xf32>
    tpu.vector_store %arg21[%c0_45, %c0_46], %61 {strides = array<i32>} : memref<64x128xf32, #tpu.memory_space<vmem>>, vector<64x128xf32>,
    %c0_47 = arith.constant 0 : index
    %c0_48 = arith.constant 0 : index
    %63 = vector.load %arg16[%c0_47, %c0_48] : memref<128x128xf32, #tpu.memory_space<vmem>>, vector<128x128xf32>
    %cst_49 = arith.constant dense<0.000000e+00> : vector<16x128xf32>
    %64 = tpu.matmul %43, %63, %cst_49 {dimension_numbers = #tpu.dot_dimension_numbers<[1], [0], [0], [1], [0, 0, 1, 1], [], []>} : vector<16x128xf32>, vector<128x128xf32>, vector<16x128xf32> -> vector<16x128xf32>
    %c0_50 = arith.constant 0 : index
    %c0_51 = arith.constant 0 : index
    %65 = vector.load %arg17[%c0_50, %c0_51] : memref<1x128xf32, #tpu.memory_space<vmem>>, vector<1x128xf32>
    %66 = vector.broadcast %65 : vector<1x128xf32> to vector<16x128xf32>
    %67 = arith.addf %64, %66 : vector<16x128xf32>
    %cst_52 = arith.constant 5.000000e-01 : f32
    %68 = vector.broadcast %cst_52 : f32 to vector<16x128xf32>
    %69 = arith.mulf %68, %67 : vector<16x128xf32>
    %cst_53 = arith.constant 1.400000e+01 : f32
    %70 = vector.broadcast %cst_53 : f32 to vector<16x128xf32>
    %71 = arith.minimumf %69, %70 : vector<16x128xf32>
    %72 = math.exp %71 : vector<16x128xf32>
    %cst_54 = arith.constant 1.000000e+00 : f32
    %73 = vector.broadcast %cst_54 : f32 to vector<16x128xf32>
    %74 = arith.addf %73, %72 : vector<16x128xf32>
    %75 = math.log %74 : vector<16x128xf32>
    %cst_55 = arith.constant 5.000000e-01 : f32
    %76 = vector.broadcast %cst_55 : f32 to vector<16x128xf32>
    %77 = arith.divf %75, %76 : vector<16x128xf32>
    %cst_56 = arith.constant 1.400000e+01 : f32
    %78 = vector.broadcast %cst_56 : f32 to vector<16x128xf32>
    %79 = arith.cmpf ogt, %69, %78 : vector<16x128xf32>
    %80 = arith.select %79, %67, %77 : vector<16x128xi1>, vector<16x128xf32>
    %c0_57 = arith.constant 0 : index
    %c0_58 = arith.constant 0 : index
    %81 = vector.load %arg18[%c0_57, %c0_58] : memref<128x128xf32, #tpu.memory_space<vmem>>, vector<128x128xf32>
    %cst_59 = arith.constant dense<0.000000e+00> : vector<16x128xf32>
    %82 = tpu.matmul %80, %81, %cst_59 {dimension_numbers = #tpu.dot_dimension_numbers<[1], [0], [0], [1], [0, 0, 1, 1], [], []>} : vector<16x128xf32>, vector<128x128xf32>, vector<16x128xf32> -> vector<16x128xf32>
    %83 = arith.addf %0, %82 : vector<16x128xf32>
    %c0_60 = arith.constant 0 : index
    %c0_61 = arith.constant 0 : index
    %84 = vector.load %arg19[%c0_60, %c0_61] : memref<1x128xf32, #tpu.memory_space<vmem>>, vector<1x128xf32>
    %85 = vector.broadcast %84 : vector<1x128xf32> to vector<16x128xf32>
    %86 = arith.addf %83, %85 : vector<16x128xf32>
    %c0_62 = arith.constant 0 : index
    %c0_63 = arith.constant 0 : index
    %87 = vector.load %arg20[%c0_62, %c0_63] : memref<16x128xf32, #tpu.memory_space<vmem>>, vector<16x128xf32>
    tpu.vector_store %arg20[%c0_62, %c0_63], %86 {strides = array<i32>} : memref<16x128xf32, #tpu.memory_space<vmem>>, vector<16x128xf32>,
    return
  }
  func.func @transform_0(%arg0: i32) -> (i32, i32) {
    %c0_i32 = arith.constant 0 : i32
    %c0_i32_0 = arith.constant 0 : i32
    %c0_i32_1 = arith.constant 0 : i32
    return %c0_i32, %c0_i32_0 : i32, i32
  }
  func.func @transform_1(%arg0: i32) -> (i32, i32) {
    %c0_i32 = arith.constant 0 : i32
    %c0_i32_0 = arith.constant 0 : i32
    %c0_i32_1 = arith.constant 0 : i32
    return %c0_i32, %c0_i32_0 : i32, i32
  }
  func.func @transform_2(%arg0: i32) -> (i32, i32) {
    %c0_i32 = arith.constant 0 : i32
    %c0_i32_0 = arith.constant 0 : i32
    %c0_i32_1 = arith.constant 0 : i32
    return %c0_i32, %c0_i32_0 : i32, i32
  }
  func.func @transform_3(%arg0: i32) -> (i32, i32) {
    %c0_i32 = arith.constant 0 : i32
    %c0_i32_0 = arith.constant 0 : i32
    %c0_i32_1 = arith.constant 0 : i32
    return %c0_i32, %c0_i32_0 : i32, i32
  }
  func.func @transform_4(%arg0: i32) -> (i32, i32) {
    %c0_i32 = arith.constant 0 : i32
    %c0_i32_0 = arith.constant 0 : i32
    %c0_i32_1 = arith.constant 0 : i32
    return %c0_i32, %c0_i32_0 : i32, i32
  }
  func.func @transform_5(%arg0: i32) -> (i32, i32) {
    %c0_i32 = arith.constant 0 : i32
    %c0_i32_0 = arith.constant 0 : i32
    %c0_i32_1 = arith.constant 0 : i32
    return %c0_i32, %c0_i32_0 : i32, i32
  }
  func.func @transform_6(%arg0: i32) -> (i32, i32) {
    %c0_i32 = arith.constant 0 : i32
    %c0_i32_0 = arith.constant 0 : i32
    %c0_i32_1 = arith.constant 0 : i32
    return %c0_i32, %c0_i32_0 : i32, i32
  }
  func.func @transform_7(%arg0: i32) -> (i32, i32) {
    %c0_i32 = arith.constant 0 : i32
    %c0_i32_0 = arith.constant 0 : i32
    %c0_i32_1 = arith.constant 0 : i32
    return %c0_i32, %c0_i32_0 : i32, i32
  }
  func.func @transform_8(%arg0: i32) -> (i32, i32) {
    %c0_i32 = arith.constant 0 : i32
    %c0_i32_0 = arith.constant 0 : i32
    %c0_i32_1 = arith.constant 0 : i32
    return %c0_i32, %c0_i32_0 : i32, i32
  }
  func.func @transform_9(%arg0: i32) -> (i32, i32) {
    %c0_i32 = arith.constant 0 : i32
    %c0_i32_0 = arith.constant 0 : i32
    %c0_i32_1 = arith.constant 0 : i32
    return %c0_i32, %c0_i32_0 : i32, i32
  }
  func.func @transform_10(%arg0: i32) -> (i32, i32) {
    %c0_i32 = arith.constant 0 : i32
    %c0_i32_0 = arith.constant 0 : i32
    %c0_i32_1 = arith.constant 0 : i32
    return %c0_i32, %c0_i32_0 : i32, i32
  }
  func.func @transform_11(%arg0: i32) -> (i32, i32) {
    %c0_i32 = arith.constant 0 : i32
    %c0_i32_0 = arith.constant 0 : i32
    %c0_i32_1 = arith.constant 0 : i32
    return %c0_i32, %c0_i32_0 : i32, i32
  }
  func.func @transform_12(%arg0: i32) -> (i32, i32) {
    %c0_i32 = arith.constant 0 : i32
    %c0_i32_0 = arith.constant 0 : i32
    %c0_i32_1 = arith.constant 0 : i32
    return %c0_i32, %c0_i32_0 : i32, i32
  }
  func.func @transform_13(%arg0: i32) -> (i32, i32) {
    %c0_i32 = arith.constant 0 : i32
    %c0_i32_0 = arith.constant 0 : i32
    %c0_i32_1 = arith.constant 0 : i32
    return %c0_i32, %c0_i32_0 : i32, i32
  }
  func.func @transform_14(%arg0: i32) -> (i32, i32) {
    %c0_i32 = arith.constant 0 : i32
    %c0_i32_0 = arith.constant 0 : i32
    %c0_i32_1 = arith.constant 0 : i32
    return %c0_i32, %c0_i32_0 : i32, i32
  }
  func.func @transform_15(%arg0: i32) -> (i32, i32) {
    %c0_i32 = arith.constant 0 : i32
    %c0_i32_0 = arith.constant 0 : i32
    %c0_i32_1 = arith.constant 0 : i32
    return %c0_i32, %c0_i32_0 : i32, i32
  }
  func.func @transform_16(%arg0: i32) -> (i32, i32) {
    %c0_i32 = arith.constant 0 : i32
    %c0_i32_0 = arith.constant 0 : i32
    %c0_i32_1 = arith.constant 0 : i32
    return %c0_i32, %c0_i32_0 : i32, i32
  }
  func.func @transform_17(%arg0: i32) -> (i32, i32) {
    %c0_i32 = arith.constant 0 : i32
    %c0_i32_0 = arith.constant 0 : i32
    %c0_i32_1 = arith.constant 0 : i32
    return %c0_i32, %c0_i32_0 : i32, i32
  }
  func.func @transform_18(%arg0: i32) -> (i32, i32) {
    %c0_i32 = arith.constant 0 : i32
    %c0_i32_0 = arith.constant 0 : i32
    %c0_i32_1 = arith.constant 0 : i32
    return %c0_i32, %c0_i32_0 : i32, i32
  }
  func.func @transform_19(%arg0: i32) -> (i32, i32) {
    %c0_i32 = arith.constant 0 : i32
    %c0_i32_0 = arith.constant 0 : i32
    %c0_i32_1 = arith.constant 0 : i32
    return %c0_i32, %c0_i32_0 : i32, i32
  }
  func.func @transform_20(%arg0: i32) -> (i32, i32) {
    %c0_i32 = arith.constant 0 : i32
    %c0_i32_0 = arith.constant 0 : i32
    %c0_i32_1 = arith.constant 0 : i32
    return %c0_i32, %c0_i32_0 : i32, i32
  }
}

module attributes {stable_mosaic.version = 11 : i64} {
  func.func @_readout_kernel(%arg0: i32, %arg1: memref<16x128xf32, #tpu.memory_space<vmem>>, %arg2: memref<16x128xf32, #tpu.memory_space<vmem>>, %arg3: memref<16x128xf32, #tpu.memory_space<vmem>>, %arg4: memref<16x128xf32, #tpu.memory_space<vmem>>, %arg5: memref<512x64xf32, #tpu.memory_space<vmem>>, %arg6: memref<1x64xf32, #tpu.memory_space<vmem>>, %arg7: memref<64x1xf32, #tpu.memory_space<vmem>>, %arg8: memref<1x1xf32, #tpu.memory_space<vmem>>, %arg9: memref<2x16xf32, #tpu.memory_space<vmem>>, %arg10: memref<2x1xf32, #tpu.memory_space<vmem>>) attributes {dimension_semantics = [#tpu.dimension_semantics<arbitrary>], iteration_bounds = array<i64: 1>, scalar_prefetch = 0 : i64, scratch_operands = 0 : i64, tpu.core_type = #tpu.core_type<tc>, window_params = [{pipeline_mode = #tpu.pipeline_mode<synchronous>, transform_indices = @transform_0, window_bounds = array<i64: 16, 128>}, {pipeline_mode = #tpu.pipeline_mode<synchronous>, transform_indices = @transform_1, window_bounds = array<i64: 16, 128>}, {pipeline_mode = #tpu.pipeline_mode<synchronous>, transform_indices = @transform_2, window_bounds = array<i64: 16, 128>}, {pipeline_mode = #tpu.pipeline_mode<synchronous>, transform_indices = @transform_3, window_bounds = array<i64: 16, 128>}, {pipeline_mode = #tpu.pipeline_mode<synchronous>, transform_indices = @transform_4, window_bounds = array<i64: 512, 64>}, {pipeline_mode = #tpu.pipeline_mode<synchronous>, transform_indices = @transform_5, window_bounds = array<i64: 1, 64>}, {pipeline_mode = #tpu.pipeline_mode<synchronous>, transform_indices = @transform_6, window_bounds = array<i64: 64, 1>}, {pipeline_mode = #tpu.pipeline_mode<synchronous>, transform_indices = @transform_7, window_bounds = array<i64: 1, 1>}, {pipeline_mode = #tpu.pipeline_mode<synchronous>, transform_indices = @transform_8, window_bounds = array<i64: 2, 16>}, {pipeline_mode = #tpu.pipeline_mode<synchronous>, transform_indices = @transform_9, window_bounds = array<i64: 2, 1>}]} {
    %c0 = arith.constant 0 : index
    %c0_0 = arith.constant 0 : index
    %0 = vector.load %arg5[%c0, %c0_0] : memref<512x64xf32, #tpu.memory_space<vmem>>, vector<512x64xf32>
    %c0_1 = arith.constant 0 : index
    %c0_2 = arith.constant 0 : index
    %1 = vector.load %arg1[%c0_1, %c0_2] : memref<16x128xf32, #tpu.memory_space<vmem>>, vector<16x128xf32>
    %2 = vector.extract_strided_slice %0 {offsets = [0, 0], sizes = [128, 64], strides = [1, 1]} : vector<512x64xf32> to vector<128x64xf32>
    %cst = arith.constant dense<0.000000e+00> : vector<16x64xf32>
    %3 = tpu.matmul %1, %2, %cst {dimension_numbers = #tpu.dot_dimension_numbers<[1], [0], [0], [1], [0, 0, 1, 1], [], []>} : vector<16x128xf32>, vector<128x64xf32>, vector<16x64xf32> -> vector<16x64xf32>
    %c0_3 = arith.constant 0 : index
    %c0_4 = arith.constant 0 : index
    %4 = vector.load %arg2[%c0_3, %c0_4] : memref<16x128xf32, #tpu.memory_space<vmem>>, vector<16x128xf32>
    %5 = vector.extract_strided_slice %0 {offsets = [128, 0], sizes = [128, 64], strides = [1, 1]} : vector<512x64xf32> to vector<128x64xf32>
    %cst_5 = arith.constant dense<0.000000e+00> : vector<16x64xf32>
    %6 = tpu.matmul %4, %5, %cst_5 {dimension_numbers = #tpu.dot_dimension_numbers<[1], [0], [0], [1], [0, 0, 1, 1], [], []>} : vector<16x128xf32>, vector<128x64xf32>, vector<16x64xf32> -> vector<16x64xf32>
    %7 = arith.addf %3, %6 : vector<16x64xf32>
    %c0_6 = arith.constant 0 : index
    %c0_7 = arith.constant 0 : index
    %8 = vector.load %arg3[%c0_6, %c0_7] : memref<16x128xf32, #tpu.memory_space<vmem>>, vector<16x128xf32>
    %9 = vector.extract_strided_slice %0 {offsets = [256, 0], sizes = [128, 64], strides = [1, 1]} : vector<512x64xf32> to vector<128x64xf32>
    %cst_8 = arith.constant dense<0.000000e+00> : vector<16x64xf32>
    %10 = tpu.matmul %8, %9, %cst_8 {dimension_numbers = #tpu.dot_dimension_numbers<[1], [0], [0], [1], [0, 0, 1, 1], [], []>} : vector<16x128xf32>, vector<128x64xf32>, vector<16x64xf32> -> vector<16x64xf32>
    %11 = arith.addf %7, %10 : vector<16x64xf32>
    %c0_9 = arith.constant 0 : index
    %c0_10 = arith.constant 0 : index
    %12 = vector.load %arg4[%c0_9, %c0_10] : memref<16x128xf32, #tpu.memory_space<vmem>>, vector<16x128xf32>
    %13 = vector.extract_strided_slice %0 {offsets = [384, 0], sizes = [128, 64], strides = [1, 1]} : vector<512x64xf32> to vector<128x64xf32>
    %cst_11 = arith.constant dense<0.000000e+00> : vector<16x64xf32>
    %14 = tpu.matmul %12, %13, %cst_11 {dimension_numbers = #tpu.dot_dimension_numbers<[1], [0], [0], [1], [0, 0, 1, 1], [], []>} : vector<16x128xf32>, vector<128x64xf32>, vector<16x64xf32> -> vector<16x64xf32>
    %15 = arith.addf %11, %14 : vector<16x64xf32>
    %c0_12 = arith.constant 0 : index
    %c0_13 = arith.constant 0 : index
    %16 = vector.load %arg6[%c0_12, %c0_13] : memref<1x64xf32, #tpu.memory_space<vmem>>, vector<1x64xf32>
    %17 = vector.broadcast %16 : vector<1x64xf32> to vector<16x64xf32>
    %18 = arith.addf %15, %17 : vector<16x64xf32>
    %cst_14 = arith.constant 1.000000e+00 : f32
    %19 = vector.broadcast %cst_14 : f32 to vector<16x64xf32>
    %20 = arith.mulf %19, %18 : vector<16x64xf32>
    %cst_15 = arith.constant 2.000000e+01 : f32
    %21 = vector.broadcast %cst_15 : f32 to vector<16x64xf32>
    %22 = arith.minimumf %20, %21 : vector<16x64xf32>
    %23 = math.exp %22 : vector<16x64xf32>
    %cst_16 = arith.constant 1.000000e+00 : f32
    %24 = vector.broadcast %cst_16 : f32 to vector<16x64xf32>
    %25 = arith.addf %24, %23 : vector<16x64xf32>
    %26 = math.log %25 : vector<16x64xf32>
    %cst_17 = arith.constant 1.000000e+00 : f32
    %27 = vector.broadcast %cst_17 : f32 to vector<16x64xf32>
    %28 = arith.divf %26, %27 : vector<16x64xf32>
    %cst_18 = arith.constant 2.000000e+01 : f32
    %29 = vector.broadcast %cst_18 : f32 to vector<16x64xf32>
    %30 = arith.cmpf ogt, %20, %29 : vector<16x64xf32>
    %31 = arith.select %30, %18, %28 : vector<16x64xi1>, vector<16x64xf32>
    %c0_19 = arith.constant 0 : index
    %c0_20 = arith.constant 0 : index
    %32 = vector.load %arg7[%c0_19, %c0_20] : memref<64x1xf32, #tpu.memory_space<vmem>>, vector<64x1xf32>
    %cst_21 = arith.constant dense<0.000000e+00> : vector<16x1xf32>
    %33 = tpu.matmul %31, %32, %cst_21 {dimension_numbers = #tpu.dot_dimension_numbers<[1], [0], [0], [1], [0, 0, 1, 1], [], []>} : vector<16x64xf32>, vector<64x1xf32>, vector<16x1xf32> -> vector<16x1xf32>
    %c0_22 = arith.constant 0 : index
    %c0_23 = arith.constant 0 : index
    %34 = vector.load %arg8[%c0_22, %c0_23] : memref<1x1xf32, #tpu.memory_space<vmem>>, vector<1x1xf32>
    %35 = vector.broadcast %34 : vector<1x1xf32> to vector<16x1xf32>
    %36 = arith.addf %33, %35 : vector<16x1xf32>
    %c0_24 = arith.constant 0 : index
    %c0_25 = arith.constant 0 : index
    %37 = vector.load %arg9[%c0_24, %c0_25] : memref<2x16xf32, #tpu.memory_space<vmem>>, vector<2x16xf32>
    %cst_26 = arith.constant dense<0.000000e+00> : vector<2x1xf32>
    %38 = tpu.matmul %37, %36, %cst_26 {dimension_numbers = #tpu.dot_dimension_numbers<[1], [0], [0], [1], [0, 0, 1, 1], [], []>} : vector<2x16xf32>, vector<16x1xf32>, vector<2x1xf32> -> vector<2x1xf32>
    %c0_27 = arith.constant 0 : index
    %c0_28 = arith.constant 0 : index
    %39 = vector.load %arg10[%c0_27, %c0_28] : memref<2x1xf32, #tpu.memory_space<vmem>>, vector<2x1xf32>
    tpu.vector_store %arg10[%c0_27, %c0_28], %38 {strides = array<i32>} : memref<2x1xf32, #tpu.memory_space<vmem>>, vector<2x1xf32>,
    return
  }
  func.func @transform_0(%arg0: i32) -> (i32, i32) {
    %c0_i32 = arith.constant 0 : i32
    %c0_i32_0 = arith.constant 0 : i32
    %c0_i32_1 = arith.constant 0 : i32
    return %c0_i32, %c0_i32_0 : i32, i32
  }
  func.func @transform_1(%arg0: i32) -> (i32, i32) {
    %c0_i32 = arith.constant 0 : i32
    %c0_i32_0 = arith.constant 0 : i32
    %c0_i32_1 = arith.constant 0 : i32
    return %c0_i32, %c0_i32_0 : i32, i32
  }
  func.func @transform_2(%arg0: i32) -> (i32, i32) {
    %c0_i32 = arith.constant 0 : i32
    %c0_i32_0 = arith.constant 0 : i32
    %c0_i32_1 = arith.constant 0 : i32
    return %c0_i32, %c0_i32_0 : i32, i32
  }
  func.func @transform_3(%arg0: i32) -> (i32, i32) {
    %c0_i32 = arith.constant 0 : i32
    %c0_i32_0 = arith.constant 0 : i32
    %c0_i32_1 = arith.constant 0 : i32
    return %c0_i32, %c0_i32_0 : i32, i32
  }
  func.func @transform_4(%arg0: i32) -> (i32, i32) {
    %c0_i32 = arith.constant 0 : i32
    %c0_i32_0 = arith.constant 0 : i32
    %c0_i32_1 = arith.constant 0 : i32
    return %c0_i32, %c0_i32_0 : i32, i32
  }
  func.func @transform_5(%arg0: i32) -> (i32, i32) {
    %c0_i32 = arith.constant 0 : i32
    %c0_i32_0 = arith.constant 0 : i32
    %c0_i32_1 = arith.constant 0 : i32
    return %c0_i32, %c0_i32_0 : i32, i32
  }
  func.func @transform_6(%arg0: i32) -> (i32, i32) {
    %c0_i32 = arith.constant 0 : i32
    %c0_i32_0 = arith.constant 0 : i32
    %c0_i32_1 = arith.constant 0 : i32
    return %c0_i32, %c0_i32_0 : i32, i32
  }
  func.func @transform_7(%arg0: i32) -> (i32, i32) {
    %c0_i32 = arith.constant 0 : i32
    %c0_i32_0 = arith.constant 0 : i32
    %c0_i32_1 = arith.constant 0 : i32
    return %c0_i32, %c0_i32_0 : i32, i32
  }
  func.func @transform_8(%arg0: i32) -> (i32, i32) {
    %c0_i32 = arith.constant 0 : i32
    %c0_i32_0 = arith.constant 0 : i32
    %c0_i32_1 = arith.constant 0 : i32
    return %c0_i32, %c0_i32_0 : i32, i32
  }
  func.func @transform_9(%arg0: i32) -> (i32, i32) {
    %c0_i32 = arith.constant 0 : i32
    %c0_i32_0 = arith.constant 0 : i32
    %c0_i32_1 = arith.constant 0 : i32
    return %c0_i32, %c0_i32_0 : i32, i32
  }
}

</mosaic_0001>

<llo_original>
// kernel: mgcn_forward.7
$region0: #{mgcn_forward.7}
  #allocation0 [shape = 'u32[]', space=smem, size = 0x4, offset = 0x4, fixed_abs, tag = 'smem constant byte address 0x4 - core index']
  #allocation1 [shape = 'u32[144,128]{1,0:T(1,128)}', space=vmem, size = 0x12000, scoped, tag = 'internal scratch']
  #allocation2 [shape = 'f32[1,1]{1,0:T(1,128)S(1)}', space=vmem, size = 0x200, scoped, tag = 'scoped memory for mgcn_forward.7']
  %s0 = inlined_call_operand.vmem [shape: f32[16,128], index: 0, kind: input, shape index: {}]
  %s1 = inlined_call_operand.vmem [shape: f32[16,128], index: 1, kind: input, shape index: {}]
  %s2 = inlined_call_operand.vmem [shape: f32[16,128], index: 2, kind: input, shape index: {}]
  %s3 = inlined_call_operand.vmem [shape: f32[16,128], index: 3, kind: input, shape index: {}]
  %s4 = inlined_call_operand.vmem [shape: f32[512,64], index: 4, kind: input, shape index: {}]
  %s5 = inlined_call_operand.vmem [shape: f32[1,64], index: 5, kind: input, shape index: {}]
  %s6 = inlined_call_operand.vmem [shape: f32[64,1], index: 6, kind: input, shape index: {}]
  %s7 = inlined_call_operand.<no memory space> [shape: f32[1,1], index: 7, kind: input, shape index: {}]
  %s8 = inlined_call_operand.vmem [shape: f32[2,16], index: 8, kind: input, shape index: {}]
  %s9 = inlined_call_operand.vmem [shape: f32[2,1], index: 9, kind: output, shape index: {}]
  %s10 = sld [smem:[#allocation0]]
  $region46: #{mgcn_forward.7} parent=0
    _
  %s12 = ssub.s32 1, %s10
  %s13 = scalar_select 0, %s12, %s10
  %v14 = vstv %s7
  %15 = vst [vmem:[#allocation2] sm:$0x1] %v14
  // Predicated region
  $region2: #{mgcn_forward.7} parent=0 // pred_check
    _
  $region3: #{mgcn_forward.7} parent=0 // pred_check_branch
    %17 = sbr.rel (0) target = $region5
  $region4: #{mgcn_forward.7} parent=0 // pred_region
    _
  $region5: #{mgcn_forward.7} parent=0 // pred_fallthru
    _
  // Predicated region
  $region6: #{mgcn_forward.7} parent=0 // pred_check
    _
  $region7: #{mgcn_forward.7} parent=0 // pred_check_branch
    %19 = sbr.rel (0) target = $region9
  $region8: #{mgcn_forward.7} parent=0 // pred_region
    _
  $region9: #{mgcn_forward.7} parent=0 // pred_fallthru
    _
  // Predicated region
  $region10: #{mgcn_forward.7} parent=0 // pred_check
    _
  $region11: #{mgcn_forward.7} parent=0 // pred_check_branch
    %21 = sbr.rel (0) target = $region13
  $region12: #{mgcn_forward.7} parent=0 // pred_region
    _
  $region13: #{mgcn_forward.7} parent=0 // pred_fallthru
    _
  // Predicated region
  $region14: #{mgcn_forward.7} parent=0 // pred_check
    _
  $region15: #{mgcn_forward.7} parent=0 // pred_check_branch
    %23 = sbr.rel (0) target = $region17
  $region16: #{mgcn_forward.7} parent=0 // pred_region
    _
  $region17: #{mgcn_forward.7} parent=0 // pred_fallthru
    _
  // Predicated region
  $region18: #{mgcn_forward.7} parent=0 // pred_check
    _
  $region19: #{mgcn_forward.7} parent=0 // pred_check_branch
    %25 = sbr.rel (0) target = $region21
  $region20: #{mgcn_forward.7} parent=0 // pred_region
    _
  $region21: #{mgcn_forward.7} parent=0 // pred_fallthru
    _
  // Predicated region
  $region22: #{mgcn_forward.7} parent=0 // pred_check
    _
  $region23: #{mgcn_forward.7} parent=0 // pred_check_branch
    %27 = sbr.rel (0) target = $region25
  $region24: #{mgcn_forward.7} parent=0 // pred_region
    _
  $region25: #{mgcn_forward.7} parent=0 // pred_fallthru
    _
  // Predicated region
  $region26: #{mgcn_forward.7} parent=0 // pred_check
    _
  $region27: #{mgcn_forward.7} parent=0 // pred_check_branch
    %29 = sbr.rel (0) target = $region29
  $region28: #{mgcn_forward.7} parent=0 // pred_region
    _
  $region29: #{mgcn_forward.7} parent=0 // pred_fallthru
    _
  // Predicated region
  $region30: #{mgcn_forward.7} parent=0 // pred_check
    _
  $region31: #{mgcn_forward.7} parent=0 // pred_check_branch
    %31 = sbr.rel (0) target = $region33
  $region32: #{mgcn_forward.7} parent=0 // pred_region
    _
  $region33: #{mgcn_forward.7} parent=0 // pred_fallthru
    _
  // Predicated region
  $region34: #{mgcn_forward.7} parent=0 // pred_check
    _
  $region35: #{mgcn_forward.7} parent=0 // pred_check_branch
    %33 = sbr.rel (0) target = $region37
  $region36: #{mgcn_forward.7} parent=0 // pred_region
    _
  $region37: #{mgcn_forward.7} parent=0 // pred_fallthru
    _
  %v34 = vld [vmem:[%s4] sm:$0xff]
  %v35 = vld [vmem:[%s4 + $0x8] sm:$0xff]
  %v36 = vld [vmem:[%s4 + $0x10] sm:$0xff]
  %v37 = vld [vmem:[%s4 + $0x18] sm:$0xff]
  %v38 = vld [vmem:[%s4 + $0x20] sm:$0xff]
  %v39 = vld [vmem:[%s4 + $0x28] sm:$0xff]
  %v40 = vld [vmem:[%s4 + $0x30] sm:$0xff]
  %v41 = vld [vmem:[%s4 + $0x38] sm:$0xff]
  %v42 = vld [vmem:[%s4 + $0x40] sm:$0xff]
  %v43 = vld [vmem:[%s4 + $0x48] sm:$0xff]
  %v44 = vld [vmem:[%s4 + $0x50] sm:$0xff]
  %v45 = vld [vmem:[%s4 + $0x58] sm:$0xff]
  %v46 = vld [vmem:[%s4 + $0x60] sm:$0xff]
  %v47 = vld [vmem:[%s4 + $0x68] sm:$0xff]
  %v48 = vld [vmem:[%s4 + $0x70] sm:$0xff]
  %v49 = vld [vmem:[%s4 + $0x78] sm:$0xff]
  %v50 = vld [vmem:[%s4 + $0x80] sm:$0xff]
  %v51 = vld [vmem:[%s4 + $0x88] sm:$0xff]
  %v52 = vld [vmem:[%s4 + $0x90] sm:$0xff]
  %v53 = vld [vmem:[%s4 + $0x98] sm:$0xff]
  %v54 = vld [vmem:[%s4 + $0xa0] sm:$0xff]
  %v55 = vld [vmem:[%s4 + $0xa8] sm:$0xff]
  %v56 = vld [vmem:[%s4 + $0xb0] sm:$0xff]
  %v57 = vld [vmem:[%s4 + $0xb8] sm:$0xff]
  %v58 = vld [vmem:[%s4 + $0xc0] sm:$0xff]
  %v59 = vld [vmem:[%s4 + $0xc8] sm:$0xff]
  %v60 = vld [vmem:[%s4 + $0xd0] sm:$0xff]
  %v61 = vld [vmem:[%s4 + $0xd8] sm:$0xff]
  %v62 = vld [vmem:[%s4 + $0xe0] sm:$0xff]
  %v63 = vld [vmem:[%s4 + $0xe8] sm:$0xff]
  %v64 = vld [vmem:[%s4 + $0xf0] sm:$0xff]
  %v65 = vld [vmem:[%s4 + $0xf8] sm:$0xff]
  %v66 = vld [vmem:[%s4 + $0x100] sm:$0xff]
  %v67 = vld [vmem:[%s4 + $0x108] sm:$0xff]
  %v68 = vld [vmem:[%s4 + $0x110] sm:$0xff]
  %v69 = vld [vmem:[%s4 + $0x118] sm:$0xff]
  %v70 = vld [vmem:[%s4 + $0x120] sm:$0xff]
  %v71 = vld [vmem:[%s4 + $0x128] sm:$0xff]
  %v72 = vld [vmem:[%s4 + $0x130] sm:$0xff]
  %v73 = vld [vmem:[%s4 + $0x138] sm:$0xff]
  %v74 = vld [vmem:[%s4 + $0x140] sm:$0xff]
  %v75 = vld [vmem:[%s4 + $0x148] sm:$0xff]
  %v76 = vld [vmem:[%s4 + $0x150] sm:$0xff]
  %v77 = vld [vmem:[%s4 + $0x158] sm:$0xff]
  %v78 = vld [vmem:[%s4 + $0x160] sm:$0xff]
  %v79 = vld [vmem:[%s4 + $0x168] sm:$0xff]
  %v80 = vld [vmem:[%s4 + $0x170] sm:$0xff]
  %v81 = vld [vmem:[%s4 + $0x178] sm:$0xff]
  %v82 = vld [vmem:[%s4 + $0x180] sm:$0xff]
  %v83 = vld [vmem:[%s4 + $0x188] sm:$0xff]
  %v84 = vld [vmem:[%s4 + $0x190] sm:$0xff]
  %v85 = vld [vmem:[%s4 + $0x198] sm:$0xff]
  %v86 = vld [vmem:[%s4 + $0x1a0] sm:$0xff]
  %v87 = vld [vmem:[%s4 + $0x1a8] sm:$0xff]
  %v88 = vld [vmem:[%s4 + $0x1b0] sm:$0xff]
  %v89 = vld [vmem:[%s4 + $0x1b8] sm:$0xff]
  %v90 = vld [vmem:[%s4 + $0x1c0] sm:$0xff]
  %v91 = vld [vmem:[%s4 + $0x1c8] sm:$0xff]
  %v92 = vld [vmem:[%s4 + $0x1d0] sm:$0xff]
  %v93 = vld [vmem:[%s4 + $0x1d8] sm:$0xff]
  %v94 = vld [vmem:[%s4 + $0x1e0] sm:$0xff]
  %v95 = vld [vmem:[%s4 + $0x1e8] sm:$0xff]
  %v96 = vld [vmem:[%s4 + $0x1f0] sm:$0xff]
  %v97 = vld [vmem:[%s4 + $0x1f8] sm:$0xff]
  %v98 = vld [vmem:[%s0] sm:$0xff]
  %v99 = vld [vmem:[%s0 + $0x8] sm:$0xff]
  %v100 = vld [vmem:[%s1] sm:$0xff]
  %v101 = vld [vmem:[%s1 + $0x8] sm:$0xff]
  %102 = vmatprep.subr.mxu0 0.0
  %103 = vmatpush1.msra.mxu0 %v50
  %104 = vmatprep.subr.mxu0 0.0
  %105 = vmatpush1.msra.mxu0 %v51
  %106 = vmatprep.subr.mxu0 0.0
  %107 = vmatpush1.msra.mxu0 %v52
  %108 = vmatprep.subr.mxu0 0.0
  %109 = vmatpush1.msra.mxu0 %v53
  %110 = vmatprep.subr.mxu0 0.0
  %111 = vmatpush1.msra.mxu0 %v54
  %112 = vmatprep.subr.mxu0 0.0
  %113 = vmatpush1.msra.mxu0 %v55
  %114 = vmatprep.subr.mxu0 0.0
  %115 = vmatpush1.msra.mxu0 %v56
  %116 = vmatprep.subr.mxu0 0.0
  %117 = vmatpush1.msra.mxu0 %v57
  %118 = vmatprep.subr.mxu0 0.0
  %119 = vmatpush1.msra.mxu0 %v58
  %120 = vmatprep.subr.mxu0 0.0
  %121 = vmatpush1.msra.mxu0 %v59
  %122 = vmatprep.subr.mxu0 0.0
  %123 = vmatpush1.msra.mxu0 %v60
  %124 = vmatprep.subr.mxu0 0.0
  %125 = vmatpush1.msra.mxu0 %v61
  %126 = vmatprep.subr.mxu0 0.0
  %127 = vmatpush1.msra.mxu0 %v62
  %128 = vmatprep.subr.mxu0 0.0
  %129 = vmatpush1.msra.mxu0 %v63
  %130 = vmatprep.subr.mxu0 0.0
  %131 = vmatpush1.msra.mxu0 %v64
  %132 = vmatprep.subr.mxu0 0.0
  %133 = vmatpush1.msra.mxu0 %v65
  %134 = vmatprep.subr.mxu0 0.0
  %135 = vmatpush1.msra.mxu0 0.0
  %136 = vmatprep.subr.mxu0 0.0
  %137 = vmatpush1.msra.mxu0 0.0
  %138 = vmatprep.subr.mxu0 0.0
  %139 = vmatpush1.msra.mxu0 0.0
  %140 = vmatprep.subr.mxu0 0.0
  %141 = vmatpush1.msra.mxu0 0.0
  %142 = vmatprep.subr.mxu0 0.0
  %143 = vmatpush1.msra.mxu0 0.0
  %144 = vmatprep.subr.mxu0 0.0
  %145 = vmatpush1.msra.mxu0 0.0
  %146 = vmatprep.subr.mxu0 0.0
  %147 = vmatpush1.msra.mxu0 0.0
  %148 = vmatprep.subr.mxu0 0.0
  %149 = vmatpush1.msra.mxu0 0.0
  %150 = vmatprep.subr.mxu0 0.0
  %151 = vmatpush1.msra.mxu0 0.0
  %152 = vmatprep.subr.mxu0 0.0
  %153 = vmatpush1.msra.mxu0 0.0
  %154 = vmatprep.subr.mxu0 0.0
  %155 = vmatpush1.msra.mxu0 0.0
  %156 = vmatprep.subr.mxu0 0.0
  %157 = vmatpush1.msra.mxu0 0.0
  %158 = vmatprep.subr.mxu0 0.0
  %159 = vmatpush1.msra.mxu0 0.0
  %160 = vmatprep.subr.mxu0 0.0
  %161 = vmatpush1.msra.mxu0 0.0
  %162 = vmatprep.subr.mxu0 0.0
  %163 = vmatpush1.msra.mxu0 0.0
  %164 = vmatprep.subr.mxu0 0.0
  %165 = vmatpush1.msra.mxu0 0.0
  %166 = vmatprep.mubr.f32.mxu0 0.0
  %167 = vmatmul.mubr.f32.gmra.mrb[0].mxu0 %v100
  %v168 = vpop.f32.mrb[0].mxu0
  %v169 = vadd.f32 0.0, %v168
  %v170 = vpop.f32.mrb[0].mxu0
  %171 = vmatprep.mubr.f32.mxu0 0.0
  %172 = vmatmul.mubr.f32.gmra.mrb[0].mxu0 %v101
  %v173 = vpop.f32.mrb[0].mxu0
  %v174 = vadd.f32 0.0, %v173
  %v175 = vpop.f32.mrb[0].mxu0
  %176 = vdwg.mxu0
  %177 = vmatprep.subr.mxu0 0.0
  %178 = vmatpush1.msra.mxu0 %v34
  %179 = vmatprep.subr.mxu0 0.0
  %180 = vmatpush1.msra.mxu0 %v35
  %181 = vmatprep.subr.mxu0 0.0
  %182 = vmatpush1.msra.mxu0 %v36
  %183 = vmatprep.subr.mxu0 0.0
  %184 = vmatpush1.msra.mxu0 %v37
  %185 = vmatprep.subr.mxu0 0.0
  %186 = vmatpush1.msra.mxu0 %v38
  %187 = vmatprep.subr.mxu0 0.0
  %188 = vmatpush1.msra.mxu0 %v39
  %189 = vmatprep.subr.mxu0 0.0
  %190 = vmatpush1.msra.mxu0 %v40
  %191 = vmatprep.subr.mxu0 0.0
  %192 = vmatpush1.msra.mxu0 %v41
  %193 = vmatprep.subr.mxu0 0.0
  %194 = vmatpush1.msra.mxu0 %v42
  %195 = vmatprep.subr.mxu0 0.0
  %196 = vmatpush1.msra.mxu0 %v43
  %197 = vmatprep.subr.mxu0 0.0
  %198 = vmatpush1.msra.mxu0 %v44
  %199 = vmatprep.subr.mxu0 0.0
  %200 = vmatpush1.msra.mxu0 %v45
  %201 = vmatprep.subr.mxu0 0.0
  %202 = vmatpush1.msra.mxu0 %v46
  %203 = vmatprep.subr.mxu0 0.0
  %204 = vmatpush1.msra.mxu0 %v47
  %205 = vmatprep.subr.mxu0 0.0
  %206 = vmatpush1.msra.mxu0 %v48
  %207 = vmatprep.subr.mxu0 0.0
  %208 = vmatpush1.msra.mxu0 %v49
  %209 = vmatprep.subr.mxu0 0.0
  %210 = vmatpush1.msra.mxu0 0.0
  %211 = vmatprep.subr.mxu0 0.0
  %212 = vmatpush1.msra.mxu0 0.0
  %213 = vmatprep.subr.mxu0 0.0
  %214 = vmatpush1.msra.mxu0 0.0
  %215 = vmatprep.subr.mxu0 0.0
  %216 = vmatpush1.msra.mxu0 0.0
  %217 = vmatprep.subr.mxu0 0.0
  %218 = vmatpush1.msra.mxu0 0.0
  %219 = vmatprep.subr.mxu0 0.0
  %220 = vmatpush1.msra.mxu0 0.0
  %221 = vmatprep.subr.mxu0 0.0
  %222 = vmatpush1.msra.mxu0 0.0
  %223 = vmatprep.subr.mxu0 0.0
  %224 = vmatpush1.msra.mxu0 0.0
  %225 = vmatprep.subr.mxu0 0.0
  %226 = vmatpush1.msra.mxu0 0.0
  %227 = vmatprep.subr.mxu0 0.0
  %228 = vmatpush1.msra.mxu0 0.0
  %229 = vmatprep.subr.mxu0 0.0
  %230 = vmatpush1.msra.mxu0 0.0
  %231 = vmatprep.subr.mxu0 0.0
  %232 = vmatpush1.msra.mxu0 0.0
  %233 = vmatprep.subr.mxu0 0.0
  %234 = vmatpush1.msra.mxu0 0.0
  %235 = vmatprep.subr.mxu0 0.0
  %236 = vmatpush1.msra.mxu0 0.0
  %237 = vmatprep.subr.mxu0 0.0
  %238 = vmatpush1.msra.mxu0 0.0
  %239 = vmatprep.subr.mxu0 0.0
  %240 = vmatpush1.msra.mxu0 0.0
  %241 = vmatprep.mubr.f32.mxu0 0.0
  %242 = vmatmul.mubr.f32.gmra.mrb[0].mxu0 %v98
  %v243 = vpop.f32.mrb[0].mxu0
  %v244 = vadd.f32 %v169, %v243
  %v245 = vpop.f32.mrb[0].mxu0
  %246 = vmatprep.mubr.f32.mxu0 0.0
  %247 = vmatmul.mubr.f32.gmra.mrb[0].mxu0 %v99
  %v248 = vpop.f32.mrb[0].mxu0
  %v249 = vadd.f32 %v174, %v248
  %v250 = vpop.f32.mrb[0].mxu0
  %251 = vdwg.mxu0
  %v252 = vld [vmem:[%s2] sm:$0xff]
  %v253 = vld [vmem:[%s2 + $0x8] sm:$0xff]
  %254 = vmatprep.subr.mxu0 0.0
  %255 = vmatpush1.msra.mxu0 %v66
  %256 = vmatprep.subr.mxu0 0.0
  %257 = vmatpush1.msra.mxu0 %v67
  %258 = vmatprep.subr.mxu0 0.0
  %259 = vmatpush1.msra.mxu0 %v68
  %260 = vmatprep.subr.mxu0 0.0
  %261 = vmatpush1.msra.mxu0 %v69
  %262 = vmatprep.subr.mxu0 0.0
  %263 = vmatpush1.msra.mxu0 %v70
  %264 = vmatprep.subr.mxu0 0.0
  %265 = vmatpush1.msra.mxu0 %v71
  %266 = vmatprep.subr.mxu0 0.0
  %267 = vmatpush1.msra.mxu0 %v72
  %268 = vmatprep.subr.mxu0 0.0
  %269 = vmatpush1.msra.mxu0 %v73
  %270 = vmatprep.subr.mxu0 0.0
  %271 = vmatpush1.msra.mxu0 %v74
  %272 = vmatprep.subr.mxu0 0.0
  %273 = vmatpush1.msra.mxu0 %v75
  %274 = vmatprep.subr.mxu0 0.0
  %275 = vmatpush1.msra.mxu0 %v76
  %276 = vmatprep.subr.mxu0 0.0
  %277 = vmatpush1.msra.mxu0 %v77
  %278 = vmatprep.subr.mxu0 0.0
  %279 = vmatpush1.msra.mxu0 %v78
  %280 = vmatprep.subr.mxu0 0.0
  %281 = vmatpush1.msra.mxu0 %v79
  %282 = vmatprep.subr.mxu0 0.0
  %283 = vmatpush1.msra.mxu0 %v80
  %284 = vmatprep.subr.mxu0 0.0
  %285 = vmatpush1.msra.mxu0 %v81
  %286 = vmatprep.subr.mxu0 0.0
  %287 = vmatpush1.msra.mxu0 0.0
  %288 = vmatprep.subr.mxu0 0.0
  %289 = vmatpush1.msra.mxu0 0.0
  %290 = vmatprep.subr.mxu0 0.0
  %291 = vmatpush1.msra.mxu0 0.0
  %292 = vmatprep.subr.mxu0 0.0
  %293 = vmatpush1.msra.mxu0 0.0
  %294 = vmatprep.subr.mxu0 0.0
  %295 = vmatpush1.msra.mxu0 0.0
  %296 = vmatprep.subr.mxu0 0.0
  %297 = vmatpush1.msra.mxu0 0.0
  %298 = vmatprep.subr.mxu0 0.0
  %299 = vmatpush1.msra.mxu0 0.0
  %300 = vmatprep.subr.mxu0 0.0
  %301 = vmatpush1.msra.mxu0 0.0
  %302 = vmatprep.subr.mxu0 0.0
  %303 = vmatpush1.msra.mxu0 0.0
  %304 = vmatprep.subr.mxu0 0.0
  %305 = vmatpush1.msra.mxu0 0.0
  %306 = vmatprep.subr.mxu0 0.0
  %307 = vmatpush1.msra.mxu0 0.0
  %308 = vmatprep.subr.mxu0 0.0
  %309 = vmatpush1.msra.mxu0 0.0
  %310 = vmatprep.subr.mxu0 0.0
  %311 = vmatpush1.msra.mxu0 0.0
  %312 = vmatprep.subr.mxu0 0.0
  %313 = vmatpush1.msra.mxu0 0.0
  %314 = vmatprep.subr.mxu0 0.0
  %315 = vmatpush1.msra.mxu0 0.0
  %316 = vmatprep.subr.mxu0 0.0
  %317 = vmatpush1.msra.mxu0 0.0
  %318 = vmatprep.mubr.f32.mxu0 0.0
  %319 = vmatmul.mubr.f32.gmra.mrb[0].mxu0 %v252
  %v320 = vpop.f32.mrb[0].mxu0
  %v321 = vadd.f32 0.0, %v320
  %v322 = vpop.f32.mrb[0].mxu0
  %323 = vmatprep.mubr.f32.mxu0 0.0
  %324 = vmatmul.mubr.f32.gmra.mrb[0].mxu0 %v253
  %v325 = vpop.f32.mrb[0].mxu0
  %v326 = vadd.f32 0.0, %v325
  %v327 = vpop.f32.mrb[0].mxu0
  %328 = vdwg.mxu0
  %v329 = vadd.f32 %v244, %v321
  %v330 = vadd.f32 %v249, %v326
  %v331 = vld [vmem:[%s3] sm:$0xff]
  %v332 = vld [vmem:[%s3 + $0x8] sm:$0xff]
  %333 = vmatprep.subr.mxu0 0.0
  %334 = vmatpush1.msra.mxu0 %v82
  %335 = vmatprep.subr.mxu0 0.0
  %336 = vmatpush1.msra.mxu0 %v83
  %337 = vmatprep.subr.mxu0 0.0
  %338 = vmatpush1.msra.mxu0 %v84
  %339 = vmatprep.subr.mxu0 0.0
  %340 = vmatpush1.msra.mxu0 %v85
  %341 = vmatprep.subr.mxu0 0.0
  %342 = vmatpush1.msra.mxu0 %v86
  %343 = vmatprep.subr.mxu0 0.0
  %344 = vmatpush1.msra.mxu0 %v87
  %345 = vmatprep.subr.mxu0 0.0
  %346 = vmatpush1.msra.mxu0 %v88
  %347 = vmatprep.subr.mxu0 0.0
  %348 = vmatpush1.msra.mxu0 %v89
  %349 = vmatprep.subr.mxu0 0.0
  %350 = vmatpush1.msra.mxu0 %v90
  %351 = vmatprep.subr.mxu0 0.0
  %352 = vmatpush1.msra.mxu0 %v91
  %353 = vmatprep.subr.mxu0 0.0
  %354 = vmatpush1.msra.mxu0 %v92
  %355 = vmatprep.subr.mxu0 0.0
  %356 = vmatpush1.msra.mxu0 %v93
  %357 = vmatprep.subr.mxu0 0.0
  %358 = vmatpush1.msra.mxu0 %v94
  %359 = vmatprep.subr.mxu0 0.0
  %360 = vmatpush1.msra.mxu0 %v95
  %361 = vmatprep.subr.mxu0 0.0
  %362 = vmatpush1.msra.mxu0 %v96
  %363 = vmatprep.subr.mxu0 0.0
  %364 = vmatpush1.msra.mxu0 %v97
  %365 = vmatprep.subr.mxu0 0.0
  %366 = vmatpush1.msra.mxu0 0.0
  %367 = vmatprep.subr.mxu0 0.0
  %368 = vmatpush1.msra.mxu0 0.0
  %369 = vmatprep.subr.mxu0 0.0
  %370 = vmatpush1.msra.mxu0 0.0
  %371 = vmatprep.subr.mxu0 0.0
  %372 = vmatpush1.msra.mxu0 0.0
  %373 = vmatprep.subr.mxu0 0.0
  %374 = vmatpush1.msra.mxu0 0.0
  %375 = vmatprep.subr.mxu0 0.0
  %376 = vmatpush1.msra.mxu0 0.0
  %377 = vmatprep.subr.mxu0 0.0
  %378 = vmatpush1.msra.mxu0 0.0
  %379 = vmatprep.subr.mxu0 0.0
  %380 = vmatpush1.msra.mxu0 0.0
  %381 = vmatprep.subr.mxu0 0.0
  %382 = vmatpush1.msra.mxu0 0.0
  %383 = vmatprep.subr.mxu0 0.0
  %384 = vmatpush1.msra.mxu0 0.0
  %385 = vmatprep.subr.mxu0 0.0
  %386 = vmatpush1.msra.mxu0 0.0
  %387 = vmatprep.subr.mxu0 0.0
  %388 = vmatpush1.msra.mxu0 0.0
  %389 = vmatprep.subr.mxu0 0.0
  %390 = vmatpush1.msra.mxu0 0.0
  %391 = vmatprep.subr.mxu0 0.0
  %392 = vmatpush1.msra.mxu0 0.0
  %393 = vmatprep.subr.mxu0 0.0
  %394 = vmatpush1.msra.mxu0 0.0
  %395 = vmatprep.subr.mxu0 0.0
  %396 = vmatpush1.msra.mxu0 0.0
  %397 = vmatprep.mubr.f32.mxu0 0.0
  %398 = vmatmul.mubr.f32.gmra.mrb[0].mxu0 %v331
  %v399 = vpop.f32.mrb[0].mxu0
  %v400 = vadd.f32 0.0, %v399
  %v401 = vpop.f32.mrb[0].mxu0
  %402 = vmatprep.mubr.f32.mxu0 0.0
  %403 = vmatmul.mubr.f32.gmra.mrb[0].mxu0 %v332
  %v404 = vpop.f32.mrb[0].mxu0
  %v405 = vadd.f32 0.0, %v404
  %v406 = vpop.f32.mrb[0].mxu0
  %407 = vdwg.mxu0
  %v408 = vadd.f32 %v329, %v400
  %v409 = vadd.f32 %v330, %v405
  %v410 = vld [vmem:[%s5] sm:$0x1]
  %v412 = vlaneseq
  %v413 = vshrl.u32 %v412, 7
  %v414 = vsub.s32 0, %v413
  %v415 = vrot.slane %v410, %v414
  %v417 = vadd.f32 %v408, %v415
  %v418 = vadd.f32 %v409, %v415
  %v419 = vmin.f32 %v417, 20.0
  %v420 = vmin.f32 %v418, 20.0
  %v421 = vmul.f32 %v419, 1.442695
  %v422 = vpow.pop %v421
  %v423 = vmul.f32 %v420, 1.442695
  %v424 = vpow.pop %v423
  %v425 = vadd.f32 %v422, 1.0
  %v426 = vadd.f32 %v424, 1.0
  %v427 = vlog2.pop %v425
  %v428 = vmul.f32 %v427, 0.6931472
  %v429 = vlog2.pop %v426
  %v430 = vmul.f32 %v429, 0.6931472
  %vm431 = vcmp.gt.f32.partialorder %v417, 20.0
  %vm432 = vcmp.gt.f32.partialorder %v418, 20.0
  %v433 = vsel %vm431, %v417, %v428
  %v434 = vsel %vm432, %v418, %v430
  %v435 = vld [vmem:[%s6] sm:$0xff]
  %v436 = vld [vmem:[%s6 + $0x8] sm:$0xff]
  %v437 = vld [vmem:[%s6 + $0x10] sm:$0xff]
  %v438 = vld [vmem:[%s6 + $0x18] sm:$0xff]
  %v439 = vld [vmem:[%s6 + $0x20] sm:$0xff]
  %v440 = vld [vmem:[%s6 + $0x28] sm:$0xff]
  %v441 = vld [vmem:[%s6 + $0x30] sm:$0xff]
  %v442 = vld [vmem:[%s6 + $0x38] sm:$0xff]
  %v443 = vld [vmem:[#allocation2] sm:$0x1]
  %v445 = vlaneseq
  %v446 = vshrl.u32 %v445, 7
  %v447 = vsub.s32 0, %v446
  %v448 = vrot.slane %v443, %v447
  %vm450 = vcmask 523264
  %v452 = vsel %vm450, %v433, 0
  %v455 = vsel %vm450, %v434, 0
  %457 = vmatprep.subr.mxu0 0.0
  %458 = vmatpush1.msra.mxu0 %v435
  %459 = vmatprep.subr.mxu0 0.0
  %460 = vmatpush1.msra.mxu0 %v436
  %461 = vmatprep.subr.mxu0 0.0
  %462 = vmatpush1.msra.mxu0 %v437
  %463 = vmatprep.subr.mxu0 0.0
  %464 = vmatpush1.msra.mxu0 %v438
  %465 = vmatprep.subr.mxu0 0.0
  %466 = vmatpush1.msra.mxu0 %v439
  %467 = vmatprep.subr.mxu0 0.0
  %468 = vmatpush1.msra.mxu0 %v440
  %469 = vmatprep.subr.mxu0 0.0
  %470 = vmatpush1.msra.mxu0 %v441
  %471 = vmatprep.subr.mxu0 0.0
  %472 = vmatpush1.msra.mxu0 %v442
  %473 = vmatprep.subr.mxu0 0.0
  %474 = vmatpush1.msra.mxu0 0.0
  %475 = vmatprep.subr.mxu0 0.0
  %476 = vmatpush1.msra.mxu0 0.0
  %477 = vmatprep.subr.mxu0 0.0
  %478 = vmatpush1.msra.mxu0 0.0
  %479 = vmatprep.subr.mxu0 0.0
  %480 = vmatpush1.msra.mxu0 0.0
  %481 = vmatprep.subr.mxu0 0.0
  %482 = vmatpush1.msra.mxu0 0.0
  %483 = vmatprep.subr.mxu0 0.0
  %484 = vmatpush1.msra.mxu0 0.0
  %485 = vmatprep.subr.mxu0 0.0
  %486 = vmatpush1.msra.mxu0 0.0
  %487 = vmatprep.subr.mxu0 0.0
  %488 = vmatpush1.msra.mxu0 0.0
  %489 = vmatprep.subr.mxu0 0.0
  %490 = vmatpush1.msra.mxu0 0.0
  %491 = vmatprep.subr.mxu0 0.0
  %492 = vmatpush1.msra.mxu0 0.0
  %493 = vmatprep.subr.mxu0 0.0
  %494 = vmatpush1.msra.mxu0 0.0
  %495 = vmatprep.subr.mxu0 0.0
  %496 = vmatpush1.msra.mxu0 0.0
  %497 = vmatprep.subr.mxu0 0.0
  %498 = vmatpush1.msra.mxu0 0.0
  %499 = vmatprep.subr.mxu0 0.0
  %500 = vmatpush1.msra.mxu0 0.0
  %501 = vmatprep.subr.mxu0 0.0
  %502 = vmatpush1.msra.mxu0 0.0
  %503 = vmatprep.subr.mxu0 0.0
  %504 = vmatpush1.msra.mxu0 0.0
  %505 = vmatprep.subr.mxu0 0.0
  %506 = vmatpush1.msra.mxu0 0.0
  %507 = vmatprep.subr.mxu0 0.0
  %508 = vmatpush1.msra.mxu0 0.0
  %509 = vmatprep.subr.mxu0 0.0
  %510 = vmatpush1.msra.mxu0 0.0
  %511 = vmatprep.subr.mxu0 0.0
  %512 = vmatpush1.msra.mxu0 0.0
  %513 = vmatprep.subr.mxu0 0.0
  %514 = vmatpush1.msra.mxu0 0.0
  %515 = vmatprep.subr.mxu0 0.0
  %516 = vmatpush1.msra.mxu0 0.0
  %517 = vmatprep.subr.mxu0 0.0
  %518 = vmatpush1.msra.mxu0 0.0
  %519 = vmatprep.subr.mxu0 0.0
  %520 = vmatpush1.msra.mxu0 0.0
  %521 = vmatprep.mubr.f32.mxu0 0.0
  %522 = vmatmul.mubr.f32.gmra.mrb[0].mxu0 %v452
  %v523 = vpop.f32.mrb[0].mxu0
  %v524 = vadd.f32 %v448, %v523
  %v525 = vpop.f32.mrb[0].mxu0
  %526 = vmatprep.mubr.f32.mxu0 0.0
  %527 = vmatmul.mubr.f32.gmra.mrb[0].mxu0 %v455
  %v528 = vpop.f32.mrb[0].mxu0
  %v529 = vadd.f32 %v448, %v528
  %v530 = vpop.f32.mrb[0].mxu0
  %531 = vdwg.mxu0
  %v532 = vld [vmem:[%s8] sm:$0x3]
  %vm533 = vcmask 130048
  %v535 = vsel %vm533, %v532, 0
  %537 = vmatprep.subr.mxu0 0.0
  %538 = vmatpush1.msra.mxu0 %v524
  %539 = vmatprep.subr.mxu0 0.0
  %540 = vmatpush1.msra.mxu0 %v529
  %541 = vmatprep.subr.mxu0 0.0
  %542 = vmatpush1.msra.mxu0 0.0
  %543 = vmatprep.subr.mxu0 0.0
  %544 = vmatpush1.msra.mxu0 0.0
  %545 = vmatprep.subr.mxu0 0.0
  %546 = vmatpush1.msra.mxu0 0.0
  %547 = vmatprep.subr.mxu0 0.0
  %548 = vmatpush1.msra.mxu0 0.0
  %549 = vmatprep.subr.mxu0 0.0
  %550 = vmatpush1.msra.mxu0 0.0
  %551 = vmatprep.subr.mxu0 0.0
  %552 = vmatpush1.msra.mxu0 0.0
  %553 = vmatprep.subr.mxu0 0.0
  %554 = vmatpush1.msra.mxu0 0.0
  %555 = vmatprep.subr.mxu0 0.0
  %556 = vmatpush1.msra.mxu0 0.0
  %557 = vmatprep.subr.mxu0 0.0
  %558 = vmatpush1.msra.mxu0 0.0
  %559 = vmatprep.subr.mxu0 0.0
  %560 = vmatpush1.msra.mxu0 0.0
  %561 = vmatprep.subr.mxu0 0.0
  %562 = vmatpush1.msra.mxu0 0.0
  %563 = vmatprep.subr.mxu0 0.0
  %564 = vmatpush1.msra.mxu0 0.0
  %565 = vmatprep.subr.mxu0 0.0
  %566 = vmatpush1.msra.mxu0 0.0
  %567 = vmatprep.subr.mxu0 0.0
  %568 = vmatpush1.msra.mxu0 0.0
  %569 = vmatprep.subr.mxu0 0.0
  %570 = vmatpush1.msra.mxu0 0.0
  %571 = vmatprep.subr.mxu0 0.0
  %572 = vmatpush1.msra.mxu0 0.0
  %573 = vmatprep.subr.mxu0 0.0
  %574 = vmatpush1.msra.mxu0 0.0
  %575 = vmatprep.subr.mxu0 0.0
  %576 = vmatpush1.msra.mxu0 0.0
  %577 = vmatprep.subr.mxu0 0.0
  %578 = vmatpush1.msra.mxu0 0.0
  %579 = vmatprep.subr.mxu0 0.0
  %580 = vmatpush1.msra.mxu0 0.0
  %581 = vmatprep.subr.mxu0 0.0
  %582 = vmatpush1.msra.mxu0 0.0
  %583 = vmatprep.subr.mxu0 0.0
  %584 = vmatpush1.msra.mxu0 0.0
  %585 = vmatprep.subr.mxu0 0.0
  %586 = vmatpush1.msra.mxu0 0.0
  %587 = vmatprep.subr.mxu0 0.0
  %588 = vmatpush1.msra.mxu0 0.0
  %589 = vmatprep.subr.mxu0 0.0
  %590 = vmatpush1.msra.mxu0 0.0
  %591 = vmatprep.subr.mxu0 0.0
  %592 = vmatpush1.msra.mxu0 0.0
  %593 = vmatprep.subr.mxu0 0.0
  %594 = vmatpush1.msra.mxu0 0.0
  %595 = vmatprep.subr.mxu0 0.0
  %596 = vmatpush1.msra.mxu0 0.0
  %597 = vmatprep.subr.mxu0 0.0
  %598 = vmatpush1.msra.mxu0 0.0
  %599 = vmatprep.subr.mxu0 0.0
  %600 = vmatpush1.msra.mxu0 0.0
  %601 = vmatprep.mubr.f32.mxu0 0.0
  %602 = vmatmul.mubr.f32.gmra.mrb[0].mxu0 %v535
  %v603 = vpop.f32.mrb[0].mxu0
  %v604 = vadd.f32 0.0, %v603
  %v605 = vpop.f32.mrb[0].mxu0
  %606 = vdwg.mxu0
  %vm607 = vcmask 1024
  %608 = vst.msk [vmem:[%s9] sm:$0x3] %vm607, %v604
  // Predicated region
  $region38: #{mgcn_forward.7} parent=0 // pred_check
    _
  $region39: #{mgcn_forward.7} parent=0 // pred_check_branch
    %610 = sbr.rel (0) target = $region41
  $region40: #{mgcn_forward.7} parent=0 // pred_region
    _
  $region41: #{mgcn_forward.7} parent=0 // pred_fallthru
    _
  // Predicated region
  $region42: #{mgcn_forward.7} parent=0 // pred_check
    _
  $region43: #{mgcn_forward.7} parent=0 // pred_check_branch
    %612 = sbr.rel (0) target = $region45
  $region44: #{mgcn_forward.7} parent=0 // pred_region
    _
  $region45: #{mgcn_forward.7} parent=0 // pred_fallthru
    _

// kernel: mgcn_forward.6
$region0: #{mgcn_forward.6}
  #allocation0 [shape = 'u32[]', space=smem, size = 0x4, offset = 0x4, fixed_abs, tag = 'smem constant byte address 0x4 - core index']
  #allocation1 [shape = 'u32[144,128]{1,0:T(1,128)}', space=vmem, size = 0x12000, scoped, tag = 'internal scratch']
  %s0 = inlined_call_operand.vmem [shape: f32[16,128], index: 0, kind: input, shape index: {}]
  %s1 = inlined_call_operand.vmem [shape: f32[64,128], index: 1, kind: input, shape index: {}]
  %s2 = inlined_call_operand.vmem [shape: f32[64,128], index: 2, kind: input, shape index: {}]
  %s3 = inlined_call_operand.vmem [shape: bf16[64,16], index: 3, kind: input, shape index: {}]
  %s4 = inlined_call_operand.vmem [shape: bf16[16,64], index: 4, kind: input, shape index: {}]
  %s5 = inlined_call_operand.vmem [shape: f32[128,128], index: 5, kind: input, shape index: {}]
  %s6 = inlined_call_operand.vmem [shape: f32[1,128], index: 6, kind: input, shape index: {}]
  %s7 = inlined_call_operand.vmem [shape: f32[128,128], index: 7, kind: input, shape index: {}]
  %s8 = inlined_call_operand.vmem [shape: f32[1,128], index: 8, kind: input, shape index: {}]
  %s9 = inlined_call_operand.vmem [shape: f32[128,128], index: 9, kind: input, shape index: {}]
  %s10 = inlined_call_operand.vmem [shape: f32[1,128], index: 10, kind: input, shape index: {}]
  %s11 = inlined_call_operand.vmem [shape: f32[128,128], index: 11, kind: input, shape index: {}]
  %s12 = inlined_call_operand.vmem [shape: f32[1,128], index: 12, kind: input, shape index: {}]
  %s13 = inlined_call_operand.vmem [shape: f32[128,128], index: 13, kind: input, shape index: {}]
  %s14 = inlined_call_operand.vmem [shape: f32[1,128], index: 14, kind: input, shape index: {}]
  %s15 = inlined_call_operand.vmem [shape: f32[128,128], index: 15, kind: input, shape index: {}]
  %s16 = inlined_call_operand.vmem [shape: f32[1,128], index: 16, kind: input, shape index: {}]
  %s17 = inlined_call_operand.vmem [shape: f32[128,128], index: 17, kind: input, shape index: {}]
  %s18 = inlined_call_operand.vmem [shape: f32[1,128], index: 18, kind: input, shape index: {}]
  %s19 = inlined_call_operand.vmem [shape: f32[16,128], index: 19, kind: output, shape index: {0}]
  %s20 = inlined_call_operand.hbm [shape: f32[64,128], index: 20, kind: output, shape index: {1}]
  %21 = xla_tuple %s19, %s20
  %s22 = sld [smem:[#allocation0]]
  $region94: #{mgcn_forward.6} parent=0
    _
  %s24 = ssub.s32 1, %s22
  %s25 = scalar_select 0, %s24, %s22
  $region1: #{mgcn_forward.6} parent=0
    #allocation2 [shape = 'u8[32768]{0}', space=vmem, size = 0x8000, scoped, tag = 'output window, operand 1, single buffered']
    #allocation3 [shape = 's32[1]{0}', space=sflag, size = 0x4, scoped, tag = 'scoped memory for mgcn_forward.6']
    %26 = vsyncpa [#allocation3], 0
    // Predicated region
    $region2: #{mgcn_forward.6} parent=1 // pred_check
      _
    $region3: #{mgcn_forward.6} parent=1 // pred_check_branch
      %28 = sbr.rel (0) target = $region5
    $region4: #{mgcn_forward.6} parent=1 // pred_region
      _
    $region5: #{mgcn_forward.6} parent=1 // pred_fallthru
      _
    // Predicated region
    $region6: #{mgcn_forward.6} parent=1 // pred_check
      _
    $region7: #{mgcn_forward.6} parent=1 // pred_check_branch
      %30 = sbr.rel (0) target = $region9
    $region8: #{mgcn_forward.6} parent=1 // pred_region
      _
    $region9: #{mgcn_forward.6} parent=1 // pred_fallthru
      _
    // Predicated region
    $region10: #{mgcn_forward.6} parent=1 // pred_check
      _
    $region11: #{mgcn_forward.6} parent=1 // pred_check_branch
      %32 = sbr.rel (0) target = $region13
    $region12: #{mgcn_forward.6} parent=1 // pred_region
      _
    $region13: #{mgcn_forward.6} parent=1 // pred_fallthru
      _
    // Predicated region
    $region14: #{mgcn_forward.6} parent=1 // pred_check
      _
    $region15: #{mgcn_forward.6} parent=1 // pred_check_branch
      %34 = sbr.rel (0) target = $region17
    $region16: #{mgcn_forward.6} parent=1 // pred_region
      _
    $region17: #{mgcn_forward.6} parent=1 // pred_fallthru
      _
    // Predicated region
    $region18: #{mgcn_forward.6} parent=1 // pred_check
      _
    $region19: #{mgcn_forward.6} parent=1 // pred_check_branch
      %36 = sbr.rel (0) target = $region21
    $region20: #{mgcn_forward.6} parent=1 // pred_region
      _
    $region21: #{mgcn_forward.6} parent=1 // pred_fallthru
      _
    // Predicated region
    $region22: #{mgcn_forward.6} parent=1 // pred_check
      _
    $region23: #{mgcn_forward.6} parent=1 // pred_check_branch
      %38 = sbr.rel (0) target = $region25
    $region24: #{mgcn_forward.6} parent=1 // pred_region
      _
    $region25: #{mgcn_forward.6} parent=1 // pred_fallthru
      _
    // Predicated region
    $region26: #{mgcn_forward.6} parent=1 // pred_check
      _
    $region27: #{mgcn_forward.6} parent=1 // pred_check_branch
      %40 = sbr.rel (0) target = $region29
    $region28: #{mgcn_forward.6} parent=1 // pred_region
      _
    $region29: #{mgcn_forward.6} parent=1 // pred_fallthru
      _
    // Predicated region
    $region30: #{mgcn_forward.6} parent=1 // pred_check
      _
    $region31: #{mgcn_forward.6} parent=1 // pred_check_branch
      %42 = sbr.rel (0) target = $region33
    $region32: #{mgcn_forward.6} parent=1 // pred_region
      _
    $region33: #{mgcn_forward.6} parent=1 // pred_fallthru
      _
    // Predicated region
    $region34: #{mgcn_forward.6} parent=1 // pred_check
      _
    $region35: #{mgcn_forward.6} parent=1 // pred_check_branch
      %44 = sbr.rel (0) target = $region37
    $region36: #{mgcn_forward.6} parent=1 // pred_region
      _
    $region37: #{mgcn_forward.6} parent=1 // pred_fallthru
      _
    // Predicated region
    $region38: #{mgcn_forward.6} parent=1 // pred_check
      _
    $region39: #{mgcn_forward.6} parent=1 // pred_check_branch
      %46 = sbr.rel (0) target = $region41
    $region40: #{mgcn_forward.6} parent=1 // pred_region
      _
    $region41: #{mgcn_forward.6} parent=1 // pred_fallthru
      _
    // Predicated region
    $region42: #{mgcn_forward.6} parent=1 // pred_check
      _
    $region43: #{mgcn_forward.6} parent=1 // pred_check_branch
      %48 = sbr.rel (0) target = $region45
    $region44: #{mgcn_forward.6} parent=1 // pred_region
      _
    $region45: #{mgcn_forward.6} parent=1 // pred_fallthru
      _
    // Predicated region
    $region46: #{mgcn_forward.6} parent=1 // pred_check
      _
    $region47: #{mgcn_forward.6} parent=1 // pred_check_branch
      %50 = sbr.rel (0) target = $region49
    $region48: #{mgcn_forward.6} parent=1 // pred_region
      _
    $region49: #{mgcn_forward.6} parent=1 // pred_fallthru
      _
    // Predicated region
    $region50: #{mgcn_forward.6} parent=1 // pred_check
      _
    $region51: #{mgcn_forward.6} parent=1 // pred_check_branch
      %52 = sbr.rel (0) target = $region53
    $region52: #{mgcn_forward.6} parent=1 // pred_region
      _
    $region53: #{mgcn_forward.6} parent=1 // pred_fallthru
      _
    // Predicated region
    $region54: #{mgcn_forward.6} parent=1 // pred_check
      _
    $region55: #{mgcn_forward.6} parent=1 // pred_check_branch
      %54 = sbr.rel (0) target = $region57
    $region56: #{mgcn_forward.6} parent=1 // pred_region
      _
    $region57: #{mgcn_forward.6} parent=1 // pred_fallthru
      _
    // Predicated region
    $region58: #{mgcn_forward.6} parent=1 // pred_check
      _
    $region59: #{mgcn_forward.6} parent=1 // pred_check_branch
      %56 = sbr.rel (0) target = $region61
    $region60: #{mgcn_forward.6} parent=1 // pred_region
      _
    $region61: #{mgcn_forward.6} parent=1 // pred_fallthru
      _
    // Predicated region
    $region62: #{mgcn_forward.6} parent=1 // pred_check
      _
    $region63: #{mgcn_forward.6} parent=1 // pred_check_branch
      %58 = sbr.rel (0) target = $region65
    $region64: #{mgcn_forward.6} parent=1 // pred_region
      _
    $region65: #{mgcn_forward.6} parent=1 // pred_fallthru
      _
    // Predicated region
    $region66: #{mgcn_forward.6} parent=1 // pred_check
      _
    $region67: #{mgcn_forward.6} parent=1 // pred_check_branch
      %60 = sbr.rel (0) target = $region69
    $region68: #{mgcn_forward.6} parent=1 // pred_region
      _
    $region69: #{mgcn_forward.6} parent=1 // pred_fallthru
      _
    // Predicated region
    $region70: #{mgcn_forward.6} parent=1 // pred_check
      _
    $region71: #{mgcn_forward.6} parent=1 // pred_check_branch
      %62 = sbr.rel (0) target = $region73
    $region72: #{mgcn_forward.6} parent=1 // pred_region
      _
    $region73: #{mgcn_forward.6} parent=1 // pred_fallthru
      _
    // Predicated region
    $region74: #{mgcn_forward.6} parent=1 // pred_check
      _
    $region75: #{mgcn_forward.6} parent=1 // pred_check_branch
      %64 = sbr.rel (0) target = $region77
    $region76: #{mgcn_forward.6} parent=1 // pred_region
      _
    $region77: #{mgcn_forward.6} parent=1 // pred_fallthru
      _
    %v65 = vld [vmem:[%s0] sm:$0xff]
    %v66 = vld [vmem:[%s0 + $0x8] sm:$0xff]
    %v67 = vld [vmem:[%s5] sm:$0xff]
    %v68 = vld [vmem:[%s5 + $0x8] sm:$0xff]
    %v69 = vld [vmem:[%s5 + $0x10] sm:$0xff]
    %v70 = vld [vmem:[%s5 + $0x18] sm:$0xff]
    %v71 = vld [vmem:[%s5 + $0x20] sm:$0xff]
    %v72 = vld [vmem:[%s5 + $0x28] sm:$0xff]
    %v73 = vld [vmem:[%s5 + $0x30] sm:$0xff]
    %v74 = vld [vmem:[%s5 + $0x38] sm:$0xff]
    %v75 = vld [vmem:[%s5 + $0x40] sm:$0xff]
    %v76 = vld [vmem:[%s5 + $0x48] sm:$0xff]
    %v77 = vld [vmem:[%s5 + $0x50] sm:$0xff]
    %v78 = vld [vmem:[%s5 + $0x58] sm:$0xff]
    %v79 = vld [vmem:[%s5 + $0x60] sm:$0xff]
    %v80 = vld [vmem:[%s5 + $0x68] sm:$0xff]
    %v81 = vld [vmem:[%s5 + $0x70] sm:$0xff]
    %v82 = vld [vmem:[%s5 + $0x78] sm:$0xff]
    %v83 = vld [vmem:[%s6] sm:$0x1]
    %v85 = vlaneseq
    %v86 = vshrl.u32 %v85, 7
    %v87 = vsub.s32 0, %v86
    %v88 = vrot.slane %v83, %v87
    %90 = vmatprep.subr.mxu0 0.0
    %91 = vmatpush1.msra.mxu0 %v67
    %92 = vmatprep.subr.mxu0 0.0
    %93 = vmatpush1.msra.mxu0 %v68
    %94 = vmatprep.subr.mxu0 0.0
    %95 = vmatpush1.msra.mxu0 %v69
    %96 = vmatprep.subr.mxu0 0.0
    %97 = vmatpush1.msra.mxu0 %v70
    %98 = vmatprep.subr.mxu0 0.0
    %99 = vmatpush1.msra.mxu0 %v71
    %100 = vmatprep.subr.mxu0 0.0
    %101 = vmatpush1.msra.mxu0 %v72
    %102 = vmatprep.subr.mxu0 0.0
    %103 = vmatpush1.msra.mxu0 %v73
    %104 = vmatprep.subr.mxu0 0.0
    %105 = vmatpush1.msra.mxu0 %v74
    %106 = vmatprep.subr.mxu0 0.0
    %107 = vmatpush1.msra.mxu0 %v75
    %108 = vmatprep.subr.mxu0 0.0
    %109 = vmatpush1.msra.mxu0 %v76
    %110 = vmatprep.subr.mxu0 0.0
    %111 = vmatpush1.msra.mxu0 %v77
    %112 = vmatprep.subr.mxu0 0.0
    %113 = vmatpush1.msra.mxu0 %v78
    %114 = vmatprep.subr.mxu0 0.0
    %115 = vmatpush1.msra.mxu0 %v79
    %116 = vmatprep.subr.mxu0 0.0
    %117 = vmatpush1.msra.mxu0 %v80
    %118 = vmatprep.subr.mxu0 0.0
    %119 = vmatpush1.msra.mxu0 %v81
    %120 = vmatprep.subr.mxu0 0.0
    %121 = vmatpush1.msra.mxu0 %v82
    %122 = vmatprep.subr.mxu0 0.0
    %123 = vmatpush1.msra.mxu0 0.0
    %124 = vmatprep.subr.mxu0 0.0
    %125 = vmatpush1.msra.mxu0 0.0
    %126 = vmatprep.subr.mxu0 0.0
    %127 = vmatpush1.msra.mxu0 0.0
    %128 = vmatprep.subr.mxu0 0.0
    %129 = vmatpush1.msra.mxu0 0.0
    %130 = vmatprep.subr.mxu0 0.0
    %131 = vmatpush1.msra.mxu0 0.0
    %132 = vmatprep.subr.mxu0 0.0
    %133 = vmatpush1.msra.mxu0 0.0
    %134 = vmatprep.subr.mxu0 0.0
    %135 = vmatpush1.msra.mxu0 0.0
    %136 = vmatprep.subr.mxu0 0.0
    %137 = vmatpush1.msra.mxu0 0.0
    %138 = vmatprep.subr.mxu0 0.0
    %139 = vmatpush1.msra.mxu0 0.0
    %140 = vmatprep.subr.mxu0 0.0
    %141 = vmatpush1.msra.mxu0 0.0
    %142 = vmatprep.subr.mxu0 0.0
    %143 = vmatpush1.msra.mxu0 0.0
    %144 = vmatprep.subr.mxu0 0.0
    %145 = vmatpush1.msra.mxu0 0.0
    %146 = vmatprep.subr.mxu0 0.0
    %147 = vmatpush1.msra.mxu0 0.0
    %148 = vmatprep.subr.mxu0 0.0
    %149 = vmatpush1.msra.mxu0 0.0
    %150 = vmatprep.subr.mxu0 0.0
    %151 = vmatpush1.msra.mxu0 0.0
    %152 = vmatprep.subr.mxu0 0.0
    %153 = vmatpush1.msra.mxu0 0.0
    %154 = vmatprep.mubr.f32.mxu0 0.0
    %155 = vmatmul.mubr.f32.gmra.mrb[0].mxu0 %v65
    %v156 = vpop.f32.mrb[0].mxu0
    %v157 = vadd.f32 %v88, %v156
    %v158 = vpop.f32.mrb[0].mxu0
    %159 = vmatprep.mubr.f32.mxu0 0.0
    %160 = vmatmul.mubr.f32.gmra.mrb[0].mxu0 %v66
    %v161 = vpop.f32.mrb[0].mxu0
    %v162 = vadd.f32 %v88, %v161
    %v163 = vpop.f32.mrb[0].mxu0
    %164 = vdwg.mxu0
    %v165 = vld [vmem:[%s1] sm:$0xff]
    %v166 = vld [vmem:[%s1 + $0x8] sm:$0xff]
    %v167 = vld [vmem:[%s1 + $0x10] sm:$0xff]
    %v168 = vld [vmem:[%s1 + $0x18] sm:$0xff]
    %v169 = vld [vmem:[%s1 + $0x20] sm:$0xff]
    %v170 = vld [vmem:[%s1 + $0x28] sm:$0xff]
    %v171 = vld [vmem:[%s1 + $0x30] sm:$0xff]
    %v172 = vld [vmem:[%s1 + $0x38] sm:$0xff]
    %v173 = vld [vmem:[%s7] sm:$0xff]
    %v174 = vld [vmem:[%s7 + $0x8] sm:$0xff]
    %v175 = vld [vmem:[%s7 + $0x10] sm:$0xff]
    %v176 = vld [vmem:[%s7 + $0x18] sm:$0xff]
    %v177 = vld [vmem:[%s7 + $0x20] sm:$0xff]
    %v178 = vld [vmem:[%s7 + $0x28] sm:$0xff]
    %v179 = vld [vmem:[%s7 + $0x30] sm:$0xff]
    %v180 = vld [vmem:[%s7 + $0x38] sm:$0xff]
    %v181 = vld [vmem:[%s7 + $0x40] sm:$0xff]
    %v182 = vld [vmem:[%s7 + $0x48] sm:$0xff]
    %v183 = vld [vmem:[%s7 + $0x50] sm:$0xff]
    %v184 = vld [vmem:[%s7 + $0x58] sm:$0xff]
    %v185 = vld [vmem:[%s7 + $0x60] sm:$0xff]
    %v186 = vld [vmem:[%s7 + $0x68] sm:$0xff]
    %v187 = vld [vmem:[%s7 + $0x70] sm:$0xff]
    %v188 = vld [vmem:[%s7 + $0x78] sm:$0xff]
    %v189 = vld [vmem:[%s8] sm:$0x1]
    %v191 = vlaneseq
    %v192 = vshrl.u32 %v191, 7
    %v193 = vsub.s32 0, %v192
    %v194 = vrot.slane %v189, %v193
    %196 = vmatprep.subr.mxu0 0.0
    %197 = vmatpush1.msra.mxu0 %v173
    %198 = vmatprep.subr.mxu0 0.0
    %199 = vmatpush1.msra.mxu0 %v174
    %200 = vmatprep.subr.mxu0 0.0
    %201 = vmatpush1.msra.mxu0 %v175
    %202 = vmatprep.subr.mxu0 0.0
    %203 = vmatpush1.msra.mxu0 %v176
    %204 = vmatprep.subr.mxu0 0.0
    %205 = vmatpush1.msra.mxu0 %v177
    %206 = vmatprep.subr.mxu0 0.0
    %207 = vmatpush1.msra.mxu0 %v178
    %208 = vmatprep.subr.mxu0 0.0
    %209 = vmatpush1.msra.mxu0 %v179
    %210 = vmatprep.subr.mxu0 0.0
    %211 = vmatpush1.msra.mxu0 %v180
    %212 = vmatprep.subr.mxu0 0.0
    %213 = vmatpush1.msra.mxu0 %v181
    %214 = vmatprep.subr.mxu0 0.0
    %215 = vmatpush1.msra.mxu0 %v182
    %216 = vmatprep.subr.mxu0 0.0
    %217 = vmatpush1.msra.mxu0 %v183
    %218 = vmatprep.subr.mxu0 0.0
    %219 = vmatpush1.msra.mxu0 %v184
    %220 = vmatprep.subr.mxu0 0.0
    %221 = vmatpush1.msra.mxu0 %v185
    %222 = vmatprep.subr.mxu0 0.0
    %223 = vmatpush1.msra.mxu0 %v186
    %224 = vmatprep.subr.mxu0 0.0
    %225 = vmatpush1.msra.mxu0 %v187
    %226 = vmatprep.subr.mxu0 0.0
    %227 = vmatpush1.msra.mxu0 %v188
    %228 = vmatprep.subr.mxu0 0.0
    %229 = vmatpush1.msra.mxu0 0.0
    %230 = vmatprep.subr.mxu0 0.0
    %231 = vmatpush1.msra.mxu0 0.0
    %232 = vmatprep.subr.mxu0 0.0
    %233 = vmatpush1.msra.mxu0 0.0
    %234 = vmatprep.subr.mxu0 0.0
    %235 = vmatpush1.msra.mxu0 0.0
    %236 = vmatprep.subr.mxu0 0.0
    %237 = vmatpush1.msra.mxu0 0.0
    %238 = vmatprep.subr.mxu0 0.0
    %239 = vmatpush1.msra.mxu0 0.0
    %240 = vmatprep.subr.mxu0 0.0
    %241 = vmatpush1.msra.mxu0 0.0
    %242 = vmatprep.subr.mxu0 0.0
    %243 = vmatpush1.msra.mxu0 0.0
    %244 = vmatprep.subr.mxu0 0.0
    %245 = vmatpush1.msra.mxu0 0.0
    %246 = vmatprep.subr.mxu0 0.0
    %247 = vmatpush1.msra.mxu0 0.0
    %248 = vmatprep.subr.mxu0 0.0
    %249 = vmatpush1.msra.mxu0 0.0
    %250 = vmatprep.subr.mxu0 0.0
    %251 = vmatpush1.msra.mxu0 0.0
    %252 = vmatprep.subr.mxu0 0.0
    %253 = vmatpush1.msra.mxu0 0.0
    %254 = vmatprep.subr.mxu0 0.0
    %255 = vmatpush1.msra.mxu0 0.0
    %256 = vmatprep.subr.mxu0 0.0
    %257 = vmatpush1.msra.mxu0 0.0
    %258 = vmatprep.subr.mxu0 0.0
    %259 = vmatpush1.msra.mxu0 0.0
    %260 = vmatprep.mubr.f32.mxu0 0.0
    %261 = vmatmul.mubr.f32.gmra.mrb[0].mxu0 %v165
    %v262 = vpop.f32.mrb[0].mxu0
    %v263 = vadd.f32 %v194, %v262
    %v264 = vpop.f32.mrb[0].mxu0
    %265 = vmatprep.mubr.f32.mxu0 0.0
    %266 = vmatmul.mubr.f32.gmra.mrb[0].mxu0 %v166
    %v267 = vpop.f32.mrb[0].mxu0
    %v268 = vadd.f32 %v194, %v267
    %v269 = vpop.f32.mrb[0].mxu0
    %270 = vmatprep.mubr.f32.mxu0 0.0
    %271 = vmatmul.mubr.f32.gmra.mrb[0].mxu0 %v167
    %v272 = vpop.f32.mrb[0].mxu0
    %v273 = vadd.f32 %v194, %v272
    %v274 = vpop.f32.mrb[0].mxu0
    %275 = vmatprep.mubr.f32.mxu0 0.0
    %276 = vmatmul.mubr.f32.gmra.mrb[0].mxu0 %v168
    %v277 = vpop.f32.mrb[0].mxu0
    %v278 = vadd.f32 %v194, %v277
    %v279 = vpop.f32.mrb[0].mxu0
    %280 = vmatprep.mubr.f32.mxu0 0.0
    %281 = vmatmul.mubr.f32.gmra.mrb[0].mxu0 %v169
    %v282 = vpop.f32.mrb[0].mxu0
    %v283 = vadd.f32 %v194, %v282
    %v284 = vpop.f32.mrb[0].mxu0
    %285 = vmatprep.mubr.f32.mxu0 0.0
    %286 = vmatmul.mubr.f32.gmra.mrb[0].mxu0 %v170
    %v287 = vpop.f32.mrb[0].mxu0
    %v288 = vadd.f32 %v194, %v287
    %v289 = vpop.f32.mrb[0].mxu0
    %290 = vmatprep.mubr.f32.mxu0 0.0
    %291 = vmatmul.mubr.f32.gmra.mrb[0].mxu0 %v171
    %v292 = vpop.f32.mrb[0].mxu0
    %v293 = vadd.f32 %v194, %v292
    %v294 = vpop.f32.mrb[0].mxu0
    %295 = vmatprep.mubr.f32.mxu0 0.0
    %296 = vmatmul.mubr.f32.gmra.mrb[0].mxu0 %v172
    %v297 = vpop.f32.mrb[0].mxu0
    %v298 = vadd.f32 %v194, %v297
    %v299 = vpop.f32.mrb[0].mxu0
    %300 = vdwg.mxu0
    %v301 = vmul.f32 %v263, 0.5
    %v302 = vmul.f32 %v268, 0.5
    %v303 = vmul.f32 %v273, 0.5
    %v304 = vmul.f32 %v278, 0.5
    %v305 = vmul.f32 %v283, 0.5
    %v306 = vmul.f32 %v288, 0.5
    %v307 = vmul.f32 %v293, 0.5
    %v308 = vmul.f32 %v298, 0.5
    %v309 = vmin.f32 %v301, 14.0
    %v310 = vmin.f32 %v302, 14.0
    %v311 = vmin.f32 %v303, 14.0
    %v312 = vmin.f32 %v304, 14.0
    %v313 = vmin.f32 %v305, 14.0
    %v314 = vmin.f32 %v306, 14.0
    %v315 = vmin.f32 %v307, 14.0
    %v316 = vmin.f32 %v308, 14.0
    %v317 = vmul.f32 %v309, 1.442695
    %v318 = vpow.pop %v317
    %v319 = vmul.f32 %v310, 1.442695
    %v320 = vpow.pop %v319
    %v321 = vmul.f32 %v311, 1.442695
    %v322 = vpow.pop %v321
    %v323 = vmul.f32 %v312, 1.442695
    %v324 = vpow.pop %v323
    %v325 = vmul.f32 %v313, 1.442695
    %v326 = vpow.pop %v325
    %v327 = vmul.f32 %v314, 1.442695
    %v328 = vpow.pop %v327
    %v329 = vmul.f32 %v315, 1.442695
    %v330 = vpow.pop %v329
    %v331 = vmul.f32 %v316, 1.442695
    %v332 = vpow.pop %v331
    %v333 = vadd.f32 %v318, 1.0
    %v334 = vadd.f32 %v320, 1.0
    %v335 = vadd.f32 %v322, 1.0
    %v336 = vadd.f32 %v324, 1.0
    %v337 = vadd.f32 %v326, 1.0
    %v338 = vadd.f32 %v328, 1.0
    %v339 = vadd.f32 %v330, 1.0
    %v340 = vadd.f32 %v332, 1.0
    %v341 = vlog2.pop %v333
    %v342 = vmul.f32 %v341, 0.6931472
    %v343 = vlog2.pop %v334
    %v344 = vmul.f32 %v343, 0.6931472
    %v345 = vlog2.pop %v335
    %v346 = vmul.f32 %v345, 0.6931472
    %v347 = vlog2.pop %v336
    %v348 = vmul.f32 %v347, 0.6931472
    %v349 = vlog2.pop %v337
    %v350 = vmul.f32 %v349, 0.6931472
    %v351 = vlog2.pop %v338
    %v352 = vmul.f32 %v351, 0.6931472
    %v353 = vlog2.pop %v339
    %v354 = vmul.f32 %v353, 0.6931472
    %v355 = vlog2.pop %v340
    %v356 = vmul.f32 %v355, 0.6931472
    %v357 = vrcp.pop 0.5
    %v358 = vmul.f32 %v342, %v357
    %v359 = vmul.f32 %v344, %v357
    %v360 = vmul.f32 %v346, %v357
    %v361 = vmul.f32 %v348, %v357
    %v362 = vmul.f32 %v350, %v357
    %v363 = vmul.f32 %v352, %v357
    %v364 = vmul.f32 %v354, %v357
    %v365 = vmul.f32 %v356, %v357
    %vm366 = vcmp.gt.f32.partialorder %v301, 14.0
    %vm367 = vcmp.gt.f32.partialorder %v302, 14.0
    %vm368 = vcmp.gt.f32.partialorder %v303, 14.0
    %vm369 = vcmp.gt.f32.partialorder %v304, 14.0
    %vm370 = vcmp.gt.f32.partialorder %v305, 14.0
    %vm371 = vcmp.gt.f32.partialorder %v306, 14.0
    %vm372 = vcmp.gt.f32.partialorder %v307, 14.0
    %vm373 = vcmp.gt.f32.partialorder %v308, 14.0
    %v374 = vsel %vm366, %v263, %v358
    %v375 = vsel %vm367, %v268, %v359
    %v376 = vsel %vm368, %v273, %v360
    %v377 = vsel %vm369, %v278, %v361
    %v378 = vsel %vm370, %v283, %v362
    %v379 = vsel %vm371, %v288, %v363
    %v380 = vsel %vm372, %v293, %v364
    %v381 = vsel %vm373, %v298, %v365
    %v382 = vld [vmem:[%s9] sm:$0xff]
    %v383 = vld [vmem:[%s9 + $0x8] sm:$0xff]
    %v384 = vld [vmem:[%s9 + $0x10] sm:$0xff]
    %v385 = vld [vmem:[%s9 + $0x18] sm:$0xff]
    %v386 = vld [vmem:[%s9 + $0x20] sm:$0xff]
    %v387 = vld [vmem:[%s9 + $0x28] sm:$0xff]
    %v388 = vld [vmem:[%s9 + $0x30] sm:$0xff]
    %v389 = vld [vmem:[%s9 + $0x38] sm:$0xff]
    %v390 = vld [vmem:[%s9 + $0x40] sm:$0xff]
    %v391 = vld [vmem:[%s9 + $0x48] sm:$0xff]
    %v392 = vld [vmem:[%s9 + $0x50] sm:$0xff]
    %v393 = vld [vmem:[%s9 + $0x58] sm:$0xff]
    %v394 = vld [vmem:[%s9 + $0x60] sm:$0xff]
    %v395 = vld [vmem:[%s9 + $0x68] sm:$0xff]
    %v396 = vld [vmem:[%s9 + $0x70] sm:$0xff]
    %v397 = vld [vmem:[%s9 + $0x78] sm:$0xff]
    %v398 = vld [vmem:[%s10] sm:$0x1]
    %v400 = vlaneseq
    %v401 = vshrl.u32 %v400, 7
    %v402 = vsub.s32 0, %v401
    %v403 = vrot.slane %v398, %v402
    %405 = vmatprep.subr.mxu0 0.0
    %406 = vmatpush1.msra.mxu0 %v382
    %407 = vmatprep.subr.mxu0 0.0
    %408 = vmatpush1.msra.mxu0 %v383
    %409 = vmatprep.subr.mxu0 0.0
    %410 = vmatpush1.msra.mxu0 %v384
    %411 = vmatprep.subr.mxu0 0.0
    %412 = vmatpush1.msra.mxu0 %v385
    %413 = vmatprep.subr.mxu0 0.0
    %414 = vmatpush1.msra.mxu0 %v386
    %415 = vmatprep.subr.mxu0 0.0
    %416 = vmatpush1.msra.mxu0 %v387
    %417 = vmatprep.subr.mxu0 0.0
    %418 = vmatpush1.msra.mxu0 %v388
    %419 = vmatprep.subr.mxu0 0.0
    %420 = vmatpush1.msra.mxu0 %v389
    %421 = vmatprep.subr.mxu0 0.0
    %422 = vmatpush1.msra.mxu0 %v390
    %423 = vmatprep.subr.mxu0 0.0
    %424 = vmatpush1.msra.mxu0 %v391
    %425 = vmatprep.subr.mxu0 0.0
    %426 = vmatpush1.msra.mxu0 %v392
    %427 = vmatprep.subr.mxu0 0.0
    %428 = vmatpush1.msra.mxu0 %v393
    %429 = vmatprep.subr.mxu0 0.0
    %430 = vmatpush1.msra.mxu0 %v394
    %431 = vmatprep.subr.mxu0 0.0
    %432 = vmatpush1.msra.mxu0 %v395
    %433 = vmatprep.subr.mxu0 0.0
    %434 = vmatpush1.msra.mxu0 %v396
    %435 = vmatprep.subr.mxu0 0.0
    %436 = vmatpush1.msra.mxu0 %v397
    %437 = vmatprep.subr.mxu0 0.0
    %438 = vmatpush1.msra.mxu0 0.0
    %439 = vmatprep.subr.mxu0 0.0
    %440 = vmatpush1.msra.mxu0 0.0
    %441 = vmatprep.subr.mxu0 0.0
    %442 = vmatpush1.msra.mxu0 0.0
    %443 = vmatprep.subr.mxu0 0.0
    %444 = vmatpush1.msra.mxu0 0.0
    %445 = vmatprep.subr.mxu0 0.0
    %446 = vmatpush1.msra.mxu0 0.0
    %447 = vmatprep.subr.mxu0 0.0
    %448 = vmatpush1.msra.mxu0 0.0
    %449 = vmatprep.subr.mxu0 0.0
    %450 = vmatpush1.msra.mxu0 0.0
    %451 = vmatprep.subr.mxu0 0.0
    %452 = vmatpush1.msra.mxu0 0.0
    %453 = vmatprep.subr.mxu0 0.0
    %454 = vmatpush1.msra.mxu0 0.0
    %455 = vmatprep.subr.mxu0 0.0
    %456 = vmatpush1.msra.mxu0 0.0
    %457 = vmatprep.subr.mxu0 0.0
    %458 = vmatpush1.msra.mxu0 0.0
    %459 = vmatprep.subr.mxu0 0.0
    %460 = vmatpush1.msra.mxu0 0.0
    %461 = vmatprep.subr.mxu0 0.0
    %462 = vmatpush1.msra.mxu0 0.0
    %463 = vmatprep.subr.mxu0 0.0
    %464 = vmatpush1.msra.mxu0 0.0
    %465 = vmatprep.subr.mxu0 0.0
    %466 = vmatpush1.msra.mxu0 0.0
    %467 = vmatprep.subr.mxu0 0.0
    %468 = vmatpush1.msra.mxu0 0.0
    %469 = vmatprep.mubr.f32.mxu0 0.0
    %470 = vmatmul.mubr.f32.gmra.mrb[0].mxu0 %v374
    %v471 = vpop.f32.mrb[0].mxu0
    %v472 = vadd.f32 %v403, %v471
    %v473 = vpop.f32.mrb[0].mxu0
    %474 = vmatprep.mubr.f32.mxu0 0.0
    %475 = vmatmul.mubr.f32.gmra.mrb[0].mxu0 %v375
    %v476 = vpop.f32.mrb[0].mxu0
    %v477 = vadd.f32 %v403, %v476
    %v478 = vpop.f32.mrb[0].mxu0
    %479 = vmatprep.mubr.f32.mxu0 0.0
    %480 = vmatmul.mubr.f32.gmra.mrb[0].mxu0 %v376
    %v481 = vpop.f32.mrb[0].mxu0
    %v482 = vadd.f32 %v403, %v481
    %v483 = vpop.f32.mrb[0].mxu0
    %484 = vmatprep.mubr.f32.mxu0 0.0
    %485 = vmatmul.mubr.f32.gmra.mrb[0].mxu0 %v377
    %v486 = vpop.f32.mrb[0].mxu0
    %v487 = vadd.f32 %v403, %v486
    %v488 = vpop.f32.mrb[0].mxu0
    %489 = vmatprep.mubr.f32.mxu0 0.0
    %490 = vmatmul.mubr.f32.gmra.mrb[0].mxu0 %v378
    %v491 = vpop.f32.mrb[0].mxu0
    %v492 = vadd.f32 %v403, %v491
    %v493 = vpop.f32.mrb[0].mxu0
    %494 = vmatprep.mubr.f32.mxu0 0.0
    %495 = vmatmul.mubr.f32.gmra.mrb[0].mxu0 %v379
    %v496 = vpop.f32.mrb[0].mxu0
    %v497 = vadd.f32 %v403, %v496
    %v498 = vpop.f32.mrb[0].mxu0
    %499 = vmatprep.mubr.f32.mxu0 0.0
    %500 = vmatmul.mubr.f32.gmra.mrb[0].mxu0 %v380
    %v501 = vpop.f32.mrb[0].mxu0
    %v502 = vadd.f32 %v403, %v501
    %v503 = vpop.f32.mrb[0].mxu0
    %504 = vmatprep.mubr.f32.mxu0 0.0
    %505 = vmatmul.mubr.f32.gmra.mrb[0].mxu0 %v381
    %v506 = vpop.f32.mrb[0].mxu0
    %v507 = vadd.f32 %v403, %v506
    %v508 = vpop.f32.mrb[0].mxu0
    %509 = vdwg.mxu0
    %v510 = vld [vmem:[%s2] sm:$0xff]
    %v511 = vld [vmem:[%s2 + $0x8] sm:$0xff]
    %v512 = vld [vmem:[%s2 + $0x10] sm:$0xff]
    %v513 = vld [vmem:[%s2 + $0x18] sm:$0xff]
    %v514 = vld [vmem:[%s2 + $0x20] sm:$0xff]
    %v515 = vld [vmem:[%s2 + $0x28] sm:$0xff]
    %v516 = vld [vmem:[%s2 + $0x30] sm:$0xff]
    %v517 = vld [vmem:[%s2 + $0x38] sm:$0xff]
    %v518 = vld [vmem:[%s11] sm:$0xff]
    %v519 = vld [vmem:[%s11 + $0x8] sm:$0xff]
    %v520 = vld [vmem:[%s11 + $0x10] sm:$0xff]
    %v521 = vld [vmem:[%s11 + $0x18] sm:$0xff]
    %v522 = vld [vmem:[%s11 + $0x20] sm:$0xff]
    %v523 = vld [vmem:[%s11 + $0x28] sm:$0xff]
    %v524 = vld [vmem:[%s11 + $0x30] sm:$0xff]
    %v525 = vld [vmem:[%s11 + $0x38] sm:$0xff]
    %v526 = vld [vmem:[%s11 + $0x40] sm:$0xff]
    %v527 = vld [vmem:[%s11 + $0x48] sm:$0xff]
    %v528 = vld [vmem:[%s11 + $0x50] sm:$0xff]
    %v529 = vld [vmem:[%s11 + $0x58] sm:$0xff]
    %v530 = vld [vmem:[%s11 + $0x60] sm:$0xff]
    %v531 = vld [vmem:[%s11 + $0x68] sm:$0xff]
    %v532 = vld [vmem:[%s11 + $0x70] sm:$0xff]
    %v533 = vld [vmem:[%s11 + $0x78] sm:$0xff]
    %v534 = vld [vmem:[%s12] sm:$0x1]
    %v536 = vlaneseq
    %v537 = vshrl.u32 %v536, 7
    %v538 = vsub.s32 0, %v537
    %v539 = vrot.slane %v534, %v538
    %541 = vmatprep.subr.mxu0 0.0
    %542 = vmatpush1.msra.mxu0 %v518
    %543 = vmatprep.subr.mxu0 0.0
    %544 = vmatpush1.msra.mxu0 %v519
    %545 = vmatprep.subr.mxu0 0.0
    %546 = vmatpush1.msra.mxu0 %v520
    %547 = vmatprep.subr.mxu0 0.0
    %548 = vmatpush1.msra.mxu0 %v521
    %549 = vmatprep.subr.mxu0 0.0
    %550 = vmatpush1.msra.mxu0 %v522
    %551 = vmatprep.subr.mxu0 0.0
    %552 = vmatpush1.msra.mxu0 %v523
    %553 = vmatprep.subr.mxu0 0.0
    %554 = vmatpush1.msra.mxu0 %v524
    %555 = vmatprep.subr.mxu0 0.0
    %556 = vmatpush1.msra.mxu0 %v525
    %557 = vmatprep.subr.mxu0 0.0
    %558 = vmatpush1.msra.mxu0 %v526
    %559 = vmatprep.subr.mxu0 0.0
    %560 = vmatpush1.msra.mxu0 %v527
    %561 = vmatprep.subr.mxu0 0.0
    %562 = vmatpush1.msra.mxu0 %v528
    %563 = vmatprep.subr.mxu0 0.0
    %564 = vmatpush1.msra.mxu0 %v529
    %565 = vmatprep.subr.mxu0 0.0
    %566 = vmatpush1.msra.mxu0 %v530
    %567 = vmatprep.subr.mxu0 0.0
    %568 = vmatpush1.msra.mxu0 %v531
    %569 = vmatprep.subr.mxu0 0.0
    %570 = vmatpush1.msra.mxu0 %v532
    %571 = vmatprep.subr.mxu0 0.0
    %572 = vmatpush1.msra.mxu0 %v533
    %573 = vmatprep.subr.mxu0 0.0
    %574 = vmatpush1.msra.mxu0 0.0
    %575 = vmatprep.subr.mxu0 0.0
    %576 = vmatpush1.msra.mxu0 0.0
    %577 = vmatprep.subr.mxu0 0.0
    %578 = vmatpush1.msra.mxu0 0.0
    %579 = vmatprep.subr.mxu0 0.0
    %580 = vmatpush1.msra.mxu0 0.0
    %581 = vmatprep.subr.mxu0 0.0
    %582 = vmatpush1.msra.mxu0 0.0
    %583 = vmatprep.subr.mxu0 0.0
    %584 = vmatpush1.msra.mxu0 0.0
    %585 = vmatprep.subr.mxu0 0.0
    %586 = vmatpush1.msra.mxu0 0.0
    %587 = vmatprep.subr.mxu0 0.0
    %588 = vmatpush1.msra.mxu0 0.0
    %589 = vmatprep.subr.mxu0 0.0
    %590 = vmatpush1.msra.mxu0 0.0
    %591 = vmatprep.subr.mxu0 0.0
    %592 = vmatpush1.msra.mxu0 0.0
    %593 = vmatprep.subr.mxu0 0.0
    %594 = vmatpush1.msra.mxu0 0.0
    %595 = vmatprep.subr.mxu0 0.0
    %596 = vmatpush1.msra.mxu0 0.0
    %597 = vmatprep.subr.mxu0 0.0
    %598 = vmatpush1.msra.mxu0 0.0
    %599 = vmatprep.subr.mxu0 0.0
    %600 = vmatpush1.msra.mxu0 0.0
    %601 = vmatprep.subr.mxu0 0.0
    %602 = vmatpush1.msra.mxu0 0.0
    %603 = vmatprep.subr.mxu0 0.0
    %604 = vmatpush1.msra.mxu0 0.0
    %605 = vmatprep.mubr.f32.mxu0 0.0
    %606 = vmatmul.mubr.f32.gmra.mrb[0].mxu0 %v510
    %v607 = vpop.f32.mrb[0].mxu0
    %v608 = vadd.f32 %v539, %v607
    %v609 = vpop.f32.mrb[0].mxu0
    %610 = vmatprep.mubr.f32.mxu0 0.0
    %611 = vmatmul.mubr.f32.gmra.mrb[0].mxu0 %v511
    %v612 = vpop.f32.mrb[0].mxu0
    %v613 = vadd.f32 %v539, %v612
    %v614 = vpop.f32.mrb[0].mxu0
    %615 = vmatprep.mubr.f32.mxu0 0.0
    %616 = vmatmul.mubr.f32.gmra.mrb[0].mxu0 %v512
    %v617 = vpop.f32.mrb[0].mxu0
    %v618 = vadd.f32 %v539, %v617
    %v619 = vpop.f32.mrb[0].mxu0
    %620 = vmatprep.mubr.f32.mxu0 0.0
    %621 = vmatmul.mubr.f32.gmra.mrb[0].mxu0 %v513
    %v622 = vpop.f32.mrb[0].mxu0
    %v623 = vadd.f32 %v539, %v622
    %v624 = vpop.f32.mrb[0].mxu0
    %625 = vmatprep.mubr.f32.mxu0 0.0
    %626 = vmatmul.mubr.f32.gmra.mrb[0].mxu0 %v514
    %v627 = vpop.f32.mrb[0].mxu0
    %v628 = vadd.f32 %v539, %v627
    %v629 = vpop.f32.mrb[0].mxu0
    %630 = vmatprep.mubr.f32.mxu0 0.0
    %631 = vmatmul.mubr.f32.gmra.mrb[0].mxu0 %v515
    %v632 = vpop.f32.mrb[0].mxu0
    %v633 = vadd.f32 %v539, %v632
    %v634 = vpop.f32.mrb[0].mxu0
    %635 = vmatprep.mubr.f32.mxu0 0.0
    %636 = vmatmul.mubr.f32.gmra.mrb[0].mxu0 %v516
    %v637 = vpop.f32.mrb[0].mxu0
    %v638 = vadd.f32 %v539, %v637
    %v639 = vpop.f32.mrb[0].mxu0
    %640 = vmatprep.mubr.f32.mxu0 0.0
    %641 = vmatmul.mubr.f32.gmra.mrb[0].mxu0 %v517
    %v642 = vpop.f32.mrb[0].mxu0
    %v643 = vadd.f32 %v539, %v642
    %v644 = vpop.f32.mrb[0].mxu0
    %645 = vdwg.mxu0
    %v646 = vld [vmem:[%s3] sm:$0xf]
    %v647 = vld [vmem:[%s3 + $0x4] sm:$0xf]
    %v648 = vld [vmem:[%s3 + $0x8] sm:$0xf]
    %v649 = vld [vmem:[%s3 + $0xc] sm:$0xf]
    %v650 = vld [vmem:[%s3 + $0x10] sm:$0xf]
    %v651 = vld [vmem:[%s3 + $0x14] sm:$0xf]
    %v652 = vld [vmem:[%s3 + $0x18] sm:$0xf]
    %v653 = vld [vmem:[%s3 + $0x1c] sm:$0xf]
    %v654 = vunpack.c.l.bf16 %v646
    %v655 = vunpack.c.l.bf16 %v647
    %v656 = vunpack.c.l.bf16 %v648
    %v657 = vunpack.c.l.bf16 %v649
    %v658 = vunpack.c.l.bf16 %v650
    %v659 = vunpack.c.l.bf16 %v651
    %v660 = vunpack.c.l.bf16 %v652
    %v661 = vunpack.c.l.bf16 %v653
    %vm662 = vcmask 130048
    %v664 = vsel %vm662, %v654, 0
    %v667 = vsel %vm662, %v655, 0
    %v670 = vsel %vm662, %v656, 0
    %v673 = vsel %vm662, %v657, 0
    %v676 = vsel %vm662, %v658, 0
    %v679 = vsel %vm662, %v659, 0
    %v682 = vsel %vm662, %v660, 0
    %v685 = vsel %vm662, %v661, 0
    %687 = vmatprep.subr.mxu0 0.0
    %688 = vmatpush1.msra.mxu0 %v157
    %689 = vmatprep.subr.mxu0 0.0
    %690 = vmatpush1.msra.mxu0 %v162
    %691 = vmatprep.subr.mxu0 0.0
    %692 = vmatpush1.msra.mxu0 0.0
    %693 = vmatprep.subr.mxu0 0.0
    %694 = vmatpush1.msra.mxu0 0.0
    %695 = vmatprep.subr.mxu0 0.0
    %696 = vmatpush1.msra.mxu0 0.0
    %697 = vmatprep.subr.mxu0 0.0
    %698 = vmatpush1.msra.mxu0 0.0
    %699 = vmatprep.subr.mxu0 0.0
    %700 = vmatpush1.msra.mxu0 0.0
    %701 = vmatprep.subr.mxu0 0.0
    %702 = vmatpush1.msra.mxu0 0.0
    %703 = vmatprep.subr.mxu0 0.0
    %704 = vmatpush1.msra.mxu0 0.0
    %705 = vmatprep.subr.mxu0 0.0
    %706 = vmatpush1.msra.mxu0 0.0
    %707 = vmatprep.subr.mxu0 0.0
    %708 = vmatpush1.msra.mxu0 0.0
    %709 = vmatprep.subr.mxu0 0.0
    %710 = vmatpush1.msra.mxu0 0.0
    %711 = vmatprep.subr.mxu0 0.0
    %712 = vmatpush1.msra.mxu0 0.0
    %713 = vmatprep.subr.mxu0 0.0
    %714 = vmatpush1.msra.mxu0 0.0
    %715 = vmatprep.subr.mxu0 0.0
    %716 = vmatpush1.msra.mxu0 0.0
    %717 = vmatprep.subr.mxu0 0.0
    %718 = vmatpush1.msra.mxu0 0.0
    %719 = vmatprep.subr.mxu0 0.0
    %720 = vmatpush1.msra.mxu0 0.0
    %721 = vmatprep.subr.mxu0 0.0
    %722 = vmatpush1.msra.mxu0 0.0
    %723 = vmatprep.subr.mxu0 0.0
    %724 = vmatpush1.msra.mxu0 0.0
    %725 = vmatprep.subr.mxu0 0.0
    %726 = vmatpush1.msra.mxu0 0.0
    %727 = vmatprep.subr.mxu0 0.0
    %728 = vmatpush1.msra.mxu0 0.0
    %729 = vmatprep.subr.mxu0 0.0
    %730 = vmatpush1.msra.mxu0 0.0
    %731 = vmatprep.subr.mxu0 0.0
    %732 = vmatpush1.msra.mxu0 0.0
    %733 = vmatprep.subr.mxu0 0.0
    %734 = vmatpush1.msra.mxu0 0.0
    %735 = vmatprep.subr.mxu0 0.0
    %736 = vmatpush1.msra.mxu0 0.0
    %737 = vmatprep.subr.mxu0 0.0
    %738 = vmatpush1.msra.mxu0 0.0
    %739 = vmatprep.subr.mxu0 0.0
    %740 = vmatpush1.msra.mxu0 0.0
    %741 = vmatprep.subr.mxu0 0.0
    %742 = vmatpush1.msra.mxu0 0.0
    %743 = vmatprep.subr.mxu0 0.0
    %744 = vmatpush1.msra.mxu0 0.0
    %745 = vmatprep.subr.mxu0 0.0
    %746 = vmatpush1.msra.mxu0 0.0
    %747 = vmatprep.subr.mxu0 0.0
    %748 = vmatpush1.msra.mxu0 0.0
    %749 = vmatprep.subr.mxu0 0.0
    %750 = vmatpush1.msra.mxu0 0.0
    %751 = vmatprep.mubr.f32.mxu0 0.0
    %752 = vmatmul.mubr.f32.gmra.mrb[0].mxu0 %v664
    %v753 = vpop.f32.mrb[0].mxu0
    %v754 = vadd.f32 0.0, %v753
    %v755 = vpop.f32.mrb[0].mxu0
    %756 = vmatprep.mubr.f32.mxu0 0.0
    %757 = vmatmul.mubr.f32.gmra.mrb[0].mxu0 %v667
    %v758 = vpop.f32.mrb[0].mxu0
    %v759 = vadd.f32 0.0, %v758
    %v760 = vpop.f32.mrb[0].mxu0
    %761 = vmatprep.mubr.f32.mxu0 0.0
    %762 = vmatmul.mubr.f32.gmra.mrb[0].mxu0 %v670
    %v763 = vpop.f32.mrb[0].mxu0
    %v764 = vadd.f32 0.0, %v763
    %v765 = vpop.f32.mrb[0].mxu0
    %766 = vmatprep.mubr.f32.mxu0 0.0
    %767 = vmatmul.mubr.f32.gmra.mrb[0].mxu0 %v673
    %v768 = vpop.f32.mrb[0].mxu0
    %v769 = vadd.f32 0.0, %v768
    %v770 = vpop.f32.mrb[0].mxu0
    %771 = vmatprep.mubr.f32.mxu0 0.0
    %772 = vmatmul.mubr.f32.gmra.mrb[0].mxu0 %v676
    %v773 = vpop.f32.mrb[0].mxu0
    %v774 = vadd.f32 0.0, %v773
    %v775 = vpop.f32.mrb[0].mxu0
    %776 = vmatprep.mubr.f32.mxu0 0.0
    %777 = vmatmul.mubr.f32.gmra.mrb[0].mxu0 %v679
    %v778 = vpop.f32.mrb[0].mxu0
    %v779 = vadd.f32 0.0, %v778
    %v780 = vpop.f32.mrb[0].mxu0
    %781 = vmatprep.mubr.f32.mxu0 0.0
    %782 = vmatmul.mubr.f32.gmra.mrb[0].mxu0 %v682
    %v783 = vpop.f32.mrb[0].mxu0
    %v784 = vadd.f32 0.0, %v783
    %v785 = vpop.f32.mrb[0].mxu0
    %786 = vmatprep.mubr.f32.mxu0 0.0
    %787 = vmatmul.mubr.f32.gmra.mrb[0].mxu0 %v685
    %v788 = vpop.f32.mrb[0].mxu0
    %v789 = vadd.f32 0.0, %v788
    %v790 = vpop.f32.mrb[0].mxu0
    %791 = vdwg.mxu0
    %v792 = vmul.f32 %v754, %v472
    %v793 = vmul.f32 %v759, %v477
    %v794 = vmul.f32 %v764, %v482
    %v795 = vmul.f32 %v769, %v487
    %v796 = vmul.f32 %v774, %v492
    %v797 = vmul.f32 %v779, %v497
    %v798 = vmul.f32 %v784, %v502
    %v799 = vmul.f32 %v789, %v507
    %v800 = vadd.f32 %v792, %v608
    %v801 = vadd.f32 %v793, %v613
    %v802 = vadd.f32 %v794, %v618
    %v803 = vadd.f32 %v795, %v623
    %v804 = vadd.f32 %v796, %v628
    %v805 = vadd.f32 %v797, %v633
    %v806 = vadd.f32 %v798, %v638
    %v807 = vadd.f32 %v799, %v643
    %v808 = vld [vmem:[%s4] sm:$0xf]
    %v809 = vld [vmem:[%s4 + $0x4] sm:$0xf]
    %v810 = vunpack.c.l.bf16 %v808
    %v811 = vunpack.c.l.bf16 %v809
    %vm812 = vcmask 523264
    %v814 = vsel %vm812, %v810, 0
    %v817 = vsel %vm812, %v811, 0
    %819 = vmatprep.subr.mxu0 0.0
    %820 = vmatpush1.msra.mxu0 %v800
    %821 = vmatprep.subr.mxu0 0.0
    %822 = vmatpush1.msra.mxu0 %v801
    %823 = vmatprep.subr.mxu0 0.0
    %824 = vmatpush1.msra.mxu0 %v802
    %825 = vmatprep.subr.mxu0 0.0
    %826 = vmatpush1.msra.mxu0 %v803
    %827 = vmatprep.subr.mxu0 0.0
    %828 = vmatpush1.msra.mxu0 %v804
    %829 = vmatprep.subr.mxu0 0.0
    %830 = vmatpush1.msra.mxu0 %v805
    %831 = vmatprep.subr.mxu0 0.0
    %832 = vmatpush1.msra.mxu0 %v806
    %833 = vmatprep.subr.mxu0 0.0
    %834 = vmatpush1.msra.mxu0 %v807
    %835 = vmatprep.subr.mxu0 0.0
    %836 = vmatpush1.msra.mxu0 0.0
    %837 = vmatprep.subr.mxu0 0.0
    %838 = vmatpush1.msra.mxu0 0.0
    %839 = vmatprep.subr.mxu0 0.0
    %840 = vmatpush1.msra.mxu0 0.0
    %841 = vmatprep.subr.mxu0 0.0
    %842 = vmatpush1.msra.mxu0 0.0
    %843 = vmatprep.subr.mxu0 0.0
    %844 = vmatpush1.msra.mxu0 0.0
    %845 = vmatprep.subr.mxu0 0.0
    %846 = vmatpush1.msra.mxu0 0.0
    %847 = vmatprep.subr.mxu0 0.0
    %848 = vmatpush1.msra.mxu0 0.0
    %849 = vmatprep.subr.mxu0 0.0
    %850 = vmatpush1.msra.mxu0 0.0
    %851 = vmatprep.subr.mxu0 0.0
    %852 = vmatpush1.msra.mxu0 0.0
    %853 = vmatprep.subr.mxu0 0.0
    %854 = vmatpush1.msra.mxu0 0.0
    %855 = vmatprep.subr.mxu0 0.0
    %856 = vmatpush1.msra.mxu0 0.0
    %857 = vmatprep.subr.mxu0 0.0
    %858 = vmatpush1.msra.mxu0 0.0
    %859 = vmatprep.subr.mxu0 0.0
    %860 = vmatpush1.msra.mxu0 0.0
    %861 = vmatprep.subr.mxu0 0.0
    %862 = vmatpush1.msra.mxu0 0.0
    %863 = vmatprep.subr.mxu0 0.0
    %864 = vmatpush1.msra.mxu0 0.0
    %865 = vmatprep.subr.mxu0 0.0
    %866 = vmatpush1.msra.mxu0 0.0
    %867 = vmatprep.subr.mxu0 0.0
    %868 = vmatpush1.msra.mxu0 0.0
    %869 = vmatprep.subr.mxu0 0.0
    %870 = vmatpush1.msra.mxu0 0.0
    %871 = vmatprep.subr.mxu0 0.0
    %872 = vmatpush1.msra.mxu0 0.0
    %873 = vmatprep.subr.mxu0 0.0
    %874 = vmatpush1.msra.mxu0 0.0
    %875 = vmatprep.subr.mxu0 0.0
    %876 = vmatpush1.msra.mxu0 0.0
    %877 = vmatprep.subr.mxu0 0.0
    %878 = vmatpush1.msra.mxu0 0.0
    %879 = vmatprep.subr.mxu0 0.0
    %880 = vmatpush1.msra.mxu0 0.0
    %881 = vmatprep.subr.mxu0 0.0
    %882 = vmatpush1.msra.mxu0 0.0
    %883 = vmatprep.mubr.f32.mxu0 0.0
    %884 = vmatmul.mubr.f32.gmra.mrb[0].mxu0 %v814
    %v885 = vpop.f32.mrb[0].mxu0
    %v886 = vadd.f32 0.0, %v885
    %v887 = vpop.f32.mrb[0].mxu0
    %888 = vmatprep.mubr.f32.mxu0 0.0
    %889 = vmatmul.mubr.f32.gmra.mrb[0].mxu0 %v817
    %v890 = vpop.f32.mrb[0].mxu0
    %v891 = vadd.f32 0.0, %v890
    %v892 = vpop.f32.mrb[0].mxu0
    %893 = vdwg.mxu0
    %v894 = vld [vmem:[%s13] sm:$0xff]
    %v895 = vld [vmem:[%s13 + $0x8] sm:$0xff]
    %v896 = vld [vmem:[%s13 + $0x10] sm:$0xff]
    %v897 = vld [vmem:[%s13 + $0x18] sm:$0xff]
    %v898 = vld [vmem:[%s13 + $0x20] sm:$0xff]
    %v899 = vld [vmem:[%s13 + $0x28] sm:$0xff]
    %v900 = vld [vmem:[%s13 + $0x30] sm:$0xff]
    %v901 = vld [vmem:[%s13 + $0x38] sm:$0xff]
    %v902 = vld [vmem:[%s13 + $0x40] sm:$0xff]
    %v903 = vld [vmem:[%s13 + $0x48] sm:$0xff]
    %v904 = vld [vmem:[%s13 + $0x50] sm:$0xff]
    %v905 = vld [vmem:[%s13 + $0x58] sm:$0xff]
    %v906 = vld [vmem:[%s13 + $0x60] sm:$0xff]
    %v907 = vld [vmem:[%s13 + $0x68] sm:$0xff]
    %v908 = vld [vmem:[%s13 + $0x70] sm:$0xff]
    %v909 = vld [vmem:[%s13 + $0x78] sm:$0xff]
    %v910 = vld [vmem:[%s14] sm:$0x1]
    %v912 = vlaneseq
    %v913 = vshrl.u32 %v912, 7
    %v914 = vsub.s32 0, %v913
    %v915 = vrot.slane %v910, %v914
    %917 = vmatprep.subr.mxu0 0.0
    %918 = vmatpush1.msra.mxu0 %v894
    %919 = vmatprep.subr.mxu0 0.0
    %920 = vmatpush1.msra.mxu0 %v895
    %921 = vmatprep.subr.mxu0 0.0
    %922 = vmatpush1.msra.mxu0 %v896
    %923 = vmatprep.subr.mxu0 0.0
    %924 = vmatpush1.msra.mxu0 %v897
    %925 = vmatprep.subr.mxu0 0.0
    %926 = vmatpush1.msra.mxu0 %v898
    %927 = vmatprep.subr.mxu0 0.0
    %928 = vmatpush1.msra.mxu0 %v899
    %929 = vmatprep.subr.mxu0 0.0
    %930 = vmatpush1.msra.mxu0 %v900
    %931 = vmatprep.subr.mxu0 0.0
    %932 = vmatpush1.msra.mxu0 %v901
    %933 = vmatprep.subr.mxu0 0.0
    %934 = vmatpush1.msra.mxu0 %v902
    %935 = vmatprep.subr.mxu0 0.0
    %936 = vmatpush1.msra.mxu0 %v903
    %937 = vmatprep.subr.mxu0 0.0
    %938 = vmatpush1.msra.mxu0 %v904
    %939 = vmatprep.subr.mxu0 0.0
    %940 = vmatpush1.msra.mxu0 %v905
    %941 = vmatprep.subr.mxu0 0.0
    %942 = vmatpush1.msra.mxu0 %v906
    %943 = vmatprep.subr.mxu0 0.0
    %944 = vmatpush1.msra.mxu0 %v907
    %945 = vmatprep.subr.mxu0 0.0
    %946 = vmatpush1.msra.mxu0 %v908
    %947 = vmatprep.subr.mxu0 0.0
    %948 = vmatpush1.msra.mxu0 %v909
    %949 = vmatprep.subr.mxu0 0.0
    %950 = vmatpush1.msra.mxu0 0.0
    %951 = vmatprep.subr.mxu0 0.0
    %952 = vmatpush1.msra.mxu0 0.0
    %953 = vmatprep.subr.mxu0 0.0
    %954 = vmatpush1.msra.mxu0 0.0
    %955 = vmatprep.subr.mxu0 0.0
    %956 = vmatpush1.msra.mxu0 0.0
    %957 = vmatprep.subr.mxu0 0.0
    %958 = vmatpush1.msra.mxu0 0.0
    %959 = vmatprep.subr.mxu0 0.0
    %960 = vmatpush1.msra.mxu0 0.0
    %961 = vmatprep.subr.mxu0 0.0
    %962 = vmatpush1.msra.mxu0 0.0
    %963 = vmatprep.subr.mxu0 0.0
    %964 = vmatpush1.msra.mxu0 0.0
    %965 = vmatprep.subr.mxu0 0.0
    %966 = vmatpush1.msra.mxu0 0.0
    %967 = vmatprep.subr.mxu0 0.0
    %968 = vmatpush1.msra.mxu0 0.0
    %969 = vmatprep.subr.mxu0 0.0
    %970 = vmatpush1.msra.mxu0 0.0
    %971 = vmatprep.subr.mxu0 0.0
    %972 = vmatpush1.msra.mxu0 0.0
    %973 = vmatprep.subr.mxu0 0.0
    %974 = vmatpush1.msra.mxu0 0.0
    %975 = vmatprep.subr.mxu0 0.0
    %976 = vmatpush1.msra.mxu0 0.0
    %977 = vmatprep.subr.mxu0 0.0
    %978 = vmatpush1.msra.mxu0 0.0
    %979 = vmatprep.subr.mxu0 0.0
    %980 = vmatpush1.msra.mxu0 0.0
    %981 = vmatprep.mubr.f32.mxu0 0.0
    %982 = vmatmul.mubr.f32.gmra.mrb[0].mxu0 %v608
    %v983 = vpop.f32.mrb[0].mxu0
    %v984 = vadd.f32 %v915, %v983
    %v985 = vpop.f32.mrb[0].mxu0
    %986 = vmatprep.mubr.f32.mxu0 0.0
    %987 = vmatmul.mubr.f32.gmra.mrb[0].mxu0 %v613
    %v988 = vpop.f32.mrb[0].mxu0
    %v989 = vadd.f32 %v915, %v988
    %v990 = vpop.f32.mrb[0].mxu0
    %991 = vmatprep.mubr.f32.mxu0 0.0
    %992 = vmatmul.mubr.f32.gmra.mrb[0].mxu0 %v618
    %v993 = vpop.f32.mrb[0].mxu0
    %v994 = vadd.f32 %v915, %v993
    %v995 = vpop.f32.mrb[0].mxu0
    %996 = vmatprep.mubr.f32.mxu0 0.0
    %997 = vmatmul.mubr.f32.gmra.mrb[0].mxu0 %v623
    %v998 = vpop.f32.mrb[0].mxu0
    %v999 = vadd.f32 %v915, %v998
    %v1000 = vpop.f32.mrb[0].mxu0
    %1001 = vmatprep.mubr.f32.mxu0 0.0
    %1002 = vmatmul.mubr.f32.gmra.mrb[0].mxu0 %v628
    %v1003 = vpop.f32.mrb[0].mxu0
    %v1004 = vadd.f32 %v915, %v1003
    %v1005 = vpop.f32.mrb[0].mxu0
    %1006 = vmatprep.mubr.f32.mxu0 0.0
    %1007 = vmatmul.mubr.f32.gmra.mrb[0].mxu0 %v633
    %v1008 = vpop.f32.mrb[0].mxu0
    %v1009 = vadd.f32 %v915, %v1008
    %v1010 = vpop.f32.mrb[0].mxu0
    %1011 = vmatprep.mubr.f32.mxu0 0.0
    %1012 = vmatmul.mubr.f32.gmra.mrb[0].mxu0 %v638
    %v1013 = vpop.f32.mrb[0].mxu0
    %v1014 = vadd.f32 %v915, %v1013
    %v1015 = vpop.f32.mrb[0].mxu0
    %1016 = vmatprep.mubr.f32.mxu0 0.0
    %1017 = vmatmul.mubr.f32.gmra.mrb[0].mxu0 %v643
    %v1018 = vpop.f32.mrb[0].mxu0
    %v1019 = vadd.f32 %v915, %v1018
    %v1020 = vpop.f32.mrb[0].mxu0
    %1021 = vdwg.mxu0
    %v1022 = vmul.f32 %v984, 0.5
    %v1023 = vmul.f32 %v989, 0.5
    %v1024 = vmul.f32 %v994, 0.5
    %v1025 = vmul.f32 %v999, 0.5
    %v1026 = vmul.f32 %v1004, 0.5
    %v1027 = vmul.f32 %v1009, 0.5
    %v1028 = vmul.f32 %v1014, 0.5
    %v1029 = vmul.f32 %v1019, 0.5
    %v1030 = vmin.f32 %v1022, 14.0
    %v1031 = vmin.f32 %v1023, 14.0
    %v1032 = vmin.f32 %v1024, 14.0
    %v1033 = vmin.f32 %v1025, 14.0
    %v1034 = vmin.f32 %v1026, 14.0
    %v1035 = vmin.f32 %v1027, 14.0
    %v1036 = vmin.f32 %v1028, 14.0
    %v1037 = vmin.f32 %v1029, 14.0
    %v1038 = vmul.f32 %v1030, 1.442695
    %v1039 = vpow.pop %v1038
    %v1040 = vmul.f32 %v1031, 1.442695
    %v1041 = vpow.pop %v1040
    %v1042 = vmul.f32 %v1032, 1.442695
    %v1043 = vpow.pop %v1042
    %v1044 = vmul.f32 %v1033, 1.442695
    %v1045 = vpow.pop %v1044
    %v1046 = vmul.f32 %v1034, 1.442695
    %v1047 = vpow.pop %v1046
    %v1048 = vmul.f32 %v1035, 1.442695
    %v1049 = vpow.pop %v1048
    %v1050 = vmul.f32 %v1036, 1.442695
    %v1051 = vpow.pop %v1050
    %v1052 = vmul.f32 %v1037, 1.442695
    %v1053 = vpow.pop %v1052
    %v1054 = vadd.f32 %v1039, 1.0
    %v1055 = vadd.f32 %v1041, 1.0
    %v1056 = vadd.f32 %v1043, 1.0
    %v1057 = vadd.f32 %v1045, 1.0
    %v1058 = vadd.f32 %v1047, 1.0
    %v1059 = vadd.f32 %v1049, 1.0
    %v1060 = vadd.f32 %v1051, 1.0
    %v1061 = vadd.f32 %v1053, 1.0
    %v1062 = vlog2.pop %v1054
    %v1063 = vmul.f32 %v1062, 0.6931472
    %v1064 = vlog2.pop %v1055
    %v1065 = vmul.f32 %v1064, 0.6931472
    %v1066 = vlog2.pop %v1056
    %v1067 = vmul.f32 %v1066, 0.6931472
    %v1068 = vlog2.pop %v1057
    %v1069 = vmul.f32 %v1068, 0.6931472
    %v1070 = vlog2.pop %v1058
    %v1071 = vmul.f32 %v1070, 0.6931472
    %v1072 = vlog2.pop %v1059
    %v1073 = vmul.f32 %v1072, 0.6931472
    %v1074 = vlog2.pop %v1060
    %v1075 = vmul.f32 %v1074, 0.6931472
    %v1076 = vlog2.pop %v1061
    %v1077 = vmul.f32 %v1076, 0.6931472
    %v1078 = vmul.f32 %v1063, %v357
    %v1079 = vmul.f32 %v1065, %v357
    %v1080 = vmul.f32 %v1067, %v357
    %v1081 = vmul.f32 %v1069, %v357
    %v1082 = vmul.f32 %v1071, %v357
    %v1083 = vmul.f32 %v1073, %v357
    %v1084 = vmul.f32 %v1075, %v357
    %v1085 = vmul.f32 %v1077, %v357
    %vm1086 = vcmp.gt.f32.partialorder %v1022, 14.0
    %vm1087 = vcmp.gt.f32.partialorder %v1023, 14.0
    %vm1088 = vcmp.gt.f32.partialorder %v1024, 14.0
    %vm1089 = vcmp.gt.f32.partialorder %v1025, 14.0
    %vm1090 = vcmp.gt.f32.partialorder %v1026, 14.0
    %vm1091 = vcmp.gt.f32.partialorder %v1027, 14.0
    %vm1092 = vcmp.gt.f32.partialorder %v1028, 14.0
    %vm1093 = vcmp.gt.f32.partialorder %v1029, 14.0
    %v1094 = vsel %vm1086, %v984, %v1078
    %v1095 = vsel %vm1087, %v989, %v1079
    %v1096 = vsel %vm1088, %v994, %v1080
    %v1097 = vsel %vm1089, %v999, %v1081
    %v1098 = vsel %vm1090, %v1004, %v1082
    %v1099 = vsel %vm1091, %v1009, %v1083
    %v1100 = vsel %vm1092, %v1014, %v1084
    %v1101 = vsel %vm1093, %v1019, %v1085
    %1102 = vst [vmem:[#allocation2] sm:$0xff] %v1094
    %1103 = vst [vmem:[#allocation2 + $0x8] sm:$0xff] %v1095
    %1104 = vst [vmem:[#allocation2 + $0x10] sm:$0xff] %v1096
    %1105 = vst [vmem:[#allocation2 + $0x18] sm:$0xff] %v1097
    %1106 = vst [vmem:[#allocation2 + $0x20] sm:$0xff] %v1098
    %1107 = vst [vmem:[#allocation2 + $0x28] sm:$0xff] %v1099
    %1108 = vst [vmem:[#allocation2 + $0x30] sm:$0xff] %v1100
    %1109 = vst [vmem:[#allocation2 + $0x38] sm:$0xff] %v1101
    %v1110 = vld [vmem:[%s15] sm:$0xff]
    %v1111 = vld [vmem:[%s15 + $0x8] sm:$0xff]
    %v1112 = vld [vmem:[%s15 + $0x10] sm:$0xff]
    %v1113 = vld [vmem:[%s15 + $0x18] sm:$0xff]
    %v1114 = vld [vmem:[%s15 + $0x20] sm:$0xff]
    %v1115 = vld [vmem:[%s15 + $0x28] sm:$0xff]
    %v1116 = vld [vmem:[%s15 + $0x30] sm:$0xff]
    %v1117 = vld [vmem:[%s15 + $0x38] sm:$0xff]
    %v1118 = vld [vmem:[%s15 + $0x40] sm:$0xff]
    %v1119 = vld [vmem:[%s15 + $0x48] sm:$0xff]
    %v1120 = vld [vmem:[%s15 + $0x50] sm:$0xff]
    %v1121 = vld [vmem:[%s15 + $0x58] sm:$0xff]
    %v1122 = vld [vmem:[%s15 + $0x60] sm:$0xff]
    %v1123 = vld [vmem:[%s15 + $0x68] sm:$0xff]
    %v1124 = vld [vmem:[%s15 + $0x70] sm:$0xff]
    %v1125 = vld [vmem:[%s15 + $0x78] sm:$0xff]
    %v1126 = vld [vmem:[%s16] sm:$0x1]
    %v1128 = vlaneseq
    %v1129 = vshrl.u32 %v1128, 7
    %v1130 = vsub.s32 0, %v1129
    %v1131 = vrot.slane %v1126, %v1130
    %1133 = vmatprep.subr.mxu0 0.0
    %1134 = vmatpush1.msra.mxu0 %v1110
    %1135 = vmatprep.subr.mxu0 0.0
    %1136 = vmatpush1.msra.mxu0 %v1111
    %1137 = vmatprep.subr.mxu0 0.0
    %1138 = vmatpush1.msra.mxu0 %v1112
    %1139 = vmatprep.subr.mxu0 0.0
    %1140 = vmatpush1.msra.mxu0 %v1113
    %1141 = vmatprep.subr.mxu0 0.0
    %1142 = vmatpush1.msra.mxu0 %v1114
    %1143 = vmatprep.subr.mxu0 0.0
    %1144 = vmatpush1.msra.mxu0 %v1115
    %1145 = vmatprep.subr.mxu0 0.0
    %1146 = vmatpush1.msra.mxu0 %v1116
    %1147 = vmatprep.subr.mxu0 0.0
    %1148 = vmatpush1.msra.mxu0 %v1117
    %1149 = vmatprep.subr.mxu0 0.0
    %1150 = vmatpush1.msra.mxu0 %v1118
    %1151 = vmatprep.subr.mxu0 0.0
    %1152 = vmatpush1.msra.mxu0 %v1119
    %1153 = vmatprep.subr.mxu0 0.0
    %1154 = vmatpush1.msra.mxu0 %v1120
    %1155 = vmatprep.subr.mxu0 0.0
    %1156 = vmatpush1.msra.mxu0 %v1121
    %1157 = vmatprep.subr.mxu0 0.0
    %1158 = vmatpush1.msra.mxu0 %v1122
    %1159 = vmatprep.subr.mxu0 0.0
    %1160 = vmatpush1.msra.mxu0 %v1123
    %1161 = vmatprep.subr.mxu0 0.0
    %1162 = vmatpush1.msra.mxu0 %v1124
    %1163 = vmatprep.subr.mxu0 0.0
    %1164 = vmatpush1.msra.mxu0 %v1125
    %1165 = vmatprep.subr.mxu0 0.0
    %1166 = vmatpush1.msra.mxu0 0.0
    %1167 = vmatprep.subr.mxu0 0.0
    %1168 = vmatpush1.msra.mxu0 0.0
    %1169 = vmatprep.subr.mxu0 0.0
    %1170 = vmatpush1.msra.mxu0 0.0
    %1171 = vmatprep.subr.mxu0 0.0
    %1172 = vmatpush1.msra.mxu0 0.0
    %1173 = vmatprep.subr.mxu0 0.0
    %1174 = vmatpush1.msra.mxu0 0.0
    %1175 = vmatprep.subr.mxu0 0.0
    %1176 = vmatpush1.msra.mxu0 0.0
    %1177 = vmatprep.subr.mxu0 0.0
    %1178 = vmatpush1.msra.mxu0 0.0
    %1179 = vmatprep.subr.mxu0 0.0
    %1180 = vmatpush1.msra.mxu0 0.0
    %1181 = vmatprep.subr.mxu0 0.0
    %1182 = vmatpush1.msra.mxu0 0.0
    %1183 = vmatprep.subr.mxu0 0.0
    %1184 = vmatpush1.msra.mxu0 0.0
    %1185 = vmatprep.subr.mxu0 0.0
    %1186 = vmatpush1.msra.mxu0 0.0
    %1187 = vmatprep.subr.mxu0 0.0
    %1188 = vmatpush1.msra.mxu0 0.0
    %1189 = vmatprep.subr.mxu0 0.0
    %1190 = vmatpush1.msra.mxu0 0.0
    %1191 = vmatprep.subr.mxu0 0.0
    %1192 = vmatpush1.msra.mxu0 0.0
    %1193 = vmatprep.subr.mxu0 0.0
    %1194 = vmatpush1.msra.mxu0 0.0
    %1195 = vmatprep.subr.mxu0 0.0
    %1196 = vmatpush1.msra.mxu0 0.0
    %1197 = vmatprep.mubr.f32.mxu0 0.0
    %1198 = vmatmul.mubr.f32.gmra.mrb[0].mxu0 %v886
    %v1199 = vpop.f32.mrb[0].mxu0
    %v1200 = vadd.f32 %v1131, %v1199
    %v1201 = vpop.f32.mrb[0].mxu0
    %1202 = vmatprep.mubr.f32.mxu0 0.0
    %1203 = vmatmul.mubr.f32.gmra.mrb[0].mxu0 %v891
    %v1204 = vpop.f32.mrb[0].mxu0
    %v1205 = vadd.f32 %v1131, %v1204
    %v1206 = vpop.f32.mrb[0].mxu0
    %1207 = vdwg.mxu0
    %v1208 = vmul.f32 %v1200, 0.5
    %v1209 = vmul.f32 %v1205, 0.5
    %v1210 = vmin.f32 %v1208, 14.0
    %v1211 = vmin.f32 %v1209, 14.0
    %v1212 = vmul.f32 %v1210, 1.442695
    %v1213 = vpow.pop %v1212
    %v1214 = vmul.f32 %v1211, 1.442695
    %v1215 = vpow.pop %v1214
    %v1216 = vadd.f32 %v1213, 1.0
    %v1217 = vadd.f32 %v1215, 1.0
    %v1218 = vlog2.pop %v1216
    %v1219 = vmul.f32 %v1218, 0.6931472
    %v1220 = vlog2.pop %v1217
    %v1221 = vmul.f32 %v1220, 0.6931472
    %v1222 = vmul.f32 %v1219, %v357
    %v1223 = vmul.f32 %v1221, %v357
    %vm1224 = vcmp.gt.f32.partialorder %v1208, 14.0
    %vm1225 = vcmp.gt.f32.partialorder %v1209, 14.0
    %v1226 = vsel %vm1224, %v1200, %v1222
    %v1227 = vsel %vm1225, %v1205, %v1223
    %v1228 = vld [vmem:[%s17] sm:$0xff]
    %v1229 = vld [vmem:[%s17 + $0x8] sm:$0xff]
    %v1230 = vld [vmem:[%s17 + $0x10] sm:$0xff]
    %v1231 = vld [vmem:[%s17 + $0x18] sm:$0xff]
    %v1232 = vld [vmem:[%s17 + $0x20] sm:$0xff]
    %v1233 = vld [vmem:[%s17 + $0x28] sm:$0xff]
    %v1234 = vld [vmem:[%s17 + $0x30] sm:$0xff]
    %v1235 = vld [vmem:[%s17 + $0x38] sm:$0xff]
    %v1236 = vld [vmem:[%s17 + $0x40] sm:$0xff]
    %v1237 = vld [vmem:[%s17 + $0x48] sm:$0xff]
    %v1238 = vld [vmem:[%s17 + $0x50] sm:$0xff]
    %v1239 = vld [vmem:[%s17 + $0x58] sm:$0xff]
    %v1240 = vld [vmem:[%s17 + $0x60] sm:$0xff]
    %v1241 = vld [vmem:[%s17 + $0x68] sm:$0xff]
    %v1242 = vld [vmem:[%s17 + $0x70] sm:$0xff]
    %v1243 = vld [vmem:[%s17 + $0x78] sm:$0xff]
    %1244 = vmatprep.subr.mxu0 0.0
    %1245 = vmatpush1.msra.mxu0 %v1228
    %1246 = vmatprep.subr.mxu0 0.0
    %1247 = vmatpush1.msra.mxu0 %v1229
    %1248 = vmatprep.subr.mxu0 0.0
    %1249 = vmatpush1.msra.mxu0 %v1230
    %1250 = vmatprep.subr.mxu0 0.0
    %1251 = vmatpush1.msra.mxu0 %v1231
    %1252 = vmatprep.subr.mxu0 0.0
    %1253 = vmatpush1.msra.mxu0 %v1232
    %1254 = vmatprep.subr.mxu0 0.0
    %1255 = vmatpush1.msra.mxu0 %v1233
    %1256 = vmatprep.subr.mxu0 0.0
    %1257 = vmatpush1.msra.mxu0 %v1234
    %1258 = vmatprep.subr.mxu0 0.0
    %1259 = vmatpush1.msra.mxu0 %v1235
    %1260 = vmatprep.subr.mxu0 0.0
    %1261 = vmatpush1.msra.mxu0 %v1236
    %1262 = vmatprep.subr.mxu0 0.0
    %1263 = vmatpush1.msra.mxu0 %v1237
    %1264 = vmatprep.subr.mxu0 0.0
    %1265 = vmatpush1.msra.mxu0 %v1238
    %1266 = vmatprep.subr.mxu0 0.0
    %1267 = vmatpush1.msra.mxu0 %v1239
    %1268 = vmatprep.subr.mxu0 0.0
    %1269 = vmatpush1.msra.mxu0 %v1240
    %1270 = vmatprep.subr.mxu0 0.0
    %1271 = vmatpush1.msra.mxu0 %v1241
    %1272 = vmatprep.subr.mxu0 0.0
    %1273 = vmatpush1.msra.mxu0 %v1242
    %1274 = vmatprep.subr.mxu0 0.0
    %1275 = vmatpush1.msra.mxu0 %v1243
    %1276 = vmatprep.subr.mxu0 0.0
    %1277 = vmatpush1.msra.mxu0 0.0
    %1278 = vmatprep.subr.mxu0 0.0
    %1279 = vmatpush1.msra.mxu0 0.0
    %1280 = vmatprep.subr.mxu0 0.0
    %1281 = vmatpush1.msra.mxu0 0.0
    %1282 = vmatprep.subr.mxu0 0.0
    %1283 = vmatpush1.msra.mxu0 0.0
    %1284 = vmatprep.subr.mxu0 0.0
    %1285 = vmatpush1.msra.mxu0 0.0
    %1286 = vmatprep.subr.mxu0 0.0
    %1287 = vmatpush1.msra.mxu0 0.0
    %1288 = vmatprep.subr.mxu0 0.0
    %1289 = vmatpush1.msra.mxu0 0.0
    %1290 = vmatprep.subr.mxu0 0.0
    %1291 = vmatpush1.msra.mxu0 0.0
    %1292 = vmatprep.subr.mxu0 0.0
    %1293 = vmatpush1.msra.mxu0 0.0
    %1294 = vmatprep.subr.mxu0 0.0
    %1295 = vmatpush1.msra.mxu0 0.0
    %1296 = vmatprep.subr.mxu0 0.0
    %1297 = vmatpush1.msra.mxu0 0.0
    %1298 = vmatprep.subr.mxu0 0.0
    %1299 = vmatpush1.msra.mxu0 0.0
    %1300 = vmatprep.subr.mxu0 0.0
    %1301 = vmatpush1.msra.mxu0 0.0
    %1302 = vmatprep.subr.mxu0 0.0
    %1303 = vmatpush1.msra.mxu0 0.0
    %1304 = vmatprep.subr.mxu0 0.0
    %1305 = vmatpush1.msra.mxu0 0.0
    %1306 = vmatprep.subr.mxu0 0.0
    %1307 = vmatpush1.msra.mxu0 0.0
    %1308 = vmatprep.mubr.f32.mxu0 0.0
    %1309 = vmatmul.mubr.f32.gmra.mrb[0].mxu0 %v1226
    %v1310 = vpop.f32.mrb[0].mxu0
    %v1311 = vadd.f32 0.0, %v1310
    %v1312 = vpop.f32.mrb[0].mxu0
    %1313 = vmatprep.mubr.f32.mxu0 0.0
    %1314 = vmatmul.mubr.f32.gmra.mrb[0].mxu0 %v1227
    %v1315 = vpop.f32.mrb[0].mxu0
    %v1316 = vadd.f32 0.0, %v1315
    %v1317 = vpop.f32.mrb[0].mxu0
    %1318 = vdwg.mxu0
    %v1319 = vadd.f32 %v65, %v1311
    %v1320 = vadd.f32 %v66, %v1316
    %v1321 = vld [vmem:[%s18] sm:$0x1]
    %v1323 = vlaneseq
    %v1324 = vshrl.u32 %v1323, 7
    %v1325 = vsub.s32 0, %v1324
    %v1326 = vrot.slane %v1321, %v1325
    %v1328 = vadd.f32 %v1319, %v1326
    %v1329 = vadd.f32 %v1320, %v1326
    %1330 = vst [vmem:[%s19] sm:$0xff] %v1328
    %1331 = vst [vmem:[%s19 + $0x8] sm:$0xff] %v1329
    // Predicated region
    $region78: #{mgcn_forward.6} parent=1 // pred_check
      _
    $region79: #{mgcn_forward.6} parent=1 // pred_check_branch
      %1333 = sbr.rel (0) target = $region81
    $region80: #{mgcn_forward.6} parent=1 // pred_region
      _
    $region81: #{mgcn_forward.6} parent=1 // pred_fallthru
      _
    // Predicated region
    $region82: #{mgcn_forward.6} parent=1 // pred_check
      _
    $region83: #{mgcn_forward.6} parent=1 // pred_check_branch
      %1335 = sbr.rel (0) target = $region85
    $region84: #{mgcn_forward.6} parent=1 // pred_region
      %s1337 = ssub.s32 1024, 1024
      %1338 = vsyncadd [#allocation3], %s1337
      %s1339 = sshll.u32 [#allocation2], 4
      %s1340 = int_to_ptr.vmem [resolvable:$true] %s1339
      %1345 = dma.vmem_to_hbm [thread:$0]  %s1340, 1024, %s20, [#allocation3], 128, 128, 8
    $region85: #{mgcn_forward.6} parent=1 // pred_fallthru
      _
    // Predicated region
    $region86: #{mgcn_forward.6} parent=1 // pred_check
      _
    $region87: #{mgcn_forward.6} parent=1 // pred_check_branch
      %1347 = sbr.rel (0) target = $region89
    $region88: #{mgcn_forward.6} parent=1 // pred_region
      _
    $region89: #{mgcn_forward.6} parent=1 // pred_fallthru
      _
    // Predicated region
    $region90: #{mgcn_forward.6} parent=1 // pred_check
      _
    $region91: #{mgcn_forward.6} parent=1 // pred_check_branch
      %1349 = sbr.rel (0) target = $region93
    $region92: #{mgcn_forward.6} parent=1 // pred_region
      %1350 = dma.done [#allocation3], 1024
    $region93: #{mgcn_forward.6} parent=1 // pred_fallthru
      _
    %1351 = vsyncpa [#allocation3], 1

// kernel: mgcn_forward.4
$region0: #{mgcn_forward.4}
  #allocation0 [shape = 'u32[]', space=smem, size = 0x4, offset = 0x4, fixed_abs, tag = 'smem constant byte address 0x4 - core index']
  #allocation1 [shape = 'u32[144,128]{1,0:T(1,128)}', space=vmem, size = 0x12000, scoped, tag = 'internal scratch']
  %s0 = inlined_call_operand.vmem [shape: f32[16,128], index: 0, kind: input, shape index: {}]
  %s1 = inlined_call_operand.vmem [shape: f32[64,128], index: 1, kind: input, shape index: {}]
  %s2 = inlined_call_operand.vmem [shape: f32[64,128], index: 2, kind: input, shape index: {}]
  %s3 = inlined_call_operand.vmem [shape: bf16[64,16], index: 3, kind: input, shape index: {}]
  %s4 = inlined_call_operand.vmem [shape: bf16[16,64], index: 4, kind: input, shape index: {}]
  %s5 = inlined_call_operand.vmem [shape: f32[128,128], index: 5, kind: input, shape index: {}]
  %s6 = inlined_call_operand.vmem [shape: f32[1,128], index: 6, kind: input, shape index: {}]
  %s7 = inlined_call_operand.vmem [shape: f32[128,128], index: 7, kind: input, shape index: {}]
  %s8 = inlined_call_operand.vmem [shape: f32[1,128], index: 8, kind: input, shape index: {}]
  %s9 = inlined_call_operand.vmem [shape: f32[128,128], index: 9, kind: input, shape index: {}]
  %s10 = inlined_call_operand.vmem [shape: f32[1,128], index: 10, kind: input, shape index: {}]
  %s11 = inlined_call_operand.vmem [shape: f32[128,128], index: 11, kind: input, shape index: {}]
  %s12 = inlined_call_operand.vmem [shape: f32[1,128], index: 12, kind: input, shape index: {}]
  %s13 = inlined_call_operand.vmem [shape: f32[128,128], index: 13, kind: input, shape index: {}]
  %s14 = inlined_call_operand.vmem [shape: f32[1,128], index: 14, kind: input, shape index: {}]
  %s15 = inlined_call_operand.vmem [shape: f32[128,128], index: 15, kind: input, shape index: {}]
  %s16 = inlined_call_operand.vmem [shape: f32[1,128], index: 16, kind: input, shape index: {}]
  %s17 = inlined_call_operand.vmem [shape: f32[128,128], index: 17, kind: input, shape index: {}]
  %s18 = inlined_call_operand.vmem [shape: f32[1,128], index: 18, kind: input, shape index: {}]
  %s19 = inlined_call_operand.vmem [shape: f32[16,128], index: 19, kind: output, shape index: {0}]
  %s20 = inlined_call_operand.vmem [shape: f32[64,128], index: 20, kind: output, shape index: {1}]
  %21 = xla_tuple %s19, %s20
  %s22 = sld [smem:[#allocation0]]
  $region94: #{mgcn_forward.4} parent=0
    _
  %s24 = ssub.s32 1, %s22
  %s25 = scalar_select 0, %s24, %s22
  // Predicated region
  $region2: #{mgcn_forward.4} parent=0 // pred_check
    _
  $region3: #{mgcn_forward.4} parent=0 // pred_check_branch
    %27 = sbr.rel (0) target = $region5
  $region4: #{mgcn_forward.4} parent=0 // pred_region
    _
  $region5: #{mgcn_forward.4} parent=0 // pred_fallthru
    _
  // Predicated region
  $region6: #{mgcn_forward.4} parent=0 // pred_check
    _
  $region7: #{mgcn_forward.4} parent=0 // pred_check_branch
    %29 = sbr.rel (0) target = $region9
  $region8: #{mgcn_forward.4} parent=0 // pred_region
    _
  $region9: #{mgcn_forward.4} parent=0 // pred_fallthru
    _
  // Predicated region
  $region10: #{mgcn_forward.4} parent=0 // pred_check
    _
  $region11: #{mgcn_forward.4} parent=0 // pred_check_branch
    %31 = sbr.rel (0) target = $region13
  $region12: #{mgcn_forward.4} parent=0 // pred_region
    _
  $region13: #{mgcn_forward.4} parent=0 // pred_fallthru
    _
  // Predicated region
  $region14: #{mgcn_forward.4} parent=0 // pred_check
    _
  $region15: #{mgcn_forward.4} parent=0 // pred_check_branch
    %33 = sbr.rel (0) target = $region17
  $region16: #{mgcn_forward.4} parent=0 // pred_region
    _
  $region17: #{mgcn_forward.4} parent=0 // pred_fallthru
    _
  // Predicated region
  $region18: #{mgcn_forward.4} parent=0 // pred_check
    _
  $region19: #{mgcn_forward.4} parent=0 // pred_check_branch
    %35 = sbr.rel (0) target = $region21
  $region20: #{mgcn_forward.4} parent=0 // pred_region
    _
  $region21: #{mgcn_forward.4} parent=0 // pred_fallthru
    _
  // Predicated region
  $region22: #{mgcn_forward.4} parent=0 // pred_check
    _
  $region23: #{mgcn_forward.4} parent=0 // pred_check_branch
    %37 = sbr.rel (0) target = $region25
  $region24: #{mgcn_forward.4} parent=0 // pred_region
    _
  $region25: #{mgcn_forward.4} parent=0 // pred_fallthru
    _
  // Predicated region
  $region26: #{mgcn_forward.4} parent=0 // pred_check
    _
  $region27: #{mgcn_forward.4} parent=0 // pred_check_branch
    %39 = sbr.rel (0) target = $region29
  $region28: #{mgcn_forward.4} parent=0 // pred_region
    _
  $region29: #{mgcn_forward.4} parent=0 // pred_fallthru
    _
  // Predicated region
  $region30: #{mgcn_forward.4} parent=0 // pred_check
    _
  $region31: #{mgcn_forward.4} parent=0 // pred_check_branch
    %41 = sbr.rel (0) target = $region33
  $region32: #{mgcn_forward.4} parent=0 // pred_region
    _
  $region33: #{mgcn_forward.4} parent=0 // pred_fallthru
    _
  // Predicated region
  $region34: #{mgcn_forward.4} parent=0 // pred_check
    _
  $region35: #{mgcn_forward.4} parent=0 // pred_check_branch
    %43 = sbr.rel (0) target = $region37
  $region36: #{mgcn_forward.4} parent=0 // pred_region
    _
  $region37: #{mgcn_forward.4} parent=0 // pred_fallthru
    _
  // Predicated region
  $region38: #{mgcn_forward.4} parent=0 // pred_check
    _
  $region39: #{mgcn_forward.4} parent=0 // pred_check_branch
    %45 = sbr.rel (0) target = $region41
  $region40: #{mgcn_forward.4} parent=0 // pred_region
    _
  $region41: #{mgcn_forward.4} parent=0 // pred_fallthru
    _
  // Predicated region
  $region42: #{mgcn_forward.4} parent=0 // pred_check
    _
  $region43: #{mgcn_forward.4} parent=0 // pred_check_branch
    %47 = sbr.rel (0) target = $region45
  $region44: #{mgcn_forward.4} parent=0 // pred_region
    _
  $region45: #{mgcn_forward.4} parent=0 // pred_fallthru
    _
  // Predicated region
  $region46: #{mgcn_forward.4} parent=0 // pred_check
    _
  $region47: #{mgcn_forward.4} parent=0 // pred_check_branch
    %49 = sbr.rel (0) target = $region49
  $region48: #{mgcn_forward.4} parent=0 // pred_region
    _
  $region49: #{mgcn_forward.4} parent=0 // pred_fallthru
    _
  // Predicated region
  $region50: #{mgcn_forward.4} parent=0 // pred_check
    _
  $region51: #{mgcn_forward.4} parent=0 // pred_check_branch
    %51 = sbr.rel (0) target = $region53
  $region52: #{mgcn_forward.4} parent=0 // pred_region
    _
  $region53: #{mgcn_forward.4} parent=0 // pred_fallthru
    _
  // Predicated region
  $region54: #{mgcn_forward.4} parent=0 // pred_check
    _
  $region55: #{mgcn_forward.4} parent=0 // pred_check_branch
    %53 = sbr.rel (0) target = $region57
  $region56: #{mgcn_forward.4} parent=0 // pred_region
    _
  $region57: #{mgcn_forward.4} parent=0 // pred_fallthru
    _
  // Predicated region
  $region58: #{mgcn_forward.4} parent=0 // pred_check
    _
  $region59: #{mgcn_forward.4} parent=0 // pred_check_branch
    %55 = sbr.rel (0) target = $region61
  $region60: #{mgcn_forward.4} parent=0 // pred_region
    _
  $region61: #{mgcn_forward.4} parent=0 // pred_fallthru
    _
  // Predicated region
  $region62: #{mgcn_forward.4} parent=0 // pred_check
    _
  $region63: #{mgcn_forward.4} parent=0 // pred_check_branch
    %57 = sbr.rel (0) target = $region65
  $region64: #{mgcn_forward.4} parent=0 // pred_region
    _
  $region65: #{mgcn_forward.4} parent=0 // pred_fallthru
    _
  // Predicated region
  $region66: #{mgcn_forward.4} parent=0 // pred_check
    _
  $region67: #{mgcn_forward.4} parent=0 // pred_check_branch
    %59 = sbr.rel (0) target = $region69
  $region68: #{mgcn_forward.4} parent=0 // pred_region
    _
  $region69: #{mgcn_forward.4} parent=0 // pred_fallthru
    _
  // Predicated region
  $region70: #{mgcn_forward.4} parent=0 // pred_check
    _
  $region71: #{mgcn_forward.4} parent=0 // pred_check_branch
    %61 = sbr.rel (0) target = $region73
  $region72: #{mgcn_forward.4} parent=0 // pred_region
    _
  $region73: #{mgcn_forward.4} parent=0 // pred_fallthru
    _
  // Predicated region
  $region74: #{mgcn_forward.4} parent=0 // pred_check
    _
  $region75: #{mgcn_forward.4} parent=0 // pred_check_branch
    %63 = sbr.rel (0) target = $region77
  $region76: #{mgcn_forward.4} parent=0 // pred_region
    _
  $region77: #{mgcn_forward.4} parent=0 // pred_fallthru
    _
  %v64 = vld [vmem:[%s0] sm:$0xff]
  %v65 = vld [vmem:[%s0 + $0x8] sm:$0xff]
  %v66 = vld [vmem:[%s5] sm:$0xff]
  %v67 = vld [vmem:[%s5 + $0x8] sm:$0xff]
  %v68 = vld [vmem:[%s5 + $0x10] sm:$0xff]
  %v69 = vld [vmem:[%s5 + $0x18] sm:$0xff]
  %v70 = vld [vmem:[%s5 + $0x20] sm:$0xff]
  %v71 = vld [vmem:[%s5 + $0x28] sm:$0xff]
  %v72 = vld [vmem:[%s5 + $0x30] sm:$0xff]
  %v73 = vld [vmem:[%s5 + $0x38] sm:$0xff]
  %v74 = vld [vmem:[%s5 + $0x40] sm:$0xff]
  %v75 = vld [vmem:[%s5 + $0x48] sm:$0xff]
  %v76 = vld [vmem:[%s5 + $0x50] sm:$0xff]
  %v77 = vld [vmem:[%s5 + $0x58] sm:$0xff]
  %v78 = vld [vmem:[%s5 + $0x60] sm:$0xff]
  %v79 = vld [vmem:[%s5 + $0x68] sm:$0xff]
  %v80 = vld [vmem:[%s5 + $0x70] sm:$0xff]
  %v81 = vld [vmem:[%s5 + $0x78] sm:$0xff]
  %v82 = vld [vmem:[%s6] sm:$0x1]
  %v84 = vlaneseq
  %v85 = vshrl.u32 %v84, 7
  %v86 = vsub.s32 0, %v85
  %v87 = vrot.slane %v82, %v86
  %89 = vmatprep.subr.mxu0 0.0
  %90 = vmatpush1.msra.mxu0 %v66
  %91 = vmatprep.subr.mxu0 0.0
  %92 = vmatpush1.msra.mxu0 %v67
  %93 = vmatprep.subr.mxu0 0.0
  %94 = vmatpush1.msra.mxu0 %v68
  %95 = vmatprep.subr.mxu0 0.0
  %96 = vmatpush1.msra.mxu0 %v69
  %97 = vmatprep.subr.mxu0 0.0
  %98 = vmatpush1.msra.mxu0 %v70
  %99 = vmatprep.subr.mxu0 0.0
  %100 = vmatpush1.msra.mxu0 %v71
  %101 = vmatprep.subr.mxu0 0.0
  %102 = vmatpush1.msra.mxu0 %v72
  %103 = vmatprep.subr.mxu0 0.0
  %104 = vmatpush1.msra.mxu0 %v73
  %105 = vmatprep.subr.mxu0 0.0
  %106 = vmatpush1.msra.mxu0 %v74
  %107 = vmatprep.subr.mxu0 0.0
  %108 = vmatpush1.msra.mxu0 %v75
  %109 = vmatprep.subr.mxu0 0.0
  %110 = vmatpush1.msra.mxu0 %v76
  %111 = vmatprep.subr.mxu0 0.0
  %112 = vmatpush1.msra.mxu0 %v77
  %113 = vmatprep.subr.mxu0 0.0
  %114 = vmatpush1.msra.mxu0 %v78
  %115 = vmatprep.subr.mxu0 0.0
  %116 = vmatpush1.msra.mxu0 %v79
  %117 = vmatprep.subr.mxu0 0.0
  %118 = vmatpush1.msra.mxu0 %v80
  %119 = vmatprep.subr.mxu0 0.0
  %120 = vmatpush1.msra.mxu0 %v81
  %121 = vmatprep.subr.mxu0 0.0
  %122 = vmatpush1.msra.mxu0 0.0
  %123 = vmatprep.subr.mxu0 0.0
  %124 = vmatpush1.msra.mxu0 0.0
  %125 = vmatprep.subr.mxu0 0.0
  %126 = vmatpush1.msra.mxu0 0.0
  %127 = vmatprep.subr.mxu0 0.0
  %128 = vmatpush1.msra.mxu0 0.0
  %129 = vmatprep.subr.mxu0 0.0
  %130 = vmatpush1.msra.mxu0 0.0
  %131 = vmatprep.subr.mxu0 0.0
  %132 = vmatpush1.msra.mxu0 0.0
  %133 = vmatprep.subr.mxu0 0.0
  %134 = vmatpush1.msra.mxu0 0.0
  %135 = vmatprep.subr.mxu0 0.0
  %136 = vmatpush1.msra.mxu0 0.0
  %137 = vmatprep.subr.mxu0 0.0
  %138 = vmatpush1.msra.mxu0 0.0
  %139 = vmatprep.subr.mxu0 0.0
  %140 = vmatpush1.msra.mxu0 0.0
  %141 = vmatprep.subr.mxu0 0.0
  %142 = vmatpush1.msra.mxu0 0.0
  %143 = vmatprep.subr.mxu0 0.0
  %144 = vmatpush1.msra.mxu0 0.0
  %145 = vmatprep.subr.mxu0 0.0
  %146 = vmatpush1.msra.mxu0 0.0
  %147 = vmatprep.subr.mxu0 0.0
  %148 = vmatpush1.msra.mxu0 0.0
  %149 = vmatprep.subr.mxu0 0.0
  %150 = vmatpush1.msra.mxu0 0.0
  %151 = vmatprep.subr.mxu0 0.0
  %152 = vmatpush1.msra.mxu0 0.0
  %153 = vmatprep.mubr.f32.mxu0 0.0
  %154 = vmatmul.mubr.f32.gmra.mrb[0].mxu0 %v64
  %v155 = vpop.f32.mrb[0].mxu0
  %v156 = vadd.f32 %v87, %v155
  %v157 = vpop.f32.mrb[0].mxu0
  %158 = vmatprep.mubr.f32.mxu0 0.0
  %159 = vmatmul.mubr.f32.gmra.mrb[0].mxu0 %v65
  %v160 = vpop.f32.mrb[0].mxu0
  %v161 = vadd.f32 %v87, %v160
  %v162 = vpop.f32.mrb[0].mxu0
  %163 = vdwg.mxu0
  %v164 = vld [vmem:[%s1] sm:$0xff]
  %v165 = vld [vmem:[%s1 + $0x8] sm:$0xff]
  %v166 = vld [vmem:[%s1 + $0x10] sm:$0xff]
  %v167 = vld [vmem:[%s1 + $0x18] sm:$0xff]
  %v168 = vld [vmem:[%s1 + $0x20] sm:$0xff]
  %v169 = vld [vmem:[%s1 + $0x28] sm:$0xff]
  %v170 = vld [vmem:[%s1 + $0x30] sm:$0xff]
  %v171 = vld [vmem:[%s1 + $0x38] sm:$0xff]
  %v172 = vld [vmem:[%s7] sm:$0xff]
  %v173 = vld [vmem:[%s7 + $0x8] sm:$0xff]
  %v174 = vld [vmem:[%s7 + $0x10] sm:$0xff]
  %v175 = vld [vmem:[%s7 + $0x18] sm:$0xff]
  %v176 = vld [vmem:[%s7 + $0x20] sm:$0xff]
  %v177 = vld [vmem:[%s7 + $0x28] sm:$0xff]
  %v178 = vld [vmem:[%s7 + $0x30] sm:$0xff]
  %v179 = vld [vmem:[%s7 + $0x38] sm:$0xff]
  %v180 = vld [vmem:[%s7 + $0x40] sm:$0xff]
  %v181 = vld [vmem:[%s7 + $0x48] sm:$0xff]
  %v182 = vld [vmem:[%s7 + $0x50] sm:$0xff]
  %v183 = vld [vmem:[%s7 + $0x58] sm:$0xff]
  %v184 = vld [vmem:[%s7 + $0x60] sm:$0xff]
  %v185 = vld [vmem:[%s7 + $0x68] sm:$0xff]
  %v186 = vld [vmem:[%s7 + $0x70] sm:$0xff]
  %v187 = vld [vmem:[%s7 + $0x78] sm:$0xff]
  %v188 = vld [vmem:[%s8] sm:$0x1]
  %v190 = vlaneseq
  %v191 = vshrl.u32 %v190, 7
  %v192 = vsub.s32 0, %v191
  %v193 = vrot.slane %v188, %v192
  %195 = vmatprep.subr.mxu0 0.0
  %196 = vmatpush1.msra.mxu0 %v172
  %197 = vmatprep.subr.mxu0 0.0
  %198 = vmatpush1.msra.mxu0 %v173
  %199 = vmatprep.subr.mxu0 0.0
  %200 = vmatpush1.msra.mxu0 %v174
  %201 = vmatprep.subr.mxu0 0.0
  %202 = vmatpush1.msra.mxu0 %v175
  %203 = vmatprep.subr.mxu0 0.0
  %204 = vmatpush1.msra.mxu0 %v176
  %205 = vmatprep.subr.mxu0 0.0
  %206 = vmatpush1.msra.mxu0 %v177
  %207 = vmatprep.subr.mxu0 0.0
  %208 = vmatpush1.msra.mxu0 %v178
  %209 = vmatprep.subr.mxu0 0.0
  %210 = vmatpush1.msra.mxu0 %v179
  %211 = vmatprep.subr.mxu0 0.0
  %212 = vmatpush1.msra.mxu0 %v180
  %213 = vmatprep.subr.mxu0 0.0
  %214 = vmatpush1.msra.mxu0 %v181
  %215 = vmatprep.subr.mxu0 0.0
  %216 = vmatpush1.msra.mxu0 %v182
  %217 = vmatprep.subr.mxu0 0.0
  %218 = vmatpush1.msra.mxu0 %v183
  %219 = vmatprep.subr.mxu0 0.0
  %220 = vmatpush1.msra.mxu0 %v184
  %221 = vmatprep.subr.mxu0 0.0
  %222 = vmatpush1.msra.mxu0 %v185
  %223 = vmatprep.subr.mxu0 0.0
  %224 = vmatpush1.msra.mxu0 %v186
  %225 = vmatprep.subr.mxu0 0.0
  %226 = vmatpush1.msra.mxu0 %v187
  %227 = vmatprep.subr.mxu0 0.0
  %228 = vmatpush1.msra.mxu0 0.0
  %229 = vmatprep.subr.mxu0 0.0
  %230 = vmatpush1.msra.mxu0 0.0
  %231 = vmatprep.subr.mxu0 0.0
  %232 = vmatpush1.msra.mxu0 0.0
  %233 = vmatprep.subr.mxu0 0.0
  %234 = vmatpush1.msra.mxu0 0.0
  %235 = vmatprep.subr.mxu0 0.0
  %236 = vmatpush1.msra.mxu0 0.0
  %237 = vmatprep.subr.mxu0 0.0
  %238 = vmatpush1.msra.mxu0 0.0
  %239 = vmatprep.subr.mxu0 0.0
  %240 = vmatpush1.msra.mxu0 0.0
  %241 = vmatprep.subr.mxu0 0.0
  %242 = vmatpush1.msra.mxu0 0.0
  %243 = vmatprep.subr.mxu0 0.0
  %244 = vmatpush1.msra.mxu0 0.0
  %245 = vmatprep.subr.mxu0 0.0
  %246 = vmatpush1.msra.mxu0 0.0
  %247 = vmatprep.subr.mxu0 0.0
  %248 = vmatpush1.msra.mxu0 0.0
  %249 = vmatprep.subr.mxu0 0.0
  %250 = vmatpush1.msra.mxu0 0.0
  %251 = vmatprep.subr.mxu0 0.0
  %252 = vmatpush1.msra.mxu0 0.0
  %253 = vmatprep.subr.mxu0 0.0
  %254 = vmatpush1.msra.mxu0 0.0
  %255 = vmatprep.subr.mxu0 0.0
  %256 = vmatpush1.msra.mxu0 0.0
  %257 = vmatprep.subr.mxu0 0.0
  %258 = vmatpush1.msra.mxu0 0.0
  %259 = vmatprep.mubr.f32.mxu0 0.0
  %260 = vmatmul.mubr.f32.gmra.mrb[0].mxu0 %v164
  %v261 = vpop.f32.mrb[0].mxu0
  %v262 = vadd.f32 %v193, %v261
  %v263 = vpop.f32.mrb[0].mxu0
  %264 = vmatprep.mubr.f32.mxu0 0.0
  %265 = vmatmul.mubr.f32.gmra.mrb[0].mxu0 %v165
  %v266 = vpop.f32.mrb[0].mxu0
  %v267 = vadd.f32 %v193, %v266
  %v268 = vpop.f32.mrb[0].mxu0
  %269 = vmatprep.mubr.f32.mxu0 0.0
  %270 = vmatmul.mubr.f32.gmra.mrb[0].mxu0 %v166
  %v271 = vpop.f32.mrb[0].mxu0
  %v272 = vadd.f32 %v193, %v271
  %v273 = vpop.f32.mrb[0].mxu0
  %274 = vmatprep.mubr.f32.mxu0 0.0
  %275 = vmatmul.mubr.f32.gmra.mrb[0].mxu0 %v167
  %v276 = vpop.f32.mrb[0].mxu0
  %v277 = vadd.f32 %v193, %v276
  %v278 = vpop.f32.mrb[0].mxu0
  %279 = vmatprep.mubr.f32.mxu0 0.0
  %280 = vmatmul.mubr.f32.gmra.mrb[0].mxu0 %v168
  %v281 = vpop.f32.mrb[0].mxu0
  %v282 = vadd.f32 %v193, %v281
  %v283 = vpop.f32.mrb[0].mxu0
  %284 = vmatprep.mubr.f32.mxu0 0.0
  %285 = vmatmul.mubr.f32.gmra.mrb[0].mxu0 %v169
  %v286 = vpop.f32.mrb[0].mxu0
  %v287 = vadd.f32 %v193, %v286
  %v288 = vpop.f32.mrb[0].mxu0
  %289 = vmatprep.mubr.f32.mxu0 0.0
  %290 = vmatmul.mubr.f32.gmra.mrb[0].mxu0 %v170
  %v291 = vpop.f32.mrb[0].mxu0
  %v292 = vadd.f32 %v193, %v291
  %v293 = vpop.f32.mrb[0].mxu0
  %294 = vmatprep.mubr.f32.mxu0 0.0
  %295 = vmatmul.mubr.f32.gmra.mrb[0].mxu0 %v171
  %v296 = vpop.f32.mrb[0].mxu0
  %v297 = vadd.f32 %v193, %v296
  %v298 = vpop.f32.mrb[0].mxu0
  %299 = vdwg.mxu0
  %v300 = vmul.f32 %v262, 0.5
  %v301 = vmul.f32 %v267, 0.5
  %v302 = vmul.f32 %v272, 0.5
  %v303 = vmul.f32 %v277, 0.5
  %v304 = vmul.f32 %v282, 0.5
  %v305 = vmul.f32 %v287, 0.5
  %v306 = vmul.f32 %v292, 0.5
  %v307 = vmul.f32 %v297, 0.5
  %v308 = vmin.f32 %v300, 14.0
  %v309 = vmin.f32 %v301, 14.0
  %v310 = vmin.f32 %v302, 14.0
  %v311 = vmin.f32 %v303, 14.0
  %v312 = vmin.f32 %v304, 14.0
  %v313 = vmin.f32 %v305, 14.0
  %v314 = vmin.f32 %v306, 14.0
  %v315 = vmin.f32 %v307, 14.0
  %v316 = vmul.f32 %v308, 1.442695
  %v317 = vpow.pop %v316
  %v318 = vmul.f32 %v309, 1.442695
  %v319 = vpow.pop %v318
  %v320 = vmul.f32 %v310, 1.442695
  %v321 = vpow.pop %v320
  %v322 = vmul.f32 %v311, 1.442695
  %v323 = vpow.pop %v322
  %v324 = vmul.f32 %v312, 1.442695
  %v325 = vpow.pop %v324
  %v326 = vmul.f32 %v313, 1.442695
  %v327 = vpow.pop %v326
  %v328 = vmul.f32 %v314, 1.442695
  %v329 = vpow.pop %v328
  %v330 = vmul.f32 %v315, 1.442695
  %v331 = vpow.pop %v330
  %v332 = vadd.f32 %v317, 1.0
  %v333 = vadd.f32 %v319, 1.0
  %v334 = vadd.f32 %v321, 1.0
  %v335 = vadd.f32 %v323, 1.0
  %v336 = vadd.f32 %v325, 1.0
  %v337 = vadd.f32 %v327, 1.0
  %v338 = vadd.f32 %v329, 1.0
  %v339 = vadd.f32 %v331, 1.0
  %v340 = vlog2.pop %v332
  %v341 = vmul.f32 %v340, 0.6931472
  %v342 = vlog2.pop %v333
  %v343 = vmul.f32 %v342, 0.6931472
  %v344 = vlog2.pop %v334
  %v345 = vmul.f32 %v344, 0.6931472
  %v346 = vlog2.pop %v335
  %v347 = vmul.f32 %v346, 0.6931472
  %v348 = vlog2.pop %v336
  %v349 = vmul.f32 %v348, 0.6931472
  %v350 = vlog2.pop %v337
  %v351 = vmul.f32 %v350, 0.6931472
  %v352 = vlog2.pop %v338
  %v353 = vmul.f32 %v352, 0.6931472
  %v354 = vlog2.pop %v339
  %v355 = vmul.f32 %v354, 0.6931472
  %v356 = vrcp.pop 0.5
  %v357 = vmul.f32 %v341, %v356
  %v358 = vmul.f32 %v343, %v356
  %v359 = vmul.f32 %v345, %v356
  %v360 = vmul.f32 %v347, %v356
  %v361 = vmul.f32 %v349, %v356
  %v362 = vmul.f32 %v351, %v356
  %v363 = vmul.f32 %v353, %v356
  %v364 = vmul.f32 %v355, %v356
  %vm365 = vcmp.gt.f32.partialorder %v300, 14.0
  %vm366 = vcmp.gt.f32.partialorder %v301, 14.0
  %vm367 = vcmp.gt.f32.partialorder %v302, 14.0
  %vm368 = vcmp.gt.f32.partialorder %v303, 14.0
  %vm369 = vcmp.gt.f32.partialorder %v304, 14.0
  %vm370 = vcmp.gt.f32.partialorder %v305, 14.0
  %vm371 = vcmp.gt.f32.partialorder %v306, 14.0
  %vm372 = vcmp.gt.f32.partialorder %v307, 14.0
  %v373 = vsel %vm365, %v262, %v357
  %v374 = vsel %vm366, %v267, %v358
  %v375 = vsel %vm367, %v272, %v359
  %v376 = vsel %vm368, %v277, %v360
  %v377 = vsel %vm369, %v282, %v361
  %v378 = vsel %vm370, %v287, %v362
  %v379 = vsel %vm371, %v292, %v363
  %v380 = vsel %vm372, %v297, %v364
  %v381 = vld [vmem:[%s9] sm:$0xff]
  %v382 = vld [vmem:[%s9 + $0x8] sm:$0xff]
  %v383 = vld [vmem:[%s9 + $0x10] sm:$0xff]
  %v384 = vld [vmem:[%s9 + $0x18] sm:$0xff]
  %v385 = vld [vmem:[%s9 + $0x20] sm:$0xff]
  %v386 = vld [vmem:[%s9 + $0x28] sm:$0xff]
  %v387 = vld [vmem:[%s9 + $0x30] sm:$0xff]
  %v388 = vld [vmem:[%s9 + $0x38] sm:$0xff]
  %v389 = vld [vmem:[%s9 + $0x40] sm:$0xff]
  %v390 = vld [vmem:[%s9 + $0x48] sm:$0xff]
  %v391 = vld [vmem:[%s9 + $0x50] sm:$0xff]
  %v392 = vld [vmem:[%s9 + $0x58] sm:$0xff]
  %v393 = vld [vmem:[%s9 + $0x60] sm:$0xff]
  %v394 = vld [vmem:[%s9 + $0x68] sm:$0xff]
  %v395 = vld [vmem:[%s9 + $0x70] sm:$0xff]
  %v396 = vld [vmem:[%s9 + $0x78] sm:$0xff]
  %v397 = vld [vmem:[%s10] sm:$0x1]
  %v399 = vlaneseq
  %v400 = vshrl.u32 %v399, 7
  %v401 = vsub.s32 0, %v400
  %v402 = vrot.slane %v397, %v401
  %404 = vmatprep.subr.mxu0 0.0
  %405 = vmatpush1.msra.mxu0 %v381
  %406 = vmatprep.subr.mxu0 0.0
  %407 = vmatpush1.msra.mxu0 %v382
  %408 = vmatprep.subr.mxu0 0.0
  %409 = vmatpush1.msra.mxu0 %v383
  %410 = vmatprep.subr.mxu0 0.0
  %411 = vmatpush1.msra.mxu0 %v384
  %412 = vmatprep.subr.mxu0 0.0
  %413 = vmatpush1.msra.mxu0 %v385
  %414 = vmatprep.subr.mxu0 0.0
  %415 = vmatpush1.msra.mxu0 %v386
  %416 = vmatprep.subr.mxu0 0.0
  %417 = vmatpush1.msra.mxu0 %v387
  %418 = vmatprep.subr.mxu0 0.0
  %419 = vmatpush1.msra.mxu0 %v388
  %420 = vmatprep.subr.mxu0 0.0
  %421 = vmatpush1.msra.mxu0 %v389
  %422 = vmatprep.subr.mxu0 0.0
  %423 = vmatpush1.msra.mxu0 %v390
  %424 = vmatprep.subr.mxu0 0.0
  %425 = vmatpush1.msra.mxu0 %v391
  %426 = vmatprep.subr.mxu0 0.0
  %427 = vmatpush1.msra.mxu0 %v392
  %428 = vmatprep.subr.mxu0 0.0
  %429 = vmatpush1.msra.mxu0 %v393
  %430 = vmatprep.subr.mxu0 0.0
  %431 = vmatpush1.msra.mxu0 %v394
  %432 = vmatprep.subr.mxu0 0.0
  %433 = vmatpush1.msra.mxu0 %v395
  %434 = vmatprep.subr.mxu0 0.0
  %435 = vmatpush1.msra.mxu0 %v396
  %436 = vmatprep.subr.mxu0 0.0
  %437 = vmatpush1.msra.mxu0 0.0
  %438 = vmatprep.subr.mxu0 0.0
  %439 = vmatpush1.msra.mxu0 0.0
  %440 = vmatprep.subr.mxu0 0.0
  %441 = vmatpush1.msra.mxu0 0.0
  %442 = vmatprep.subr.mxu0 0.0
  %443 = vmatpush1.msra.mxu0 0.0
  %444 = vmatprep.subr.mxu0 0.0
  %445 = vmatpush1.msra.mxu0 0.0
  %446 = vmatprep.subr.mxu0 0.0
  %447 = vmatpush1.msra.mxu0 0.0
  %448 = vmatprep.subr.mxu0 0.0
  %449 = vmatpush1.msra.mxu0 0.0
  %450 = vmatprep.subr.mxu0 0.0
  %451 = vmatpush1.msra.mxu0 0.0
  %452 = vmatprep.subr.mxu0 0.0
  %453 = vmatpush1.msra.mxu0 0.0
  %454 = vmatprep.subr.mxu0 0.0
  %455 = vmatpush1.msra.mxu0 0.0
  %456 = vmatprep.subr.mxu0 0.0
  %457 = vmatpush1.msra.mxu0 0.0
  %458 = vmatprep.subr.mxu0 0.0
  %459 = vmatpush1.msra.mxu0 0.0
  %460 = vmatprep.subr.mxu0 0.0
  %461 = vmatpush1.msra.mxu0 0.0
  %462 = vmatprep.subr.mxu0 0.0
  %463 = vmatpush1.msra.mxu0 0.0
  %464 = vmatprep.subr.mxu0 0.0
  %465 = vmatpush1.msra.mxu0 0.0
  %466 = vmatprep.subr.mxu0 0.0
  %467 = vmatpush1.msra.mxu0 0.0
  %468 = vmatprep.mubr.f32.mxu0 0.0
  %469 = vmatmul.mubr.f32.gmra.mrb[0].mxu0 %v373
  %v470 = vpop.f32.mrb[0].mxu0
  %v471 = vadd.f32 %v402, %v470
  %v472 = vpop.f32.mrb[0].mxu0
  %473 = vmatprep.mubr.f32.mxu0 0.0
  %474 = vmatmul.mubr.f32.gmra.mrb[0].mxu0 %v374
  %v475 = vpop.f32.mrb[0].mxu0
  %v476 = vadd.f32 %v402, %v475
  %v477 = vpop.f32.mrb[0].mxu0
  %478 = vmatprep.mubr.f32.mxu0 0.0
  %479 = vmatmul.mubr.f32.gmra.mrb[0].mxu0 %v375
  %v480 = vpop.f32.mrb[0].mxu0
  %v481 = vadd.f32 %v402, %v480
  %v482 = vpop.f32.mrb[0].mxu0
  %483 = vmatprep.mubr.f32.mxu0 0.0
  %484 = vmatmul.mubr.f32.gmra.mrb[0].mxu0 %v376
  %v485 = vpop.f32.mrb[0].mxu0
  %v486 = vadd.f32 %v402, %v485
  %v487 = vpop.f32.mrb[0].mxu0
  %488 = vmatprep.mubr.f32.mxu0 0.0
  %489 = vmatmul.mubr.f32.gmra.mrb[0].mxu0 %v377
  %v490 = vpop.f32.mrb[0].mxu0
  %v491 = vadd.f32 %v402, %v490
  %v492 = vpop.f32.mrb[0].mxu0
  %493 = vmatprep.mubr.f32.mxu0 0.0
  %494 = vmatmul.mubr.f32.gmra.mrb[0].mxu0 %v378
  %v495 = vpop.f32.mrb[0].mxu0
  %v496 = vadd.f32 %v402, %v495
  %v497 = vpop.f32.mrb[0].mxu0
  %498 = vmatprep.mubr.f32.mxu0 0.0
  %499 = vmatmul.mubr.f32.gmra.mrb[0].mxu0 %v379
  %v500 = vpop.f32.mrb[0].mxu0
  %v501 = vadd.f32 %v402, %v500
  %v502 = vpop.f32.mrb[0].mxu0
  %503 = vmatprep.mubr.f32.mxu0 0.0
  %504 = vmatmul.mubr.f32.gmra.mrb[0].mxu0 %v380
  %v505 = vpop.f32.mrb[0].mxu0
  %v506 = vadd.f32 %v402, %v505
  %v507 = vpop.f32.mrb[0].mxu0
  %508 = vdwg.mxu0
  %v509 = vld [vmem:[%s2] sm:$0xff]
  %v510 = vld [vmem:[%s2 + $0x8] sm:$0xff]
  %v511 = vld [vmem:[%s2 + $0x10] sm:$0xff]
  %v512 = vld [vmem:[%s2 + $0x18] sm:$0xff]
  %v513 = vld [vmem:[%s2 + $0x20] sm:$0xff]
  %v514 = vld [vmem:[%s2 + $0x28] sm:$0xff]
  %v515 = vld [vmem:[%s2 + $0x30] sm:$0xff]
  %v516 = vld [vmem:[%s2 + $0x38] sm:$0xff]
  %v517 = vld [vmem:[%s11] sm:$0xff]
  %v518 = vld [vmem:[%s11 + $0x8] sm:$0xff]
  %v519 = vld [vmem:[%s11 + $0x10] sm:$0xff]
  %v520 = vld [vmem:[%s11 + $0x18] sm:$0xff]
  %v521 = vld [vmem:[%s11 + $0x20] sm:$0xff]
  %v522 = vld [vmem:[%s11 + $0x28] sm:$0xff]
  %v523 = vld [vmem:[%s11 + $0x30] sm:$0xff]
  %v524 = vld [vmem:[%s11 + $0x38] sm:$0xff]
  %v525 = vld [vmem:[%s11 + $0x40] sm:$0xff]
  %v526 = vld [vmem:[%s11 + $0x48] sm:$0xff]
  %v527 = vld [vmem:[%s11 + $0x50] sm:$0xff]
  %v528 = vld [vmem:[%s11 + $0x58] sm:$0xff]
  %v529 = vld [vmem:[%s11 + $0x60] sm:$0xff]
  %v530 = vld [vmem:[%s11 + $0x68] sm:$0xff]
  %v531 = vld [vmem:[%s11 + $0x70] sm:$0xff]
  %v532 = vld [vmem:[%s11 + $0x78] sm:$0xff]
  %v533 = vld [vmem:[%s12] sm:$0x1]
  %v535 = vlaneseq
  %v536 = vshrl.u32 %v535, 7
  %v537 = vsub.s32 0, %v536
  %v538 = vrot.slane %v533, %v537
  %540 = vmatprep.subr.mxu0 0.0
  %541 = vmatpush1.msra.mxu0 %v517
  %542 = vmatprep.subr.mxu0 0.0
  %543 = vmatpush1.msra.mxu0 %v518
  %544 = vmatprep.subr.mxu0 0.0
  %545 = vmatpush1.msra.mxu0 %v519
  %546 = vmatprep.subr.mxu0 0.0
  %547 = vmatpush1.msra.mxu0 %v520
  %548 = vmatprep.subr.mxu0 0.0
  %549 = vmatpush1.msra.mxu0 %v521
  %550 = vmatprep.subr.mxu0 0.0
  %551 = vmatpush1.msra.mxu0 %v522
  %552 = vmatprep.subr.mxu0 0.0
  %553 = vmatpush1.msra.mxu0 %v523
  %554 = vmatprep.subr.mxu0 0.0
  %555 = vmatpush1.msra.mxu0 %v524
  %556 = vmatprep.subr.mxu0 0.0
  %557 = vmatpush1.msra.mxu0 %v525
  %558 = vmatprep.subr.mxu0 0.0
  %559 = vmatpush1.msra.mxu0 %v526
  %560 = vmatprep.subr.mxu0 0.0
  %561 = vmatpush1.msra.mxu0 %v527
  %562 = vmatprep.subr.mxu0 0.0
  %563 = vmatpush1.msra.mxu0 %v528
  %564 = vmatprep.subr.mxu0 0.0
  %565 = vmatpush1.msra.mxu0 %v529
  %566 = vmatprep.subr.mxu0 0.0
  %567 = vmatpush1.msra.mxu0 %v530
  %568 = vmatprep.subr.mxu0 0.0
  %569 = vmatpush1.msra.mxu0 %v531
  %570 = vmatprep.subr.mxu0 0.0
  %571 = vmatpush1.msra.mxu0 %v532
  %572 = vmatprep.subr.mxu0 0.0
  %573 = vmatpush1.msra.mxu0 0.0
  %574 = vmatprep.subr.mxu0 0.0
  %575 = vmatpush1.msra.mxu0 0.0
  %576 = vmatprep.subr.mxu0 0.0
  %577 = vmatpush1.msra.mxu0 0.0
  %578 = vmatprep.subr.mxu0 0.0
  %579 = vmatpush1.msra.mxu0 0.0
  %580 = vmatprep.subr.mxu0 0.0
  %581 = vmatpush1.msra.mxu0 0.0
  %582 = vmatprep.subr.mxu0 0.0
  %583 = vmatpush1.msra.mxu0 0.0
  %584 = vmatprep.subr.mxu0 0.0
  %585 = vmatpush1.msra.mxu0 0.0
  %586 = vmatprep.subr.mxu0 0.0
  %587 = vmatpush1.msra.mxu0 0.0
  %588 = vmatprep.subr.mxu0 0.0
  %589 = vmatpush1.msra.mxu0 0.0
  %590 = vmatprep.subr.mxu0 0.0
  %591 = vmatpush1.msra.mxu0 0.0
  %592 = vmatprep.subr.mxu0 0.0
  %593 = vmatpush1.msra.mxu0 0.0
  %594 = vmatprep.subr.mxu0 0.0
  %595 = vmatpush1.msra.mxu0 0.0
  %596 = vmatprep.subr.mxu0 0.0
  %597 = vmatpush1.msra.mxu0 0.0
  %598 = vmatprep.subr.mxu0 0.0
  %599 = vmatpush1.msra.mxu0 0.0
  %600 = vmatprep.subr.mxu0 0.0
  %601 = vmatpush1.msra.mxu0 0.0
  %602 = vmatprep.subr.mxu0 0.0
  %603 = vmatpush1.msra.mxu0 0.0
  %604 = vmatprep.mubr.f32.mxu0 0.0
  %605 = vmatmul.mubr.f32.gmra.mrb[0].mxu0 %v509
  %v606 = vpop.f32.mrb[0].mxu0
  %v607 = vadd.f32 %v538, %v606
  %v608 = vpop.f32.mrb[0].mxu0
  %609 = vmatprep.mubr.f32.mxu0 0.0
  %610 = vmatmul.mubr.f32.gmra.mrb[0].mxu0 %v510
  %v611 = vpop.f32.mrb[0].mxu0
  %v612 = vadd.f32 %v538, %v611
  %v613 = vpop.f32.mrb[0].mxu0
  %614 = vmatprep.mubr.f32.mxu0 0.0
  %615 = vmatmul.mubr.f32.gmra.mrb[0].mxu0 %v511
  %v616 = vpop.f32.mrb[0].mxu0
  %v617 = vadd.f32 %v538, %v616
  %v618 = vpop.f32.mrb[0].mxu0
  %619 = vmatprep.mubr.f32.mxu0 0.0
  %620 = vmatmul.mubr.f32.gmra.mrb[0].mxu0 %v512
  %v621 = vpop.f32.mrb[0].mxu0
  %v622 = vadd.f32 %v538, %v621
  %v623 = vpop.f32.mrb[0].mxu0
  %624 = vmatprep.mubr.f32.mxu0 0.0
  %625 = vmatmul.mubr.f32.gmra.mrb[0].mxu0 %v513
  %v626 = vpop.f32.mrb[0].mxu0
  %v627 = vadd.f32 %v538, %v626
  %v628 = vpop.f32.mrb[0].mxu0
  %629 = vmatprep.mubr.f32.mxu0 0.0
  %630 = vmatmul.mubr.f32.gmra.mrb[0].mxu0 %v514
  %v631 = vpop.f32.mrb[0].mxu0
  %v632 = vadd.f32 %v538, %v631
  %v633 = vpop.f32.mrb[0].mxu0
  %634 = vmatprep.mubr.f32.mxu0 0.0
  %635 = vmatmul.mubr.f32.gmra.mrb[0].mxu0 %v515
  %v636 = vpop.f32.mrb[0].mxu0
  %v637 = vadd.f32 %v538, %v636
  %v638 = vpop.f32.mrb[0].mxu0
  %639 = vmatprep.mubr.f32.mxu0 0.0
  %640 = vmatmul.mubr.f32.gmra.mrb[0].mxu0 %v516
  %v641 = vpop.f32.mrb[0].mxu0
  %v642 = vadd.f32 %v538, %v641
  %v643 = vpop.f32.mrb[0].mxu0
  %644 = vdwg.mxu0
  %v645 = vld [vmem:[%s3] sm:$0xf]
  %v646 = vld [vmem:[%s3 + $0x4] sm:$0xf]
  %v647 = vld [vmem:[%s3 + $0x8] sm:$0xf]
  %v648 = vld [vmem:[%s3 + $0xc] sm:$0xf]
  %v649 = vld [vmem:[%s3 + $0x10] sm:$0xf]
  %v650 = vld [vmem:[%s3 + $0x14] sm:$0xf]
  %v651 = vld [vmem:[%s3 + $0x18] sm:$0xf]
  %v652 = vld [vmem:[%s3 + $0x1c] sm:$0xf]
  %v653 = vunpack.c.l.bf16 %v645
  %v654 = vunpack.c.l.bf16 %v646
  %v655 = vunpack.c.l.bf16 %v647
  %v656 = vunpack.c.l.bf16 %v648
  %v657 = vunpack.c.l.bf16 %v649
  %v658 = vunpack.c.l.bf16 %v650
  %v659 = vunpack.c.l.bf16 %v651
  %v660 = vunpack.c.l.bf16 %v652
  %vm661 = vcmask 130048
  %v663 = vsel %vm661, %v653, 0
  %v666 = vsel %vm661, %v654, 0
  %v669 = vsel %vm661, %v655, 0
  %v672 = vsel %vm661, %v656, 0
  %v675 = vsel %vm661, %v657, 0
  %v678 = vsel %vm661, %v658, 0
  %v681 = vsel %vm661, %v659, 0
  %v684 = vsel %vm661, %v660, 0
  %686 = vmatprep.subr.mxu0 0.0
  %687 = vmatpush1.msra.mxu0 %v156
  %688 = vmatprep.subr.mxu0 0.0
  %689 = vmatpush1.msra.mxu0 %v161
  %690 = vmatprep.subr.mxu0 0.0
  %691 = vmatpush1.msra.mxu0 0.0
  %692 = vmatprep.subr.mxu0 0.0
  %693 = vmatpush1.msra.mxu0 0.0
  %694 = vmatprep.subr.mxu0 0.0
  %695 = vmatpush1.msra.mxu0 0.0
  %696 = vmatprep.subr.mxu0 0.0
  %697 = vmatpush1.msra.mxu0 0.0
  %698 = vmatprep.subr.mxu0 0.0
  %699 = vmatpush1.msra.mxu0 0.0
  %700 = vmatprep.subr.mxu0 0.0
  %701 = vmatpush1.msra.mxu0 0.0
  %702 = vmatprep.subr.mxu0 0.0
  %703 = vmatpush1.msra.mxu0 0.0
  %704 = vmatprep.subr.mxu0 0.0
  %705 = vmatpush1.msra.mxu0 0.0
  %706 = vmatprep.subr.mxu0 0.0
  %707 = vmatpush1.msra.mxu0 0.0
  %708 = vmatprep.subr.mxu0 0.0
  %709 = vmatpush1.msra.mxu0 0.0
  %710 = vmatprep.subr.mxu0 0.0
  %711 = vmatpush1.msra.mxu0 0.0
  %712 = vmatprep.subr.mxu0 0.0
  %713 = vmatpush1.msra.mxu0 0.0
  %714 = vmatprep.subr.mxu0 0.0
  %715 = vmatpush1.msra.mxu0 0.0
  %716 = vmatprep.subr.mxu0 0.0
  %717 = vmatpush1.msra.mxu0 0.0
  %718 = vmatprep.subr.mxu0 0.0
  %719 = vmatpush1.msra.mxu0 0.0
  %720 = vmatprep.subr.mxu0 0.0
  %721 = vmatpush1.msra.mxu0 0.0
  %722 = vmatprep.subr.mxu0 0.0
  %723 = vmatpush1.msra.mxu0 0.0
  %724 = vmatprep.subr.mxu0 0.0
  %725 = vmatpush1.msra.mxu0 0.0
  %726 = vmatprep.subr.mxu0 0.0
  %727 = vmatpush1.msra.mxu0 0.0
  %728 = vmatprep.subr.mxu0 0.0
  %729 = vmatpush1.msra.mxu0 0.0
  %730 = vmatprep.subr.mxu0 0.0
  %731 = vmatpush1.msra.mxu0 0.0
  %732 = vmatprep.subr.mxu0 0.0
  %733 = vmatpush1.msra.mxu0 0.0
  %734 = vmatprep.subr.mxu0 0.0
  %735 = vmatpush1.msra.mxu0 0.0
  %736 = vmatprep.subr.mxu0 0.0
  %737 = vmatpush1.msra.mxu0 0.0
  %738 = vmatprep.subr.mxu0 0.0
  %739 = vmatpush1.msra.mxu0 0.0
  %740 = vmatprep.subr.mxu0 0.0
  %741 = vmatpush1.msra.mxu0 0.0
  %742 = vmatprep.subr.mxu0 0.0
  %743 = vmatpush1.msra.mxu0 0.0
  %744 = vmatprep.subr.mxu0 0.0
  %745 = vmatpush1.msra.mxu0 0.0
  %746 = vmatprep.subr.mxu0 0.0
  %747 = vmatpush1.msra.mxu0 0.0
  %748 = vmatprep.subr.mxu0 0.0
  %749 = vmatpush1.msra.mxu0 0.0
  %750 = vmatprep.mubr.f32.mxu0 0.0
  %751 = vmatmul.mubr.f32.gmra.mrb[0].mxu0 %v663
  %v752 = vpop.f32.mrb[0].mxu0
  %v753 = vadd.f32 0.0, %v752
  %v754 = vpop.f32.mrb[0].mxu0
  %755 = vmatprep.mubr.f32.mxu0 0.0
  %756 = vmatmul.mubr.f32.gmra.mrb[0].mxu0 %v666
  %v757 = vpop.f32.mrb[0].mxu0
  %v758 = vadd.f32 0.0, %v757
  %v759 = vpop.f32.mrb[0].mxu0
  %760 = vmatprep.mubr.f32.mxu0 0.0
  %761 = vmatmul.mubr.f32.gmra.mrb[0].mxu0 %v669
  %v762 = vpop.f32.mrb[0].mxu0
  %v763 = vadd.f32 0.0, %v762
  %v764 = vpop.f32.mrb[0].mxu0
  %765 = vmatprep.mubr.f32.mxu0 0.0
  %766 = vmatmul.mubr.f32.gmra.mrb[0].mxu0 %v672
  %v767 = vpop.f32.mrb[0].mxu0
  %v768 = vadd.f32 0.0, %v767
  %v769 = vpop.f32.mrb[0].mxu0
  %770 = vmatprep.mubr.f32.mxu0 0.0
  %771 = vmatmul.mubr.f32.gmra.mrb[0].mxu0 %v675
  %v772 = vpop.f32.mrb[0].mxu0
  %v773 = vadd.f32 0.0, %v772
  %v774 = vpop.f32.mrb[0].mxu0
  %775 = vmatprep.mubr.f32.mxu0 0.0
  %776 = vmatmul.mubr.f32.gmra.mrb[0].mxu0 %v678
  %v777 = vpop.f32.mrb[0].mxu0
  %v778 = vadd.f32 0.0, %v777
  %v779 = vpop.f32.mrb[0].mxu0
  %780 = vmatprep.mubr.f32.mxu0 0.0
  %781 = vmatmul.mubr.f32.gmra.mrb[0].mxu0 %v681
  %v782 = vpop.f32.mrb[0].mxu0
  %v783 = vadd.f32 0.0, %v782
  %v784 = vpop.f32.mrb[0].mxu0
  %785 = vmatprep.mubr.f32.mxu0 0.0
  %786 = vmatmul.mubr.f32.gmra.mrb[0].mxu0 %v684
  %v787 = vpop.f32.mrb[0].mxu0
  %v788 = vadd.f32 0.0, %v787
  %v789 = vpop.f32.mrb[0].mxu0
  %790 = vdwg.mxu0
  %v791 = vmul.f32 %v753, %v471
  %v792 = vmul.f32 %v758, %v476
  %v793 = vmul.f32 %v763, %v481
  %v794 = vmul.f32 %v768, %v486
  %v795 = vmul.f32 %v773, %v491
  %v796 = vmul.f32 %v778, %v496
  %v797 = vmul.f32 %v783, %v501
  %v798 = vmul.f32 %v788, %v506
  %v799 = vadd.f32 %v791, %v607
  %v800 = vadd.f32 %v792, %v612
  %v801 = vadd.f32 %v793, %v617
  %v802 = vadd.f32 %v794, %v622
  %v803 = vadd.f32 %v795, %v627
  %v804 = vadd.f32 %v796, %v632
  %v805 = vadd.f32 %v797, %v637
  %v806 = vadd.f32 %v798, %v642
  %v807 = vld [vmem:[%s4] sm:$0xf]
  %v808 = vld [vmem:[%s4 + $0x4] sm:$0xf]
  %v809 = vunpack.c.l.bf16 %v807
  %v810 = vunpack.c.l.bf16 %v808
  %vm811 = vcmask 523264
  %v813 = vsel %vm811, %v809, 0
  %v816 = vsel %vm811, %v810, 0
  %818 = vmatprep.subr.mxu0 0.0
  %819 = vmatpush1.msra.mxu0 %v799
  %820 = vmatprep.subr.mxu0 0.0
  %821 = vmatpush1.msra.mxu0 %v800
  %822 = vmatprep.subr.mxu0 0.0
  %823 = vmatpush1.msra.mxu0 %v801
  %824 = vmatprep.subr.mxu0 0.0
  %825 = vmatpush1.msra.mxu0 %v802
  %826 = vmatprep.subr.mxu0 0.0
  %827 = vmatpush1.msra.mxu0 %v803
  %828 = vmatprep.subr.mxu0 0.0
  %829 = vmatpush1.msra.mxu0 %v804
  %830 = vmatprep.subr.mxu0 0.0
  %831 = vmatpush1.msra.mxu0 %v805
  %832 = vmatprep.subr.mxu0 0.0
  %833 = vmatpush1.msra.mxu0 %v806
  %834 = vmatprep.subr.mxu0 0.0
  %835 = vmatpush1.msra.mxu0 0.0
  %836 = vmatprep.subr.mxu0 0.0
  %837 = vmatpush1.msra.mxu0 0.0
  %838 = vmatprep.subr.mxu0 0.0
  %839 = vmatpush1.msra.mxu0 0.0
  %840 = vmatprep.subr.mxu0 0.0
  %841 = vmatpush1.msra.mxu0 0.0
  %842 = vmatprep.subr.mxu0 0.0
  %843 = vmatpush1.msra.mxu0 0.0
  %844 = vmatprep.subr.mxu0 0.0
  %845 = vmatpush1.msra.mxu0 0.0
  %846 = vmatprep.subr.mxu0 0.0
  %847 = vmatpush1.msra.mxu0 0.0
  %848 = vmatprep.subr.mxu0 0.0
  %849 = vmatpush1.msra.mxu0 0.0
  %850 = vmatprep.subr.mxu0 0.0
  %851 = vmatpush1.msra.mxu0 0.0
  %852 = vmatprep.subr.mxu0 0.0
  %853 = vmatpush1.msra.mxu0 0.0
  %854 = vmatprep.subr.mxu0 0.0
  %855 = vmatpush1.msra.mxu0 0.0
  %856 = vmatprep.subr.mxu0 0.0
  %857 = vmatpush1.msra.mxu0 0.0
  %858 = vmatprep.subr.mxu0 0.0
  %859 = vmatpush1.msra.mxu0 0.0
  %860 = vmatprep.subr.mxu0 0.0
  %861 = vmatpush1.msra.mxu0 0.0
  %862 = vmatprep.subr.mxu0 0.0
  %863 = vmatpush1.msra.mxu0 0.0
  %864 = vmatprep.subr.mxu0 0.0
  %865 = vmatpush1.msra.mxu0 0.0
  %866 = vmatprep.subr.mxu0 0.0
  %867 = vmatpush1.msra.mxu0 0.0
  %868 = vmatprep.subr.mxu0 0.0
  %869 = vmatpush1.msra.mxu0 0.0
  %870 = vmatprep.subr.mxu0 0.0
  %871 = vmatpush1.msra.mxu0 0.0
  %872 = vmatprep.subr.mxu0 0.0
  %873 = vmatpush1.msra.mxu0 0.0
  %874 = vmatprep.subr.mxu0 0.0
  %875 = vmatpush1.msra.mxu0 0.0
  %876 = vmatprep.subr.mxu0 0.0
  %877 = vmatpush1.msra.mxu0 0.0
  %878 = vmatprep.subr.mxu0 0.0
  %879 = vmatpush1.msra.mxu0 0.0
  %880 = vmatprep.subr.mxu0 0.0
  %881 = vmatpush1.msra.mxu0 0.0
  %882 = vmatprep.mubr.f32.mxu0 0.0
  %883 = vmatmul.mubr.f32.gmra.mrb[0].mxu0 %v813
  %v884 = vpop.f32.mrb[0].mxu0
  %v885 = vadd.f32 0.0, %v884
  %v886 = vpop.f32.mrb[0].mxu0
  %887 = vmatprep.mubr.f32.mxu0 0.0
  %888 = vmatmul.mubr.f32.gmra.mrb[0].mxu0 %v816
  %v889 = vpop.f32.mrb[0].mxu0
  %v890 = vadd.f32 0.0, %v889
  %v891 = vpop.f32.mrb[0].mxu0
  %892 = vdwg.mxu0
  %v893 = vld [vmem:[%s13] sm:$0xff]
  %v894 = vld [vmem:[%s13 + $0x8] sm:$0xff]
  %v895 = vld [vmem:[%s13 + $0x10] sm:$0xff]
  %v896 = vld [vmem:[%s13 + $0x18] sm:$0xff]
  %v897 = vld [vmem:[%s13 + $0x20] sm:$0xff]
  %v898 = vld [vmem:[%s13 + $0x28] sm:$0xff]
  %v899 = vld [vmem:[%s13 + $0x30] sm:$0xff]
  %v900 = vld [vmem:[%s13 + $0x38] sm:$0xff]
  %v901 = vld [vmem:[%s13 + $0x40] sm:$0xff]
  %v902 = vld [vmem:[%s13 + $0x48] sm:$0xff]
  %v903 = vld [vmem:[%s13 + $0x50] sm:$0xff]
  %v904 = vld [vmem:[%s13 + $0x58] sm:$0xff]
  %v905 = vld [vmem:[%s13 + $0x60] sm:$0xff]
  %v906 = vld [vmem:[%s13 + $0x68] sm:$0xff]
  %v907 = vld [vmem:[%s13 + $0x70] sm:$0xff]
  %v908 = vld [vmem:[%s13 + $0x78] sm:$0xff]
  %v909 = vld [vmem:[%s14] sm:$0x1]
  %v911 = vlaneseq
  %v912 = vshrl.u32 %v911, 7
  %v913 = vsub.s32 0, %v912
  %v914 = vrot.slane %v909, %v913
  %916 = vmatprep.subr.mxu0 0.0
  %917 = vmatpush1.msra.mxu0 %v893
  %918 = vmatprep.subr.mxu0 0.0
  %919 = vmatpush1.msra.mxu0 %v894
  %920 = vmatprep.subr.mxu0 0.0
  %921 = vmatpush1.msra.mxu0 %v895
  %922 = vmatprep.subr.mxu0 0.0
  %923 = vmatpush1.msra.mxu0 %v896
  %924 = vmatprep.subr.mxu0 0.0
  %925 = vmatpush1.msra.mxu0 %v897
  %926 = vmatprep.subr.mxu0 0.0
  %927 = vmatpush1.msra.mxu0 %v898
  %928 = vmatprep.subr.mxu0 0.0
  %929 = vmatpush1.msra.mxu0 %v899
  %930 = vmatprep.subr.mxu0 0.0
  %931 = vmatpush1.msra.mxu0 %v900
  %932 = vmatprep.subr.mxu0 0.0
  %933 = vmatpush1.msra.mxu0 %v901
  %934 = vmatprep.subr.mxu0 0.0
  %935 = vmatpush1.msra.mxu0 %v902
  %936 = vmatprep.subr.mxu0 0.0
  %937 = vmatpush1.msra.mxu0 %v903
  %938 = vmatprep.subr.mxu0 0.0
  %939 = vmatpush1.msra.mxu0 %v904
  %940 = vmatprep.subr.mxu0 0.0
  %941 = vmatpush1.msra.mxu0 %v905
  %942 = vmatprep.subr.mxu0 0.0
  %943 = vmatpush1.msra.mxu0 %v906
  %944 = vmatprep.subr.mxu0 0.0
  %945 = vmatpush1.msra.mxu0 %v907
  %946 = vmatprep.subr.mxu0 0.0
  %947 = vmatpush1.msra.mxu0 %v908
  %948 = vmatprep.subr.mxu0 0.0
  %949 = vmatpush1.msra.mxu0 0.0
  %950 = vmatprep.subr.mxu0 0.0
  %951 = vmatpush1.msra.mxu0 0.0
  %952 = vmatprep.subr.mxu0 0.0
  %953 = vmatpush1.msra.mxu0 0.0
  %954 = vmatprep.subr.mxu0 0.0
  %955 = vmatpush1.msra.mxu0 0.0
  %956 = vmatprep.subr.mxu0 0.0
  %957 = vmatpush1.msra.mxu0 0.0
  %958 = vmatprep.subr.mxu0 0.0
  %959 = vmatpush1.msra.mxu0 0.0
  %960 = vmatprep.subr.mxu0 0.0
  %961 = vmatpush1.msra.mxu0 0.0
  %962 = vmatprep.subr.mxu0 0.0
  %963 = vmatpush1.msra.mxu0 0.0
  %964 = vmatprep.subr.mxu0 0.0
  %965 = vmatpush1.msra.mxu0 0.0
  %966 = vmatprep.subr.mxu0 0.0
  %967 = vmatpush1.msra.mxu0 0.0
  %968 = vmatprep.subr.mxu0 0.0
  %969 = vmatpush1.msra.mxu0 0.0
  %970 = vmatprep.subr.mxu0 0.0
  %971 = vmatpush1.msra.mxu0 0.0
  %972 = vmatprep.subr.mxu0 0.0
  %973 = vmatpush1.msra.mxu0 0.0
  %974 = vmatprep.subr.mxu0 0.0
  %975 = vmatpush1.msra.mxu0 0.0
  %976 = vmatprep.subr.mxu0 0.0
  %977 = vmatpush1.msra.mxu0 0.0
  %978 = vmatprep.subr.mxu0 0.0
  %979 = vmatpush1.msra.mxu0 0.0
  %980 = vmatprep.mubr.f32.mxu0 0.0
  %981 = vmatmul.mubr.f32.gmra.mrb[0].mxu0 %v607
  %v982 = vpop.f32.mrb[0].mxu0
  %v983 = vadd.f32 %v914, %v982
  %v984 = vpop.f32.mrb[0].mxu0
  %985 = vmatprep.mubr.f32.mxu0 0.0
  %986 = vmatmul.mubr.f32.gmra.mrb[0].mxu0 %v612
  %v987 = vpop.f32.mrb[0].mxu0
  %v988 = vadd.f32 %v914, %v987
  %v989 = vpop.f32.mrb[0].mxu0
  %990 = vmatprep.mubr.f32.mxu0 0.0
  %991 = vmatmul.mubr.f32.gmra.mrb[0].mxu0 %v617
  %v992 = vpop.f32.mrb[0].mxu0
  %v993 = vadd.f32 %v914, %v992
  %v994 = vpop.f32.mrb[0].mxu0
  %995 = vmatprep.mubr.f32.mxu0 0.0
  %996 = vmatmul.mubr.f32.gmra.mrb[0].mxu0 %v622
  %v997 = vpop.f32.mrb[0].mxu0
  %v998 = vadd.f32 %v914, %v997
  %v999 = vpop.f32.mrb[0].mxu0
  %1000 = vmatprep.mubr.f32.mxu0 0.0
  %1001 = vmatmul.mubr.f32.gmra.mrb[0].mxu0 %v627
  %v1002 = vpop.f32.mrb[0].mxu0
  %v1003 = vadd.f32 %v914, %v1002
  %v1004 = vpop.f32.mrb[0].mxu0
  %1005 = vmatprep.mubr.f32.mxu0 0.0
  %1006 = vmatmul.mubr.f32.gmra.mrb[0].mxu0 %v632
  %v1007 = vpop.f32.mrb[0].mxu0
  %v1008 = vadd.f32 %v914, %v1007
  %v1009 = vpop.f32.mrb[0].mxu0
  %1010 = vmatprep.mubr.f32.mxu0 0.0
  %1011 = vmatmul.mubr.f32.gmra.mrb[0].mxu0 %v637
  %v1012 = vpop.f32.mrb[0].mxu0
  %v1013 = vadd.f32 %v914, %v1012
  %v1014 = vpop.f32.mrb[0].mxu0
  %1015 = vmatprep.mubr.f32.mxu0 0.0
  %1016 = vmatmul.mubr.f32.gmra.mrb[0].mxu0 %v642
  %v1017 = vpop.f32.mrb[0].mxu0
  %v1018 = vadd.f32 %v914, %v1017
  %v1019 = vpop.f32.mrb[0].mxu0
  %1020 = vdwg.mxu0
  %v1021 = vmul.f32 %v983, 0.5
  %v1022 = vmul.f32 %v988, 0.5
  %v1023 = vmul.f32 %v993, 0.5
  %v1024 = vmul.f32 %v998, 0.5
  %v1025 = vmul.f32 %v1003, 0.5
  %v1026 = vmul.f32 %v1008, 0.5
  %v1027 = vmul.f32 %v1013, 0.5
  %v1028 = vmul.f32 %v1018, 0.5
  %v1029 = vmin.f32 %v1021, 14.0
  %v1030 = vmin.f32 %v1022, 14.0
  %v1031 = vmin.f32 %v1023, 14.0
  %v1032 = vmin.f32 %v1024, 14.0
  %v1033 = vmin.f32 %v1025, 14.0
  %v1034 = vmin.f32 %v1026, 14.0
  %v1035 = vmin.f32 %v1027, 14.0
  %v1036 = vmin.f32 %v1028, 14.0
  %v1037 = vmul.f32 %v1029, 1.442695
  %v1038 = vpow.pop %v1037
  %v1039 = vmul.f32 %v1030, 1.442695
  %v1040 = vpow.pop %v1039
  %v1041 = vmul.f32 %v1031, 1.442695
  %v1042 = vpow.pop %v1041
  %v1043 = vmul.f32 %v1032, 1.442695
  %v1044 = vpow.pop %v1043
  %v1045 = vmul.f32 %v1033, 1.442695
  %v1046 = vpow.pop %v1045
  %v1047 = vmul.f32 %v1034, 1.442695
  %v1048 = vpow.pop %v1047
  %v1049 = vmul.f32 %v1035, 1.442695
  %v1050 = vpow.pop %v1049
  %v1051 = vmul.f32 %v1036, 1.442695
  %v1052 = vpow.pop %v1051
  %v1053 = vadd.f32 %v1038, 1.0
  %v1054 = vadd.f32 %v1040, 1.0
  %v1055 = vadd.f32 %v1042, 1.0
  %v1056 = vadd.f32 %v1044, 1.0
  %v1057 = vadd.f32 %v1046, 1.0
  %v1058 = vadd.f32 %v1048, 1.0
  %v1059 = vadd.f32 %v1050, 1.0
  %v1060 = vadd.f32 %v1052, 1.0
  %v1061 = vlog2.pop %v1053
  %v1062 = vmul.f32 %v1061, 0.6931472
  %v1063 = vlog2.pop %v1054
  %v1064 = vmul.f32 %v1063, 0.6931472
  %v1065 = vlog2.pop %v1055
  %v1066 = vmul.f32 %v1065, 0.6931472
  %v1067 = vlog2.pop %v1056
  %v1068 = vmul.f32 %v1067, 0.6931472
  %v1069 = vlog2.pop %v1057
  %v1070 = vmul.f32 %v1069, 0.6931472
  %v1071 = vlog2.pop %v1058
  %v1072 = vmul.f32 %v1071, 0.6931472
  %v1073 = vlog2.pop %v1059
  %v1074 = vmul.f32 %v1073, 0.6931472
  %v1075 = vlog2.pop %v1060
  %v1076 = vmul.f32 %v1075, 0.6931472
  %v1077 = vmul.f32 %v1062, %v356
  %v1078 = vmul.f32 %v1064, %v356
  %v1079 = vmul.f32 %v1066, %v356
  %v1080 = vmul.f32 %v1068, %v356
  %v1081 = vmul.f32 %v1070, %v356
  %v1082 = vmul.f32 %v1072, %v356
  %v1083 = vmul.f32 %v1074, %v356
  %v1084 = vmul.f32 %v1076, %v356
  %vm1085 = vcmp.gt.f32.partialorder %v1021, 14.0
  %vm1086 = vcmp.gt.f32.partialorder %v1022, 14.0
  %vm1087 = vcmp.gt.f32.partialorder %v1023, 14.0
  %vm1088 = vcmp.gt.f32.partialorder %v1024, 14.0
  %vm1089 = vcmp.gt.f32.partialorder %v1025, 14.0
  %vm1090 = vcmp.gt.f32.partialorder %v1026, 14.0
  %vm1091 = vcmp.gt.f32.partialorder %v1027, 14.0
  %vm1092 = vcmp.gt.f32.partialorder %v1028, 14.0
  %v1093 = vsel %vm1085, %v983, %v1077
  %v1094 = vsel %vm1086, %v988, %v1078
  %v1095 = vsel %vm1087, %v993, %v1079
  %v1096 = vsel %vm1088, %v998, %v1080
  %v1097 = vsel %vm1089, %v1003, %v1081
  %v1098 = vsel %vm1090, %v1008, %v1082
  %v1099 = vsel %vm1091, %v1013, %v1083
  %v1100 = vsel %vm1092, %v1018, %v1084
  %1101 = vst [vmem:[%s20] sm:$0xff] %v1093
  %1102 = vst [vmem:[%s20 + $0x8] sm:$0xff] %v1094
  %1103 = vst [vmem:[%s20 + $0x10] sm:$0xff] %v1095
  %1104 = vst [vmem:[%s20 + $0x18] sm:$0xff] %v1096
  %1105 = vst [vmem:[%s20 + $0x20] sm:$0xff] %v1097
  %1106 = vst [vmem:[%s20 + $0x28] sm:$0xff] %v1098
  %1107 = vst [vmem:[%s20 + $0x30] sm:$0xff] %v1099
  %1108 = vst [vmem:[%s20 + $0x38] sm:$0xff] %v1100
  %v1109 = vld [vmem:[%s15] sm:$0xff]
  %v1110 = vld [vmem:[%s15 + $0x8] sm:$0xff]
  %v1111 = vld [vmem:[%s15 + $0x10] sm:$0xff]
  %v1112 = vld [vmem:[%s15 + $0x18] sm:$0xff]
  %v1113 = vld [vmem:[%s15 + $0x20] sm:$0xff]
  %v1114 = vld [vmem:[%s15 + $0x28] sm:$0xff]
  %v1115 = vld [vmem:[%s15 + $0x30] sm:$0xff]
  %v1116 = vld [vmem:[%s15 + $0x38] sm:$0xff]
  %v1117 = vld [vmem:[%s15 + $0x40] sm:$0xff]
  %v1118 = vld [vmem:[%s15 + $0x48] sm:$0xff]
  %v1119 = vld [vmem:[%s15 + $0x50] sm:$0xff]
  %v1120 = vld [vmem:[%s15 + $0x58] sm:$0xff]
  %v1121 = vld [vmem:[%s15 + $0x60] sm:$0xff]
  %v1122 = vld [vmem:[%s15 + $0x68] sm:$0xff]
  %v1123 = vld [vmem:[%s15 + $0x70] sm:$0xff]
  %v1124 = vld [vmem:[%s15 + $0x78] sm:$0xff]
  %v1125 = vld [vmem:[%s16] sm:$0x1]
  %v1127 = vlaneseq
  %v1128 = vshrl.u32 %v1127, 7
  %v1129 = vsub.s32 0, %v1128
  %v1130 = vrot.slane %v1125, %v1129
  %1132 = vmatprep.subr.mxu0 0.0
  %1133 = vmatpush1.msra.mxu0 %v1109
  %1134 = vmatprep.subr.mxu0 0.0
  %1135 = vmatpush1.msra.mxu0 %v1110
  %1136 = vmatprep.subr.mxu0 0.0
  %1137 = vmatpush1.msra.mxu0 %v1111
  %1138 = vmatprep.subr.mxu0 0.0
  %1139 = vmatpush1.msra.mxu0 %v1112
  %1140 = vmatprep.subr.mxu0 0.0
  %1141 = vmatpush1.msra.mxu0 %v1113
  %1142 = vmatprep.subr.mxu0 0.0
  %1143 = vmatpush1.msra.mxu0 %v1114
  %1144 = vmatprep.subr.mxu0 0.0
  %1145 = vmatpush1.msra.mxu0 %v1115
  %1146 = vmatprep.subr.mxu0 0.0
  %1147 = vmatpush1.msra.mxu0 %v1116
  %1148 = vmatprep.subr.mxu0 0.0
  %1149 = vmatpush1.msra.mxu0 %v1117
  %1150 = vmatprep.subr.mxu0 0.0
  %1151 = vmatpush1.msra.mxu0 %v1118
  %1152 = vmatprep.subr.mxu0 0.0
  %1153 = vmatpush1.msra.mxu0 %v1119
  %1154 = vmatprep.subr.mxu0 0.0
  %1155 = vmatpush1.msra.mxu0 %v1120
  %1156 = vmatprep.subr.mxu0 0.0
  %1157 = vmatpush1.msra.mxu0 %v1121
  %1158 = vmatprep.subr.mxu0 0.0
  %1159 = vmatpush1.msra.mxu0 %v1122
  %1160 = vmatprep.subr.mxu0 0.0
  %1161 = vmatpush1.msra.mxu0 %v1123
  %1162 = vmatprep.subr.mxu0 0.0
  %1163 = vmatpush1.msra.mxu0 %v1124
  %1164 = vmatprep.subr.mxu0 0.0
  %1165 = vmatpush1.msra.mxu0 0.0
  %1166 = vmatprep.subr.mxu0 0.0
  %1167 = vmatpush1.msra.mxu0 0.0
  %1168 = vmatprep.subr.mxu0 0.0
  %1169 = vmatpush1.msra.mxu0 0.0
  %1170 = vmatprep.subr.mxu0 0.0
  %1171 = vmatpush1.msra.mxu0 0.0
  %1172 = vmatprep.subr.mxu0 0.0
  %1173 = vmatpush1.msra.mxu0 0.0
  %1174 = vmatprep.subr.mxu0 0.0
  %1175 = vmatpush1.msra.mxu0 0.0
  %1176 = vmatprep.subr.mxu0 0.0
  %1177 = vmatpush1.msra.mxu0 0.0
  %1178 = vmatprep.subr.mxu0 0.0
  %1179 = vmatpush1.msra.mxu0 0.0
  %1180 = vmatprep.subr.mxu0 0.0
  %1181 = vmatpush1.msra.mxu0 0.0
  %1182 = vmatprep.subr.mxu0 0.0
  %1183 = vmatpush1.msra.mxu0 0.0
  %1184 = vmatprep.subr.mxu0 0.0
  %1185 = vmatpush1.msra.mxu0 0.0
  %1186 = vmatprep.subr.mxu0 0.0
  %1187 = vmatpush1.msra.mxu0 0.0
  %1188 = vmatprep.subr.mxu0 0.0
  %1189 = vmatpush1.msra.mxu0 0.0
  %1190 = vmatprep.subr.mxu0 0.0
  %1191 = vmatpush1.msra.mxu0 0.0
  %1192 = vmatprep.subr.mxu0 0.0
  %1193 = vmatpush1.msra.mxu0 0.0
  %1194 = vmatprep.subr.mxu0 0.0
  %1195 = vmatpush1.msra.mxu0 0.0
  %1196 = vmatprep.mubr.f32.mxu0 0.0
  %1197 = vmatmul.mubr.f32.gmra.mrb[0].mxu0 %v885
  %v1198 = vpop.f32.mrb[0].mxu0
  %v1199 = vadd.f32 %v1130, %v1198
  %v1200 = vpop.f32.mrb[0].mxu0
  %1201 = vmatprep.mubr.f32.mxu0 0.0
  %1202 = vmatmul.mubr.f32.gmra.mrb[0].mxu0 %v890
  %v1203 = vpop.f32.mrb[0].mxu0
  %v1204 = vadd.f32 %v1130, %v1203
  %v1205 = vpop.f32.mrb[0].mxu0
  %1206 = vdwg.mxu0
  %v1207 = vmul.f32 %v1199, 0.5
  %v1208 = vmul.f32 %v1204, 0.5
  %v1209 = vmin.f32 %v1207, 14.0
  %v1210 = vmin.f32 %v1208, 14.0
  %v1211 = vmul.f32 %v1209, 1.442695
  %v1212 = vpow.pop %v1211
  %v1213 = vmul.f32 %v1210, 1.442695
  %v1214 = vpow.pop %v1213
  %v1215 = vadd.f32 %v1212, 1.0
  %v1216 = vadd.f32 %v1214, 1.0
  %v1217 = vlog2.pop %v1215
  %v1218 = vmul.f32 %v1217, 0.6931472
  %v1219 = vlog2.pop %v1216
  %v1220 = vmul.f32 %v1219, 0.6931472
  %v1221 = vmul.f32 %v1218, %v356
  %v1222 = vmul.f32 %v1220, %v356
  %vm1223 = vcmp.gt.f32.partialorder %v1207, 14.0
  %vm1224 = vcmp.gt.f32.partialorder %v1208, 14.0
  %v1225 = vsel %vm1223, %v1199, %v1221
  %v1226 = vsel %vm1224, %v1204, %v1222
  %v1227 = vld [vmem:[%s17] sm:$0xff]
  %v1228 = vld [vmem:[%s17 + $0x8] sm:$0xff]
  %v1229 = vld [vmem:[%s17 + $0x10] sm:$0xff]
  %v1230 = vld [vmem:[%s17 + $0x18] sm:$0xff]
  %v1231 = vld [vmem:[%s17 + $0x20] sm:$0xff]
  %v1232 = vld [vmem:[%s17 + $0x28] sm:$0xff]
  %v1233 = vld [vmem:[%s17 + $0x30] sm:$0xff]
  %v1234 = vld [vmem:[%s17 + $0x38] sm:$0xff]
  %v1235 = vld [vmem:[%s17 + $0x40] sm:$0xff]
  %v1236 = vld [vmem:[%s17 + $0x48] sm:$0xff]
  %v1237 = vld [vmem:[%s17 + $0x50] sm:$0xff]
  %v1238 = vld [vmem:[%s17 + $0x58] sm:$0xff]
  %v1239 = vld [vmem:[%s17 + $0x60] sm:$0xff]
  %v1240 = vld [vmem:[%s17 + $0x68] sm:$0xff]
  %v1241 = vld [vmem:[%s17 + $0x70] sm:$0xff]
  %v1242 = vld [vmem:[%s17 + $0x78] sm:$0xff]
  %1243 = vmatprep.subr.mxu0 0.0
  %1244 = vmatpush1.msra.mxu0 %v1227
  %1245 = vmatprep.subr.mxu0 0.0
  %1246 = vmatpush1.msra.mxu0 %v1228
  %1247 = vmatprep.subr.mxu0 0.0
  %1248 = vmatpush1.msra.mxu0 %v1229
  %1249 = vmatprep.subr.mxu0 0.0
  %1250 = vmatpush1.msra.mxu0 %v1230
  %1251 = vmatprep.subr.mxu0 0.0
  %1252 = vmatpush1.msra.mxu0 %v1231
  %1253 = vmatprep.subr.mxu0 0.0
  %1254 = vmatpush1.msra.mxu0 %v1232
  %1255 = vmatprep.subr.mxu0 0.0
  %1256 = vmatpush1.msra.mxu0 %v1233
  %1257 = vmatprep.subr.mxu0 0.0
  %1258 = vmatpush1.msra.mxu0 %v1234
  %1259 = vmatprep.subr.mxu0 0.0
  %1260 = vmatpush1.msra.mxu0 %v1235
  %1261 = vmatprep.subr.mxu0 0.0
  %1262 = vmatpush1.msra.mxu0 %v1236
  %1263 = vmatprep.subr.mxu0 0.0
  %1264 = vmatpush1.msra.mxu0 %v1237
  %1265 = vmatprep.subr.mxu0 0.0
  %1266 = vmatpush1.msra.mxu0 %v1238
  %1267 = vmatprep.subr.mxu0 0.0
  %1268 = vmatpush1.msra.mxu0 %v1239
  %1269 = vmatprep.subr.mxu0 0.0
  %1270 = vmatpush1.msra.mxu0 %v1240
  %1271 = vmatprep.subr.mxu0 0.0
  %1272 = vmatpush1.msra.mxu0 %v1241
  %1273 = vmatprep.subr.mxu0 0.0
  %1274 = vmatpush1.msra.mxu0 %v1242
  %1275 = vmatprep.subr.mxu0 0.0
  %1276 = vmatpush1.msra.mxu0 0.0
  %1277 = vmatprep.subr.mxu0 0.0
  %1278 = vmatpush1.msra.mxu0 0.0
  %1279 = vmatprep.subr.mxu0 0.0
  %1280 = vmatpush1.msra.mxu0 0.0
  %1281 = vmatprep.subr.mxu0 0.0
  %1282 = vmatpush1.msra.mxu0 0.0
  %1283 = vmatprep.subr.mxu0 0.0
  %1284 = vmatpush1.msra.mxu0 0.0
  %1285 = vmatprep.subr.mxu0 0.0
  %1286 = vmatpush1.msra.mxu0 0.0
  %1287 = vmatprep.subr.mxu0 0.0
  %1288 = vmatpush1.msra.mxu0 0.0
  %1289 = vmatprep.subr.mxu0 0.0
  %1290 = vmatpush1.msra.mxu0 0.0
  %1291 = vmatprep.subr.mxu0 0.0
  %1292 = vmatpush1.msra.mxu0 0.0
  %1293 = vmatprep.subr.mxu0 0.0
  %1294 = vmatpush1.msra.mxu0 0.0
  %1295 = vmatprep.subr.mxu0 0.0
  %1296 = vmatpush1.msra.mxu0 0.0
  %1297 = vmatprep.subr.mxu0 0.0
  %1298 = vmatpush1.msra.mxu0 0.0
  %1299 = vmatprep.subr.mxu0 0.0
  %1300 = vmatpush1.msra.mxu0 0.0
  %1301 = vmatprep.subr.mxu0 0.0
  %1302 = vmatpush1.msra.mxu0 0.0
  %1303 = vmatprep.subr.mxu0 0.0
  %1304 = vmatpush1.msra.mxu0 0.0
  %1305 = vmatprep.subr.mxu0 0.0
  %1306 = vmatpush1.msra.mxu0 0.0
  %1307 = vmatprep.mubr.f32.mxu0 0.0
  %1308 = vmatmul.mubr.f32.gmra.mrb[0].mxu0 %v1225
  %v1309 = vpop.f32.mrb[0].mxu0
  %v1310 = vadd.f32 0.0, %v1309
  %v1311 = vpop.f32.mrb[0].mxu0
  %1312 = vmatprep.mubr.f32.mxu0 0.0
  %1313 = vmatmul.mubr.f32.gmra.mrb[0].mxu0 %v1226
  %v1314 = vpop.f32.mrb[0].mxu0
  %v1315 = vadd.f32 0.0, %v1314
  %v1316 = vpop.f32.mrb[0].mxu0
  %1317 = vdwg.mxu0
  %v1318 = vadd.f32 %v64, %v1310
  %v1319 = vadd.f32 %v65, %v1315
  %v1320 = vld [vmem:[%s18] sm:$0x1]
  %v1322 = vlaneseq
  %v1323 = vshrl.u32 %v1322, 7
  %v1324 = vsub.s32 0, %v1323
  %v1325 = vrot.slane %v1320, %v1324
  %v1327 = vadd.f32 %v1318, %v1325
  %v1328 = vadd.f32 %v1319, %v1325
  %1329 = vst [vmem:[%s19] sm:$0xff] %v1327
  %1330 = vst [vmem:[%s19 + $0x8] sm:$0xff] %v1328
  // Predicated region
  $region78: #{mgcn_forward.4} parent=0 // pred_check
    _
  $region79: #{mgcn_forward.4} parent=0 // pred_check_branch
    %1332 = sbr.rel (0) target = $region81
  $region80: #{mgcn_forward.4} parent=0 // pred_region
    _
  $region81: #{mgcn_forward.4} parent=0 // pred_fallthru
    _
  // Predicated region
  $region82: #{mgcn_forward.4} parent=0 // pred_check
    _
  $region83: #{mgcn_forward.4} parent=0 // pred_check_branch
    %1334 = sbr.rel (0) target = $region85
  $region84: #{mgcn_forward.4} parent=0 // pred_region
    _
  $region85: #{mgcn_forward.4} parent=0 // pred_fallthru
    _
  // Predicated region
  $region86: #{mgcn_forward.4} parent=0 // pred_check
    _
  $region87: #{mgcn_forward.4} parent=0 // pred_check_branch
    %1336 = sbr.rel (0) target = $region89
  $region88: #{mgcn_forward.4} parent=0 // pred_region
    _
  $region89: #{mgcn_forward.4} parent=0 // pred_fallthru
    _
  // Predicated region
  $region90: #{mgcn_forward.4} parent=0 // pred_check
    _
  $region91: #{mgcn_forward.4} parent=0 // pred_check_branch
    %1338 = sbr.rel (0) target = $region93
  $region92: #{mgcn_forward.4} parent=0 // pred_region
    _
  $region93: #{mgcn_forward.4} parent=0 // pred_fallthru
    _

</llo_original>
